<compile_context>
chip_gen: v7x
topology: tpu7x:2x2x1
jax: 0.10.0
libtpu: 0.0.40
codegen_flags: <defaults>
</compile_context>

<pallas_src>
from functools import partial

import numpy as np
import jax
import jax.numpy as jnp
from jax import lax
from jax.experimental import pallas as pl
from jax.experimental.pallas import tpu as pltpu


def _round_up(n, m):
    return ((n + m - 1) // m) * m


def _tpu_limits():
    """(per-core VMEM bytes, #TensorCores) with conservative (v7x) fallbacks."""
    vmem_cap = 64 << 20   # v7x: 64 MiB per TensorCore (smallest of the fleet)
    num_tc = 2            # assume a dual-core part unless told otherwise
    try:
        info = pltpu.get_tpu_info()
        vmem_cap = int(getattr(info, "vmem_capacity_bytes", vmem_cap) or vmem_cap)
        for attr in ("num_cores", "core_count", "num_tensorcores"):
            v = getattr(info, attr, None)
            if v:
                num_tc = int(v)
                break
    except Exception:
        pass
    return vmem_cap, num_tc


def _rnn_fc_kernel(layer_dim, t_chunk, *refs):
    """One batch-tile of the full RNNimc forward pass.

    Ref order:
      x_ref                 [T, TB, Dp]                    (f32)
      per layer l:          w_ih_T [D_l, Hp], w_hh_T [Hp, Hp] (matmul dtype),
                            bias [1, Hp]                   (f32, = b_ih+b_hh)
      fc_w_T                [Hp, Op]                        (matmul dtype)
      fc_b                  [1, Op]                          (f32)
      out_ref               [TB, Op]                         (f32)
      proj_ref (scratch)    [T, TB, Hp]  (f32 projections / layer output seq)
    """
    n_in = 1 + 3 * layer_dim + 2
    x_ref = refs[0]
    layer_refs = refs[1:1 + 3 * layer_dim]
    fc_w_ref = refs[1 + 3 * layer_dim]
    fc_b_ref = refs[2 + 3 * layer_dim]
    out_ref = refs[n_in]
    proj_ref = refs[n_in + 1]

    T, TB, Hp = proj_ref.shape
    mm_dtype = fc_w_ref.dtype          # bf16 (default) or f32 matmul operands

    h = None
    for l in range(layer_dim):
        w_ih = layer_refs[3 * l][...]      # [D_l, Hp]
        w_hh = layer_refs[3 * l + 1][...]  # [Hp, Hp]
        bias = layer_refs[3 * l + 2][...]  # [1, Hp]

        # (1) Input projection over all timesteps, chunked along T so the dot
        # result's live range stays bounded (vreg pressure) while each chunk
        # still feeds the MXU a few hundred rows. In-place is safe: each
        # output row depends only on the same input row.
        for c0 in range(0, T, t_chunk):
            tc = min(t_chunk, T - c0)
            if l == 0:
                inp = x_ref[pl.ds(c0, tc)].reshape(tc * TB, x_ref.shape[-1])
            else:
                inp = proj_ref[pl.ds(c0, tc)].reshape(tc * TB, Hp)
            proj = jnp.dot(inp.astype(mm_dtype), w_ih,
                           preferred_element_type=jnp.float32) + bias
            proj_ref[pl.ds(c0, tc)] = proj.reshape(tc, TB, Hp)

        write_seq = l < (layer_dim - 1)   # top layer's per-step outputs unused

        # (2) Serial recurrence, h carried in registers. h_{-1} == 0, so the
        # t=0 step is just relu(proj[0]) - no wasted 0 @ W_hh MXU pass.
        h0 = jnp.maximum(proj_ref[0], 0.0)
        if write_seq:
            proj_ref[0] = h0

        # TODO(synk): weight-stationary recurrence (pltpu.matmul_push_rhs /
        # matmul_acc_lhs / matmul_pop) would avoid re-pushing W_hh every step
        # when TB is small; left as a follow-up.
        def step(t, h_prev, _w_hh=w_hh, _write=write_seq):
            h_new = jnp.maximum(
                proj_ref[t]
                + jnp.dot(h_prev.astype(mm_dtype), _w_hh,
                          preferred_element_type=jnp.float32),
                0.0,
            )
            if _write:
                proj_ref[t] = h_new       # becomes next layer's input sequence
            return h_new

        if T > 1:
            h = lax.fori_loop(1, T, step, h0,
                              unroll=True if T <= 16 else 4)
        else:
            h = h0

    # out = fc1(out[:, -1, :]); last top-layer hidden state is carried in `h`.
    out_ref[...] = (
        jnp.dot(h.astype(mm_dtype), fc_w_ref[...],
                preferred_element_type=jnp.float32)
        + fc_b_ref[...]
    )


def rnn_imc_forward(x, params, hidden_dim, layer_dim, output_dim,
                    matmul_dtype=jnp.bfloat16):
    """x: [B, T, input_dim] (batch-first, PyTorch convention). Returns [B, output_dim]."""
    B, T, D = x.shape
    Hp = _round_up(hidden_dim, 128)          # lane-dense hidden width
    Op = _round_up(output_dim, 128)          # lane-dense FC output width
    Dp = _round_up(D, 128)                   # lane-dense K dim for first projection
    mm_bytes = jnp.dtype(matmul_dtype).itemsize

    vmem_cap, num_tc = _tpu_limits()
    budget = max(24 << 20, vmem_cap - (8 << 20))   # never request above physical VMEM

    wbytes = (mm_bytes * (Dp * Hp + (2 * layer_dim - 1) * Hp * Hp + Hp * Op)
              + 4 * (layer_dim * Hp + Op))

    def vmem_need(tb):
        return (2 * 4 * T * tb * Dp        # x tile, double-buffered, f32
                + 2 * 4 * tb * Op          # out tile, double-buffered, f32
                + 2 * wbytes               # weights (x2 covers non-single-buffer fallback)
                + 4 * T * tb * Hp          # projection / inter-layer sequence scratch
                + (2 << 20))               # compiler headroom

    # Batch tile: big enough to feed the MXU full rows / amortize grid overhead,
    # split into >= num_tc tiles so the "parallel" axis can shard across v7x's
    # two TensorCores, and shrunk until the VMEM budget is met.
    Bp8 = _round_up(B, 8)
    TB = min(256, Bp8)
    if num_tc > 1 and Bp8 > 8:
        TB = min(TB, _round_up(max(8, -(-Bp8 // num_tc)), 8))
    while TB > 8 and vmem_need(TB) > budget:
        TB = max(8, _round_up(TB // 2, 8))
    # TODO(synk): for very large T*Hp the [T,TB,Hp] scratch can exceed VMEM even
    # at TB=8; that regime needs streaming the inter-layer sequence through HBM.
    Bp = _round_up(B, TB)
    n_btiles = Bp // TB
    t_chunk = max(1, min(T, 256 // TB))   # ~256-row projection chunks

    # Time-major + batch/feature padding. Activations stay f32 in VMEM (safe
    # (8,128) tiling); casts to matmul_dtype happen right next to each dot.
    x_tm = jnp.transpose(x.astype(jnp.float32), (1, 0, 2))               # [T, B, D]
    x_tm = jnp.pad(x_tm, ((0, 0), (0, Bp - B), (0, Dp - D)))             # [T, Bp, Dp]

    def padw(a, rows, cols):
        a = a.astype(jnp.float32)
        a = jnp.pad(a, ((0, rows - a.shape[0]), (0, cols - a.shape[1])))
        return a.astype(matmul_dtype)

    kernel_inputs = [x_tm]
    weight_shapes = []                       # shapes of every input after x
    for l in range(layer_dim):
        w_ih, w_hh, b_ih, b_hh = params["rnn"][l]
        d_l = Dp if l == 0 else Hp
        kernel_inputs += [
            padw(jnp.transpose(w_ih), d_l, Hp),                          # [D_l, Hp]
            padw(jnp.transpose(w_hh), Hp, Hp),                           # [Hp, Hp]
            jnp.pad((b_ih + b_hh).astype(jnp.float32),
                    (0, Hp - hidden_dim)).reshape(1, Hp),                # [1, Hp]
        ]
        weight_shapes += [(d_l, Hp), (Hp, Hp), (1, Hp)]
    fc_w, fc_b = params["fc"]
    kernel_inputs += [
        padw(jnp.transpose(fc_w), Hp, Op),                               # [Hp, Op]
        jnp.pad(fc_b.astype(jnp.float32),
                (0, Op - output_dim)).reshape(1, Op),                    # [1, Op]
    ]
    weight_shapes += [(Hp, Op), (1, Op)]

    # Advisory cost estimate for XLA scheduling of surrounding ops.
    flops = 0
    for l in range(layer_dim):
        d_l = D if l == 0 else hidden_dim
        flops += 2 * T * Bp * (d_l * hidden_dim + hidden_dim * hidden_dim)
    flops += 2 * Bp * hidden_dim * output_dim
    bytes_accessed = (x_tm.size * 4
                      + sum(int(np.prod(s)) for s in weight_shapes) * mm_bytes
                      + Bp * Op * 4)
    cost = pl.CostEstimate(flops=int(flops), transcendentals=0,
                           bytes_accessed=int(bytes_accessed))

    out_shape = jax.ShapeDtypeStruct((Bp, Op), jnp.float32)
    scratch = [pltpu.VMEM((T, TB, Hp), jnp.float32)]
    cparams = pltpu.CompilerParams(dimension_semantics=("parallel",),
                                   vmem_limit_bytes=int(budget))

    def run(single_buffer_weights):
        # Weights/biases are identical for every grid step; single-buffering
        # them halves their VMEM footprint (most valuable on v7x's 64 MiB).
        if single_buffer_weights:
            wspec = lambda s: pl.BlockSpec(s, lambda b: (0, 0),
                                           pipeline_mode=pl.Buffered(1))
        else:
            wspec = lambda s: pl.BlockSpec(s, lambda b: (0, 0))
        in_specs = [pl.BlockSpec((T, TB, Dp), lambda b: (0, b, 0))]
        in_specs += [wspec(s) for s in weight_shapes]
        out_spec = pl.BlockSpec((TB, Op), lambda b: (b, 0))
        return pl.pallas_call(
            partial(_rnn_fc_kernel, layer_dim, t_chunk),
            out_shape=out_shape,
            grid=(n_btiles,),
            in_specs=in_specs,
            out_specs=out_spec,
            scratch_shapes=scratch,
            compiler_params=cparams,
            cost_estimate=cost,
        )(*kernel_inputs)

    try:
        out = run(True)
    except Exception:
        # Conservative fallback if this jax build rejects Buffered(1).
        out = run(False)

    return out[:B, :output_dim]


def rnn_imc_reference(x, params, hidden_dim, layer_dim):
    """Pure-JAX reference matching torch.nn.RNN(nonlinearity='relu') + Linear."""
    B, T, _ = x.shape
    inp = x.astype(jnp.float32)
    for l in range(layer_dim):
        w_ih, w_hh, b_ih, b_hh = params["rnn"][l]
        h = jnp.zeros((B, hidden_dim), jnp.float32)
        outs = []
        for t in range(T):
            h = jnp.maximum(inp[:, t, :] @ w_ih.T + b_ih + h @ w_hh.T + b_hh, 0.0)
            outs.append(h)
        inp = jnp.stack(outs, axis=1)
    fc_w, fc_b = params["fc"]
    return inp[:, -1, :] @ fc_w.T + fc_b


def init_params(key, input_dim, hidden_dim, layer_dim, output_dim):
    """PyTorch-style uniform(-1/sqrt(H), 1/sqrt(H)) init, deterministic."""
    k = 1.0 / np.sqrt(hidden_dim)
    params = {"rnn": [], "fc": None}
    for l in range(layer_dim):
        d_l = input_dim if l == 0 else hidden_dim
        key, k1, k2, k3, k4 = jax.random.split(key, 5)
        w_ih = jax.random.uniform(k1, (hidden_dim, d_l), jnp.float32, -k, k)
        w_hh = jax.random.uniform(k2, (hidden_dim, hidden_dim), jnp.float32, -k, k)
        b_ih = jax.random.uniform(k3, (hidden_dim,), jnp.float32, -k, k)
        b_hh = jax.random.uniform(k4, (hidden_dim,), jnp.float32, -k, k)
        params["rnn"].append((w_ih, w_hh, b_ih, b_hh))
    key, k5, k6 = jax.random.split(key, 3)
    fc_w = jax.random.uniform(k5, (output_dim, hidden_dim), jnp.float32, -k, k)
    fc_b = jax.random.uniform(k6, (output_dim,), jnp.float32, -k, k)
    params["fc"] = (fc_w, fc_b)
    return params


if __name__ == "__main__":
    batch, time_step = 2, 8
    input_dim, hidden_dim, layer_dim, output_dim = 16, 32, 2, 10

    key = jax.random.PRNGKey(0)
    key, kx = jax.random.split(key)
    x = jax.random.normal(kx, (batch, time_step, input_dim), jnp.float32)
    params = init_params(key, input_dim, hidden_dim, layer_dim, output_dim)

    ref = rnn_imc_reference(x, params, hidden_dim, layer_dim)

    # Default (performance) path: bf16 MXU operands, f32 accumulation.
    out_bf16 = rnn_imc_forward(x, params, hidden_dim, layer_dim, output_dim)
    out_bf16 = jax.block_until_ready(out_bf16)
    np.testing.assert_allclose(np.asarray(out_bf16), np.asarray(ref),
                               rtol=3e-2, atol=3e-2)

    # Full-precision path: exact match to the reference tolerance.
    out_f32 = rnn_imc_forward(x, params, hidden_dim, layer_dim, output_dim,
                              matmul_dtype=jnp.float32)
    out_f32 = jax.block_until_ready(out_f32)
    np.testing.assert_allclose(np.asarray(out_f32), np.asarray(ref),
                               rtol=1e-4, atol=1e-5)

    print("KERNEL_OK")
</pallas_src>

<mosaic_0001>
module attributes {stable_mosaic.version = 11 : i64} {
  func.func @_rnn_fc_kernel(%arg0: i32, %arg1: memref<8x8x128xf32, #tpu.memory_space<vmem>>, %arg2: memref<128x128xbf16, #tpu.memory_space<vmem>>, %arg3: memref<128x128xbf16, #tpu.memory_space<vmem>>, %arg4: memref<1x128xf32, #tpu.memory_space<vmem>>, %arg5: memref<128x128xbf16, #tpu.memory_space<vmem>>, %arg6: memref<128x128xbf16, #tpu.memory_space<vmem>>, %arg7: memref<1x128xf32, #tpu.memory_space<vmem>>, %arg8: memref<128x128xbf16, #tpu.memory_space<vmem>>, %arg9: memref<1x128xf32, #tpu.memory_space<vmem>>, %arg10: memref<8x128xf32, #tpu.memory_space<vmem>>, %arg11: memref<8x8x128xf32, #tpu.memory_space<vmem>>) attributes {dimension_semantics = [#tpu.dimension_semantics<parallel>], iteration_bounds = array<i64: 1>, scalar_prefetch = 0 : i64, scratch_operands = 1 : i64, tpu.core_type = #tpu.core_type<tc>, window_params = [{transform_indices = @transform_0, window_bounds = array<i64: 8, 8, 128>}, {pipeline_mode = #tpu.pipeline_mode<synchronous>, transform_indices = @transform_1, window_bounds = array<i64: 128, 128>}, {pipeline_mode = #tpu.pipeline_mode<synchronous>, transform_indices = @transform_2, window_bounds = array<i64: 128, 128>}, {pipeline_mode = #tpu.pipeline_mode<synchronous>, transform_indices = @transform_3, window_bounds = array<i64: 1, 128>}, {pipeline_mode = #tpu.pipeline_mode<synchronous>, transform_indices = @transform_4, window_bounds = array<i64: 128, 128>}, {pipeline_mode = #tpu.pipeline_mode<synchronous>, transform_indices = @transform_5, window_bounds = array<i64: 128, 128>}, {pipeline_mode = #tpu.pipeline_mode<synchronous>, transform_indices = @transform_6, window_bounds = array<i64: 1, 128>}, {pipeline_mode = #tpu.pipeline_mode<synchronous>, transform_indices = @transform_7, window_bounds = array<i64: 128, 128>}, {pipeline_mode = #tpu.pipeline_mode<synchronous>, transform_indices = @transform_8, window_bounds = array<i64: 1, 128>}, {transform_indices = @transform_9, window_bounds = array<i64: 8, 128>}]} {
    %c0 = arith.constant 0 : index
    %c0_0 = arith.constant 0 : index
    %0 = vector.load %arg2[%c0, %c0_0] : memref<128x128xbf16, #tpu.memory_space<vmem>>, vector<128x128xbf16>
    %c0_1 = arith.constant 0 : index
    %c0_2 = arith.constant 0 : index
    %1 = vector.load %arg3[%c0_1, %c0_2] : memref<128x128xbf16, #tpu.memory_space<vmem>>, vector<128x128xbf16>
    %c0_3 = arith.constant 0 : index
    %c0_4 = arith.constant 0 : index
    %2 = vector.load %arg4[%c0_3, %c0_4] : memref<1x128xf32, #tpu.memory_space<vmem>>, vector<1x128xf32>
    %c0_5 = arith.constant 0 : index
    %c0_6 = arith.constant 0 : index
    %c0_7 = arith.constant 0 : index
    %3 = vector.load %arg1[%c0_5, %c0_6, %c0_7] : memref<8x8x128xf32, #tpu.memory_space<vmem>>, vector<8x8x128xf32>
    %4 = vector.shape_cast %3 : vector<8x8x128xf32> to vector<64x128xf32>
    %5 = arith.truncf %4 : vector<64x128xf32> to vector<64x128xbf16>
    %cst = arith.constant dense<0.000000e+00> : vector<64x128xf32>
    %6 = tpu.matmul %5, %0, %cst {dimension_numbers = #tpu.dot_dimension_numbers<[1], [0], [0], [1], [0, 0, 1, 1], [], []>} : vector<64x128xbf16>, vector<128x128xbf16>, vector<64x128xf32> -> vector<64x128xf32>
    %7 = vector.broadcast %2 : vector<1x128xf32> to vector<64x128xf32>
    %8 = arith.addf %6, %7 : vector<64x128xf32>
    %9 = vector.shape_cast %8 : vector<64x128xf32> to vector<8x8x128xf32>
    %c0_8 = arith.constant 0 : index
    %c0_9 = arith.constant 0 : index
    %c0_10 = arith.constant 0 : index
    %10 = vector.load %arg11[%c0_8, %c0_9, %c0_10] : memref<8x8x128xf32, #tpu.memory_space<vmem>>, vector<8x8x128xf32>
    tpu.vector_store %arg11[%c0_8, %c0_9, %c0_10], %9 {strides = array<i32>} : memref<8x8x128xf32, #tpu.memory_space<vmem>>, vector<8x8x128xf32>,
    %c0_11 = arith.constant 0 : index
    %c0_12 = arith.constant 0 : index
    %c0_13 = arith.constant 0 : index
    %11 = vector.load %arg11[%c0_11, %c0_12, %c0_13] : memref<8x8x128xf32, #tpu.memory_space<vmem>>, vector<1x8x128xf32>
    %12 = vector.shape_cast %11 : vector<1x8x128xf32> to vector<8x128xf32>
    %cst_14 = arith.constant 0.000000e+00 : f32
    %13 = vector.broadcast %cst_14 : f32 to vector<8x128xf32>
    %14 = arith.maximumf %12, %13 : vector<8x128xf32>
    %c0_15 = arith.constant 0 : index
    %c0_16 = arith.constant 0 : index
    %c0_17 = arith.constant 0 : index
    %15 = vector.load %arg11[%c0_15, %c0_16, %c0_17] : memref<8x8x128xf32, #tpu.memory_space<vmem>>, vector<1x8x128xf32>
    %16 = vector.shape_cast %15 : vector<1x8x128xf32> to vector<8x128xf32>
    %17 = vector.shape_cast %14 : vector<8x128xf32> to vector<1x8x128xf32>
    tpu.vector_store %arg11[%c0_15, %c0_16, %c0_17], %17 {strides = array<i32>} : memref<8x8x128xf32, #tpu.memory_space<vmem>>, vector<1x8x128xf32>,
    %c1_i32 = arith.constant 1 : i32
    %18 = arith.index_cast %c1_i32 : i32 to index
    %c0_18 = arith.constant 0 : index
    %c0_19 = arith.constant 0 : index
    %19 = vector.load %arg11[%18, %c0_18, %c0_19] : memref<8x8x128xf32, #tpu.memory_space<vmem>>, vector<1x8x128xf32>
    %20 = vector.shape_cast %19 : vector<1x8x128xf32> to vector<8x128xf32>
    %21 = arith.truncf %14 : vector<8x128xf32> to vector<8x128xbf16>
    %cst_20 = arith.constant dense<0.000000e+00> : vector<8x128xf32>
    %22 = tpu.matmul %21, %1, %cst_20 {dimension_numbers = #tpu.dot_dimension_numbers<[1], [0], [0], [1], [0, 0, 1, 1], [], []>} : vector<8x128xbf16>, vector<128x128xbf16>, vector<8x128xf32> -> vector<8x128xf32>
    %23 = arith.addf %20, %22 : vector<8x128xf32>
    %cst_21 = arith.constant 0.000000e+00 : f32
    %24 = vector.broadcast %cst_21 : f32 to vector<8x128xf32>
    %25 = arith.maximumf %23, %24 : vector<8x128xf32>
    %26 = arith.index_cast %c1_i32 : i32 to index
    %c0_22 = arith.constant 0 : index
    %c0_23 = arith.constant 0 : index
    %27 = vector.load %arg11[%26, %c0_22, %c0_23] : memref<8x8x128xf32, #tpu.memory_space<vmem>>, vector<1x8x128xf32>
    %28 = vector.shape_cast %27 : vector<1x8x128xf32> to vector<8x128xf32>
    %29 = vector.shape_cast %25 : vector<8x128xf32> to vector<1x8x128xf32>
    tpu.vector_store %arg11[%26, %c0_22, %c0_23], %29 {strides = array<i32>} : memref<8x8x128xf32, #tpu.memory_space<vmem>>, vector<1x8x128xf32>,
    %c2_i32 = arith.constant 2 : i32
    %30 = arith.index_cast %c2_i32 : i32 to index
    %c0_24 = arith.constant 0 : index
    %c0_25 = arith.constant 0 : index
    %31 = vector.load %arg11[%30, %c0_24, %c0_25] : memref<8x8x128xf32, #tpu.memory_space<vmem>>, vector<1x8x128xf32>
    %32 = vector.shape_cast %31 : vector<1x8x128xf32> to vector<8x128xf32>
    %33 = arith.truncf %25 : vector<8x128xf32> to vector<8x128xbf16>
    %cst_26 = arith.constant dense<0.000000e+00> : vector<8x128xf32>
    %34 = tpu.matmul %33, %1, %cst_26 {dimension_numbers = #tpu.dot_dimension_numbers<[1], [0], [0], [1], [0, 0, 1, 1], [], []>} : vector<8x128xbf16>, vector<128x128xbf16>, vector<8x128xf32> -> vector<8x128xf32>
    %35 = arith.addf %32, %34 : vector<8x128xf32>
    %cst_27 = arith.constant 0.000000e+00 : f32
    %36 = vector.broadcast %cst_27 : f32 to vector<8x128xf32>
    %37 = arith.maximumf %35, %36 : vector<8x128xf32>
    %38 = arith.index_cast %c2_i32 : i32 to index
    %c0_28 = arith.constant 0 : index
    %c0_29 = arith.constant 0 : index
    %39 = vector.load %arg11[%38, %c0_28, %c0_29] : memref<8x8x128xf32, #tpu.memory_space<vmem>>, vector<1x8x128xf32>
    %40 = vector.shape_cast %39 : vector<1x8x128xf32> to vector<8x128xf32>
    %41 = vector.shape_cast %37 : vector<8x128xf32> to vector<1x8x128xf32>
    tpu.vector_store %arg11[%38, %c0_28, %c0_29], %41 {strides = array<i32>} : memref<8x8x128xf32, #tpu.memory_space<vmem>>, vector<1x8x128xf32>,
    %c3_i32 = arith.constant 3 : i32
    %42 = arith.index_cast %c3_i32 : i32 to index
    %c0_30 = arith.constant 0 : index
    %c0_31 = arith.constant 0 : index
    %43 = vector.load %arg11[%42, %c0_30, %c0_31] : memref<8x8x128xf32, #tpu.memory_space<vmem>>, vector<1x8x128xf32>
    %44 = vector.shape_cast %43 : vector<1x8x128xf32> to vector<8x128xf32>
    %45 = arith.truncf %37 : vector<8x128xf32> to vector<8x128xbf16>
    %cst_32 = arith.constant dense<0.000000e+00> : vector<8x128xf32>
    %46 = tpu.matmul %45, %1, %cst_32 {dimension_numbers = #tpu.dot_dimension_numbers<[1], [0], [0], [1], [0, 0, 1, 1], [], []>} : vector<8x128xbf16>, vector<128x128xbf16>, vector<8x128xf32> -> vector<8x128xf32>
    %47 = arith.addf %44, %46 : vector<8x128xf32>
    %cst_33 = arith.constant 0.000000e+00 : f32
    %48 = vector.broadcast %cst_33 : f32 to vector<8x128xf32>
    %49 = arith.maximumf %47, %48 : vector<8x128xf32>
    %50 = arith.index_cast %c3_i32 : i32 to index
    %c0_34 = arith.constant 0 : index
    %c0_35 = arith.constant 0 : index
    %51 = vector.load %arg11[%50, %c0_34, %c0_35] : memref<8x8x128xf32, #tpu.memory_space<vmem>>, vector<1x8x128xf32>
    %52 = vector.shape_cast %51 : vector<1x8x128xf32> to vector<8x128xf32>
    %53 = vector.shape_cast %49 : vector<8x128xf32> to vector<1x8x128xf32>
    tpu.vector_store %arg11[%50, %c0_34, %c0_35], %53 {strides = array<i32>} : memref<8x8x128xf32, #tpu.memory_space<vmem>>, vector<1x8x128xf32>,
    %c4_i32 = arith.constant 4 : i32
    %54 = arith.index_cast %c4_i32 : i32 to index
    %c0_36 = arith.constant 0 : index
    %c0_37 = arith.constant 0 : index
    %55 = vector.load %arg11[%54, %c0_36, %c0_37] : memref<8x8x128xf32, #tpu.memory_space<vmem>>, vector<1x8x128xf32>
    %56 = vector.shape_cast %55 : vector<1x8x128xf32> to vector<8x128xf32>
    %57 = arith.truncf %49 : vector<8x128xf32> to vector<8x128xbf16>
    %cst_38 = arith.constant dense<0.000000e+00> : vector<8x128xf32>
    %58 = tpu.matmul %57, %1, %cst_38 {dimension_numbers = #tpu.dot_dimension_numbers<[1], [0], [0], [1], [0, 0, 1, 1], [], []>} : vector<8x128xbf16>, vector<128x128xbf16>, vector<8x128xf32> -> vector<8x128xf32>
    %59 = arith.addf %56, %58 : vector<8x128xf32>
    %cst_39 = arith.constant 0.000000e+00 : f32
    %60 = vector.broadcast %cst_39 : f32 to vector<8x128xf32>
    %61 = arith.maximumf %59, %60 : vector<8x128xf32>
    %62 = arith.index_cast %c4_i32 : i32 to index
    %c0_40 = arith.constant 0 : index
    %c0_41 = arith.constant 0 : index
    %63 = vector.load %arg11[%62, %c0_40, %c0_41] : memref<8x8x128xf32, #tpu.memory_space<vmem>>, vector<1x8x128xf32>
    %64 = vector.shape_cast %63 : vector<1x8x128xf32> to vector<8x128xf32>
    %65 = vector.shape_cast %61 : vector<8x128xf32> to vector<1x8x128xf32>
    tpu.vector_store %arg11[%62, %c0_40, %c0_41], %65 {strides = array<i32>} : memref<8x8x128xf32, #tpu.memory_space<vmem>>, vector<1x8x128xf32>,
    %c5_i32 = arith.constant 5 : i32
    %66 = arith.index_cast %c5_i32 : i32 to index
    %c0_42 = arith.constant 0 : index
    %c0_43 = arith.constant 0 : index
    %67 = vector.load %arg11[%66, %c0_42, %c0_43] : memref<8x8x128xf32, #tpu.memory_space<vmem>>, vector<1x8x128xf32>
    %68 = vector.shape_cast %67 : vector<1x8x128xf32> to vector<8x128xf32>
    %69 = arith.truncf %61 : vector<8x128xf32> to vector<8x128xbf16>
    %cst_44 = arith.constant dense<0.000000e+00> : vector<8x128xf32>
    %70 = tpu.matmul %69, %1, %cst_44 {dimension_numbers = #tpu.dot_dimension_numbers<[1], [0], [0], [1], [0, 0, 1, 1], [], []>} : vector<8x128xbf16>, vector<128x128xbf16>, vector<8x128xf32> -> vector<8x128xf32>
    %71 = arith.addf %68, %70 : vector<8x128xf32>
    %cst_45 = arith.constant 0.000000e+00 : f32
    %72 = vector.broadcast %cst_45 : f32 to vector<8x128xf32>
    %73 = arith.maximumf %71, %72 : vector<8x128xf32>
    %74 = arith.index_cast %c5_i32 : i32 to index
    %c0_46 = arith.constant 0 : index
    %c0_47 = arith.constant 0 : index
    %75 = vector.load %arg11[%74, %c0_46, %c0_47] : memref<8x8x128xf32, #tpu.memory_space<vmem>>, vector<1x8x128xf32>
    %76 = vector.shape_cast %75 : vector<1x8x128xf32> to vector<8x128xf32>
    %77 = vector.shape_cast %73 : vector<8x128xf32> to vector<1x8x128xf32>
    tpu.vector_store %arg11[%74, %c0_46, %c0_47], %77 {strides = array<i32>} : memref<8x8x128xf32, #tpu.memory_space<vmem>>, vector<1x8x128xf32>,
    %c6_i32 = arith.constant 6 : i32
    %78 = arith.index_cast %c6_i32 : i32 to index
    %c0_48 = arith.constant 0 : index
    %c0_49 = arith.constant 0 : index
    %79 = vector.load %arg11[%78, %c0_48, %c0_49] : memref<8x8x128xf32, #tpu.memory_space<vmem>>, vector<1x8x128xf32>
    %80 = vector.shape_cast %79 : vector<1x8x128xf32> to vector<8x128xf32>
    %81 = arith.truncf %73 : vector<8x128xf32> to vector<8x128xbf16>
    %cst_50 = arith.constant dense<0.000000e+00> : vector<8x128xf32>
    %82 = tpu.matmul %81, %1, %cst_50 {dimension_numbers = #tpu.dot_dimension_numbers<[1], [0], [0], [1], [0, 0, 1, 1], [], []>} : vector<8x128xbf16>, vector<128x128xbf16>, vector<8x128xf32> -> vector<8x128xf32>
    %83 = arith.addf %80, %82 : vector<8x128xf32>
    %cst_51 = arith.constant 0.000000e+00 : f32
    %84 = vector.broadcast %cst_51 : f32 to vector<8x128xf32>
    %85 = arith.maximumf %83, %84 : vector<8x128xf32>
    %86 = arith.index_cast %c6_i32 : i32 to index
    %c0_52 = arith.constant 0 : index
    %c0_53 = arith.constant 0 : index
    %87 = vector.load %arg11[%86, %c0_52, %c0_53] : memref<8x8x128xf32, #tpu.memory_space<vmem>>, vector<1x8x128xf32>
    %88 = vector.shape_cast %87 : vector<1x8x128xf32> to vector<8x128xf32>
    %89 = vector.shape_cast %85 : vector<8x128xf32> to vector<1x8x128xf32>
    tpu.vector_store %arg11[%86, %c0_52, %c0_53], %89 {strides = array<i32>} : memref<8x8x128xf32, #tpu.memory_space<vmem>>, vector<1x8x128xf32>,
    %c7_i32 = arith.constant 7 : i32
    %90 = arith.index_cast %c7_i32 : i32 to index
    %c0_54 = arith.constant 0 : index
    %c0_55 = arith.constant 0 : index
    %91 = vector.load %arg11[%90, %c0_54, %c0_55] : memref<8x8x128xf32, #tpu.memory_space<vmem>>, vector<1x8x128xf32>
    %92 = vector.shape_cast %91 : vector<1x8x128xf32> to vector<8x128xf32>
    %93 = arith.truncf %85 : vector<8x128xf32> to vector<8x128xbf16>
    %cst_56 = arith.constant dense<0.000000e+00> : vector<8x128xf32>
    %94 = tpu.matmul %93, %1, %cst_56 {dimension_numbers = #tpu.dot_dimension_numbers<[1], [0], [0], [1], [0, 0, 1, 1], [], []>} : vector<8x128xbf16>, vector<128x128xbf16>, vector<8x128xf32> -> vector<8x128xf32>
    %95 = arith.addf %92, %94 : vector<8x128xf32>
    %cst_57 = arith.constant 0.000000e+00 : f32
    %96 = vector.broadcast %cst_57 : f32 to vector<8x128xf32>
    %97 = arith.maximumf %95, %96 : vector<8x128xf32>
    %98 = arith.index_cast %c7_i32 : i32 to index
    %c0_58 = arith.constant 0 : index
    %c0_59 = arith.constant 0 : index
    %99 = vector.load %arg11[%98, %c0_58, %c0_59] : memref<8x8x128xf32, #tpu.memory_space<vmem>>, vector<1x8x128xf32>
    %100 = vector.shape_cast %99 : vector<1x8x128xf32> to vector<8x128xf32>
    %101 = vector.shape_cast %97 : vector<8x128xf32> to vector<1x8x128xf32>
    tpu.vector_store %arg11[%98, %c0_58, %c0_59], %101 {strides = array<i32>} : memref<8x8x128xf32, #tpu.memory_space<vmem>>, vector<1x8x128xf32>,
    %c7_i32_60 = arith.constant 7 : i32
    %c0_61 = arith.constant 0 : index
    %c0_62 = arith.constant 0 : index
    %102 = vector.load %arg5[%c0_61, %c0_62] : memref<128x128xbf16, #tpu.memory_space<vmem>>, vector<128x128xbf16>
    %c0_63 = arith.constant 0 : index
    %c0_64 = arith.constant 0 : index
    %103 = vector.load %arg6[%c0_63, %c0_64] : memref<128x128xbf16, #tpu.memory_space<vmem>>, vector<128x128xbf16>
    %c0_65 = arith.constant 0 : index
    %c0_66 = arith.constant 0 : index
    %104 = vector.load %arg7[%c0_65, %c0_66] : memref<1x128xf32, #tpu.memory_space<vmem>>, vector<1x128xf32>
    %c0_67 = arith.constant 0 : index
    %c0_68 = arith.constant 0 : index
    %c0_69 = arith.constant 0 : index
    %105 = vector.load %arg11[%c0_67, %c0_68, %c0_69] : memref<8x8x128xf32, #tpu.memory_space<vmem>>, vector<8x8x128xf32>
    %106 = vector.shape_cast %105 : vector<8x8x128xf32> to vector<64x128xf32>
    %107 = arith.truncf %106 : vector<64x128xf32> to vector<64x128xbf16>
    %cst_70 = arith.constant dense<0.000000e+00> : vector<64x128xf32>
    %108 = tpu.matmul %107, %102, %cst_70 {dimension_numbers = #tpu.dot_dimension_numbers<[1], [0], [0], [1], [0, 0, 1, 1], [], []>} : vector<64x128xbf16>, vector<128x128xbf16>, vector<64x128xf32> -> vector<64x128xf32>
    %109 = vector.broadcast %104 : vector<1x128xf32> to vector<64x128xf32>
    %110 = arith.addf %108, %109 : vector<64x128xf32>
    %111 = vector.shape_cast %110 : vector<64x128xf32> to vector<8x8x128xf32>
    %c0_71 = arith.constant 0 : index
    %c0_72 = arith.constant 0 : index
    %c0_73 = arith.constant 0 : index
    %112 = vector.load %arg11[%c0_71, %c0_72, %c0_73] : memref<8x8x128xf32, #tpu.memory_space<vmem>>, vector<8x8x128xf32>
    tpu.vector_store %arg11[%c0_71, %c0_72, %c0_73], %111 {strides = array<i32>} : memref<8x8x128xf32, #tpu.memory_space<vmem>>, vector<8x8x128xf32>,
    %c0_74 = arith.constant 0 : index
    %c0_75 = arith.constant 0 : index
    %c0_76 = arith.constant 0 : index
    %113 = vector.load %arg11[%c0_74, %c0_75, %c0_76] : memref<8x8x128xf32, #tpu.memory_space<vmem>>, vector<1x8x128xf32>
    %114 = vector.shape_cast %113 : vector<1x8x128xf32> to vector<8x128xf32>
    %cst_77 = arith.constant 0.000000e+00 : f32
    %115 = vector.broadcast %cst_77 : f32 to vector<8x128xf32>
    %116 = arith.maximumf %114, %115 : vector<8x128xf32>
    %c1_i32_78 = arith.constant 1 : i32
    %117 = arith.index_cast %c1_i32_78 : i32 to index
    %c0_79 = arith.constant 0 : index
    %c0_80 = arith.constant 0 : index
    %118 = vector.load %arg11[%117, %c0_79, %c0_80] : memref<8x8x128xf32, #tpu.memory_space<vmem>>, vector<1x8x128xf32>
    %119 = vector.shape_cast %118 : vector<1x8x128xf32> to vector<8x128xf32>
    %120 = arith.truncf %116 : vector<8x128xf32> to vector<8x128xbf16>
    %cst_81 = arith.constant dense<0.000000e+00> : vector<8x128xf32>
    %121 = tpu.matmul %120, %103, %cst_81 {dimension_numbers = #tpu.dot_dimension_numbers<[1], [0], [0], [1], [0, 0, 1, 1], [], []>} : vector<8x128xbf16>, vector<128x128xbf16>, vector<8x128xf32> -> vector<8x128xf32>
    %122 = arith.addf %119, %121 : vector<8x128xf32>
    %cst_82 = arith.constant 0.000000e+00 : f32
    %123 = vector.broadcast %cst_82 : f32 to vector<8x128xf32>
    %124 = arith.maximumf %122, %123 : vector<8x128xf32>
    %c2_i32_83 = arith.constant 2 : i32
    %125 = arith.index_cast %c2_i32_83 : i32 to index
    %c0_84 = arith.constant 0 : index
    %c0_85 = arith.constant 0 : index
    %126 = vector.load %arg11[%125, %c0_84, %c0_85] : memref<8x8x128xf32, #tpu.memory_space<vmem>>, vector<1x8x128xf32>
    %127 = vector.shape_cast %126 : vector<1x8x128xf32> to vector<8x128xf32>
    %128 = arith.truncf %124 : vector<8x128xf32> to vector<8x128xbf16>
    %cst_86 = arith.constant dense<0.000000e+00> : vector<8x128xf32>
    %129 = tpu.matmul %128, %103, %cst_86 {dimension_numbers = #tpu.dot_dimension_numbers<[1], [0], [0], [1], [0, 0, 1, 1], [], []>} : vector<8x128xbf16>, vector<128x128xbf16>, vector<8x128xf32> -> vector<8x128xf32>
    %130 = arith.addf %127, %129 : vector<8x128xf32>
    %cst_87 = arith.constant 0.000000e+00 : f32
    %131 = vector.broadcast %cst_87 : f32 to vector<8x128xf32>
    %132 = arith.maximumf %130, %131 : vector<8x128xf32>
    %c3_i32_88 = arith.constant 3 : i32
    %133 = arith.index_cast %c3_i32_88 : i32 to index
    %c0_89 = arith.constant 0 : index
    %c0_90 = arith.constant 0 : index
    %134 = vector.load %arg11[%133, %c0_89, %c0_90] : memref<8x8x128xf32, #tpu.memory_space<vmem>>, vector<1x8x128xf32>
    %135 = vector.shape_cast %134 : vector<1x8x128xf32> to vector<8x128xf32>
    %136 = arith.truncf %132 : vector<8x128xf32> to vector<8x128xbf16>
    %cst_91 = arith.constant dense<0.000000e+00> : vector<8x128xf32>
    %137 = tpu.matmul %136, %103, %cst_91 {dimension_numbers = #tpu.dot_dimension_numbers<[1], [0], [0], [1], [0, 0, 1, 1], [], []>} : vector<8x128xbf16>, vector<128x128xbf16>, vector<8x128xf32> -> vector<8x128xf32>
    %138 = arith.addf %135, %137 : vector<8x128xf32>
    %cst_92 = arith.constant 0.000000e+00 : f32
    %139 = vector.broadcast %cst_92 : f32 to vector<8x128xf32>
    %140 = arith.maximumf %138, %139 : vector<8x128xf32>
    %c4_i32_93 = arith.constant 4 : i32
    %141 = arith.index_cast %c4_i32_93 : i32 to index
    %c0_94 = arith.constant 0 : index
    %c0_95 = arith.constant 0 : index
    %142 = vector.load %arg11[%141, %c0_94, %c0_95] : memref<8x8x128xf32, #tpu.memory_space<vmem>>, vector<1x8x128xf32>
    %143 = vector.shape_cast %142 : vector<1x8x128xf32> to vector<8x128xf32>
    %144 = arith.truncf %140 : vector<8x128xf32> to vector<8x128xbf16>
    %cst_96 = arith.constant dense<0.000000e+00> : vector<8x128xf32>
    %145 = tpu.matmul %144, %103, %cst_96 {dimension_numbers = #tpu.dot_dimension_numbers<[1], [0], [0], [1], [0, 0, 1, 1], [], []>} : vector<8x128xbf16>, vector<128x128xbf16>, vector<8x128xf32> -> vector<8x128xf32>
    %146 = arith.addf %143, %145 : vector<8x128xf32>
    %cst_97 = arith.constant 0.000000e+00 : f32
    %147 = vector.broadcast %cst_97 : f32 to vector<8x128xf32>
    %148 = arith.maximumf %146, %147 : vector<8x128xf32>
    %c5_i32_98 = arith.constant 5 : i32
    %149 = arith.index_cast %c5_i32_98 : i32 to index
    %c0_99 = arith.constant 0 : index
    %c0_100 = arith.constant 0 : index
    %150 = vector.load %arg11[%149, %c0_99, %c0_100] : memref<8x8x128xf32, #tpu.memory_space<vmem>>, vector<1x8x128xf32>
    %151 = vector.shape_cast %150 : vector<1x8x128xf32> to vector<8x128xf32>
    %152 = arith.truncf %148 : vector<8x128xf32> to vector<8x128xbf16>
    %cst_101 = arith.constant dense<0.000000e+00> : vector<8x128xf32>
    %153 = tpu.matmul %152, %103, %cst_101 {dimension_numbers = #tpu.dot_dimension_numbers<[1], [0], [0], [1], [0, 0, 1, 1], [], []>} : vector<8x128xbf16>, vector<128x128xbf16>, vector<8x128xf32> -> vector<8x128xf32>
    %154 = arith.addf %151, %153 : vector<8x128xf32>
    %cst_102 = arith.constant 0.000000e+00 : f32
    %155 = vector.broadcast %cst_102 : f32 to vector<8x128xf32>
    %156 = arith.maximumf %154, %155 : vector<8x128xf32>
    %c6_i32_103 = arith.constant 6 : i32
    %157 = arith.index_cast %c6_i32_103 : i32 to index
    %c0_104 = arith.constant 0 : index
    %c0_105 = arith.constant 0 : index
    %158 = vector.load %arg11[%157, %c0_104, %c0_105] : memref<8x8x128xf32, #tpu.memory_space<vmem>>, vector<1x8x128xf32>
    %159 = vector.shape_cast %158 : vector<1x8x128xf32> to vector<8x128xf32>
    %160 = arith.truncf %156 : vector<8x128xf32> to vector<8x128xbf16>
    %cst_106 = arith.constant dense<0.000000e+00> : vector<8x128xf32>
    %161 = tpu.matmul %160, %103, %cst_106 {dimension_numbers = #tpu.dot_dimension_numbers<[1], [0], [0], [1], [0, 0, 1, 1], [], []>} : vector<8x128xbf16>, vector<128x128xbf16>, vector<8x128xf32> -> vector<8x128xf32>
    %162 = arith.addf %159, %161 : vector<8x128xf32>
    %cst_107 = arith.constant 0.000000e+00 : f32
    %163 = vector.broadcast %cst_107 : f32 to vector<8x128xf32>
    %164 = arith.maximumf %162, %163 : vector<8x128xf32>
    %c7_i32_108 = arith.constant 7 : i32
    %165 = arith.index_cast %c7_i32_108 : i32 to index
    %c0_109 = arith.constant 0 : index
    %c0_110 = arith.constant 0 : index
    %166 = vector.load %arg11[%165, %c0_109, %c0_110] : memref<8x8x128xf32, #tpu.memory_space<vmem>>, vector<1x8x128xf32>
    %167 = vector.shape_cast %166 : vector<1x8x128xf32> to vector<8x128xf32>
    %168 = arith.truncf %164 : vector<8x128xf32> to vector<8x128xbf16>
    %cst_111 = arith.constant dense<0.000000e+00> : vector<8x128xf32>
    %169 = tpu.matmul %168, %103, %cst_111 {dimension_numbers = #tpu.dot_dimension_numbers<[1], [0], [0], [1], [0, 0, 1, 1], [], []>} : vector<8x128xbf16>, vector<128x128xbf16>, vector<8x128xf32> -> vector<8x128xf32>
    %170 = arith.addf %167, %169 : vector<8x128xf32>
    %cst_112 = arith.constant 0.000000e+00 : f32
    %171 = vector.broadcast %cst_112 : f32 to vector<8x128xf32>
    %172 = arith.maximumf %170, %171 : vector<8x128xf32>
    %c7_i32_113 = arith.constant 7 : i32
    %173 = arith.truncf %172 : vector<8x128xf32> to vector<8x128xbf16>
    %c0_114 = arith.constant 0 : index
    %c0_115 = arith.constant 0 : index
    %174 = vector.load %arg8[%c0_114, %c0_115] : memref<128x128xbf16, #tpu.memory_space<vmem>>, vector<128x128xbf16>
    %cst_116 = arith.constant dense<0.000000e+00> : vector<8x128xf32>
    %175 = tpu.matmul %173, %174, %cst_116 {dimension_numbers = #tpu.dot_dimension_numbers<[1], [0], [0], [1], [0, 0, 1, 1], [], []>} : vector<8x128xbf16>, vector<128x128xbf16>, vector<8x128xf32> -> vector<8x128xf32>
    %c0_117 = arith.constant 0 : index
    %c0_118 = arith.constant 0 : index
    %176 = vector.load %arg9[%c0_117, %c0_118] : memref<1x128xf32, #tpu.memory_space<vmem>>, vector<1x128xf32>
    %177 = vector.broadcast %176 : vector<1x128xf32> to vector<8x128xf32>
    %178 = arith.addf %175, %177 : vector<8x128xf32>
    %c0_119 = arith.constant 0 : index
    %c0_120 = arith.constant 0 : index
    %179 = vector.load %arg10[%c0_119, %c0_120] : memref<8x128xf32, #tpu.memory_space<vmem>>, vector<8x128xf32>
    tpu.vector_store %arg10[%c0_119, %c0_120], %178 {strides = array<i32>} : memref<8x128xf32, #tpu.memory_space<vmem>>, vector<8x128xf32>,
    return
  }
  func.func @transform_0(%arg0: i32) -> (i32, i32, i32) {
    %c0_i32 = arith.constant 0 : i32
    %c0_i32_0 = arith.constant 0 : i32
    %c0_i32_1 = arith.constant 0 : i32
    return %c0_i32, %arg0, %c0_i32_0 : i32, i32, i32
  }
  func.func @transform_1(%arg0: i32) -> (i32, i32) {
    %c0_i32 = arith.constant 0 : i32
    %c0_i32_0 = arith.constant 0 : i32
    %c0_i32_1 = arith.constant 0 : i32
    return %c0_i32, %c0_i32_0 : i32, i32
  }
  func.func @transform_2(%arg0: i32) -> (i32, i32) {
    %c0_i32 = arith.constant 0 : i32
    %c0_i32_0 = arith.constant 0 : i32
    %c0_i32_1 = arith.constant 0 : i32
    return %c0_i32, %c0_i32_0 : i32, i32
  }
  func.func @transform_3(%arg0: i32) -> (i32, i32) {
    %c0_i32 = arith.constant 0 : i32
    %c0_i32_0 = arith.constant 0 : i32
    %c0_i32_1 = arith.constant 0 : i32
    return %c0_i32, %c0_i32_0 : i32, i32
  }
  func.func @transform_4(%arg0: i32) -> (i32, i32) {
    %c0_i32 = arith.constant 0 : i32
    %c0_i32_0 = arith.constant 0 : i32
    %c0_i32_1 = arith.constant 0 : i32
    return %c0_i32, %c0_i32_0 : i32, i32
  }
  func.func @transform_5(%arg0: i32) -> (i32, i32) {
    %c0_i32 = arith.constant 0 : i32
    %c0_i32_0 = arith.constant 0 : i32
    %c0_i32_1 = arith.constant 0 : i32
    return %c0_i32, %c0_i32_0 : i32, i32
  }
  func.func @transform_6(%arg0: i32) -> (i32, i32) {
    %c0_i32 = arith.constant 0 : i32
    %c0_i32_0 = arith.constant 0 : i32
    %c0_i32_1 = arith.constant 0 : i32
    return %c0_i32, %c0_i32_0 : i32, i32
  }
  func.func @transform_7(%arg0: i32) -> (i32, i32) {
    %c0_i32 = arith.constant 0 : i32
    %c0_i32_0 = arith.constant 0 : i32
    %c0_i32_1 = arith.constant 0 : i32
    return %c0_i32, %c0_i32_0 : i32, i32
  }
  func.func @transform_8(%arg0: i32) -> (i32, i32) {
    %c0_i32 = arith.constant 0 : i32
    %c0_i32_0 = arith.constant 0 : i32
    %c0_i32_1 = arith.constant 0 : i32
    return %c0_i32, %c0_i32_0 : i32, i32
  }
  func.func @transform_9(%arg0: i32) -> (i32, i32) {
    %c0_i32 = arith.constant 0 : i32
    %c0_i32_0 = arith.constant 0 : i32
    return %arg0, %c0_i32 : i32, i32
  }
}

module attributes {stable_mosaic.version = 11 : i64} {
  func.func @_rnn_fc_kernel(%arg0: i32, %arg1: memref<8x8x128xf32, #tpu.memory_space<vmem>>, %arg2: memref<128x128xbf16, #tpu.memory_space<vmem>>, %arg3: memref<128x128xbf16, #tpu.memory_space<vmem>>, %arg4: memref<1x128xf32, #tpu.memory_space<vmem>>, %arg5: memref<128x128xbf16, #tpu.memory_space<vmem>>, %arg6: memref<128x128xbf16, #tpu.memory_space<vmem>>, %arg7: memref<1x128xf32, #tpu.memory_space<vmem>>, %arg8: memref<128x128xbf16, #tpu.memory_space<vmem>>, %arg9: memref<1x128xf32, #tpu.memory_space<vmem>>, %arg10: memref<8x128xf32, #tpu.memory_space<vmem>>, %arg11: memref<8x8x128xf32, #tpu.memory_space<vmem>>) attributes {dimension_semantics = [#tpu.dimension_semantics<parallel>], iteration_bounds = array<i64: 1>, scalar_prefetch = 0 : i64, scratch_operands = 1 : i64, tpu.core_type = #tpu.core_type<tc>, window_params = [{transform_indices = @transform_0, window_bounds = array<i64: 8, 8, 128>}, {pipeline_mode = #tpu.pipeline_mode<synchronous>, transform_indices = @transform_1, window_bounds = array<i64: 128, 128>}, {pipeline_mode = #tpu.pipeline_mode<synchronous>, transform_indices = @transform_2, window_bounds = array<i64: 128, 128>}, {pipeline_mode = #tpu.pipeline_mode<synchronous>, transform_indices = @transform_3, window_bounds = array<i64: 1, 128>}, {pipeline_mode = #tpu.pipeline_mode<synchronous>, transform_indices = @transform_4, window_bounds = array<i64: 128, 128>}, {pipeline_mode = #tpu.pipeline_mode<synchronous>, transform_indices = @transform_5, window_bounds = array<i64: 128, 128>}, {pipeline_mode = #tpu.pipeline_mode<synchronous>, transform_indices = @transform_6, window_bounds = array<i64: 1, 128>}, {pipeline_mode = #tpu.pipeline_mode<synchronous>, transform_indices = @transform_7, window_bounds = array<i64: 128, 128>}, {pipeline_mode = #tpu.pipeline_mode<synchronous>, transform_indices = @transform_8, window_bounds = array<i64: 1, 128>}, {transform_indices = @transform_9, window_bounds = array<i64: 8, 128>}]} {
    %c0 = arith.constant 0 : index
    %c0_0 = arith.constant 0 : index
    %0 = vector.load %arg2[%c0, %c0_0] : memref<128x128xbf16, #tpu.memory_space<vmem>>, vector<128x128xbf16>
    %c0_1 = arith.constant 0 : index
    %c0_2 = arith.constant 0 : index
    %1 = vector.load %arg3[%c0_1, %c0_2] : memref<128x128xbf16, #tpu.memory_space<vmem>>, vector<128x128xbf16>
    %c0_3 = arith.constant 0 : index
    %c0_4 = arith.constant 0 : index
    %2 = vector.load %arg4[%c0_3, %c0_4] : memref<1x128xf32, #tpu.memory_space<vmem>>, vector<1x128xf32>
    %c0_5 = arith.constant 0 : index
    %c0_6 = arith.constant 0 : index
    %c0_7 = arith.constant 0 : index
    %3 = vector.load %arg1[%c0_5, %c0_6, %c0_7] : memref<8x8x128xf32, #tpu.memory_space<vmem>>, vector<8x8x128xf32>
    %4 = vector.shape_cast %3 : vector<8x8x128xf32> to vector<64x128xf32>
    %5 = arith.truncf %4 : vector<64x128xf32> to vector<64x128xbf16>
    %cst = arith.constant dense<0.000000e+00> : vector<64x128xf32>
    %6 = tpu.matmul %5, %0, %cst {dimension_numbers = #tpu.dot_dimension_numbers<[1], [0], [0], [1], [0, 0, 1, 1], [], []>} : vector<64x128xbf16>, vector<128x128xbf16>, vector<64x128xf32> -> vector<64x128xf32>
    %7 = vector.broadcast %2 : vector<1x128xf32> to vector<64x128xf32>
    %8 = arith.addf %6, %7 : vector<64x128xf32>
    %9 = vector.shape_cast %8 : vector<64x128xf32> to vector<8x8x128xf32>
    %c0_8 = arith.constant 0 : index
    %c0_9 = arith.constant 0 : index
    %c0_10 = arith.constant 0 : index
    %10 = vector.load %arg11[%c0_8, %c0_9, %c0_10] : memref<8x8x128xf32, #tpu.memory_space<vmem>>, vector<8x8x128xf32>
    tpu.vector_store %arg11[%c0_8, %c0_9, %c0_10], %9 {strides = array<i32>} : memref<8x8x128xf32, #tpu.memory_space<vmem>>, vector<8x8x128xf32>,
    %c0_11 = arith.constant 0 : index
    %c0_12 = arith.constant 0 : index
    %c0_13 = arith.constant 0 : index
    %11 = vector.load %arg11[%c0_11, %c0_12, %c0_13] : memref<8x8x128xf32, #tpu.memory_space<vmem>>, vector<1x8x128xf32>
    %12 = vector.shape_cast %11 : vector<1x8x128xf32> to vector<8x128xf32>
    %cst_14 = arith.constant 0.000000e+00 : f32
    %13 = vector.broadcast %cst_14 : f32 to vector<8x128xf32>
    %14 = arith.maximumf %12, %13 : vector<8x128xf32>
    %c0_15 = arith.constant 0 : index
    %c0_16 = arith.constant 0 : index
    %c0_17 = arith.constant 0 : index
    %15 = vector.load %arg11[%c0_15, %c0_16, %c0_17] : memref<8x8x128xf32, #tpu.memory_space<vmem>>, vector<1x8x128xf32>
    %16 = vector.shape_cast %15 : vector<1x8x128xf32> to vector<8x128xf32>
    %17 = vector.shape_cast %14 : vector<8x128xf32> to vector<1x8x128xf32>
    tpu.vector_store %arg11[%c0_15, %c0_16, %c0_17], %17 {strides = array<i32>} : memref<8x8x128xf32, #tpu.memory_space<vmem>>, vector<1x8x128xf32>,
    %c1_i32 = arith.constant 1 : i32
    %18 = arith.index_cast %c1_i32 : i32 to index
    %c0_18 = arith.constant 0 : index
    %c0_19 = arith.constant 0 : index
    %19 = vector.load %arg11[%18, %c0_18, %c0_19] : memref<8x8x128xf32, #tpu.memory_space<vmem>>, vector<1x8x128xf32>
    %20 = vector.shape_cast %19 : vector<1x8x128xf32> to vector<8x128xf32>
    %21 = arith.truncf %14 : vector<8x128xf32> to vector<8x128xbf16>
    %cst_20 = arith.constant dense<0.000000e+00> : vector<8x128xf32>
    %22 = tpu.matmul %21, %1, %cst_20 {dimension_numbers = #tpu.dot_dimension_numbers<[1], [0], [0], [1], [0, 0, 1, 1], [], []>} : vector<8x128xbf16>, vector<128x128xbf16>, vector<8x128xf32> -> vector<8x128xf32>
    %23 = arith.addf %20, %22 : vector<8x128xf32>
    %cst_21 = arith.constant 0.000000e+00 : f32
    %24 = vector.broadcast %cst_21 : f32 to vector<8x128xf32>
    %25 = arith.maximumf %23, %24 : vector<8x128xf32>
    %26 = arith.index_cast %c1_i32 : i32 to index
    %c0_22 = arith.constant 0 : index
    %c0_23 = arith.constant 0 : index
    %27 = vector.load %arg11[%26, %c0_22, %c0_23] : memref<8x8x128xf32, #tpu.memory_space<vmem>>, vector<1x8x128xf32>
    %28 = vector.shape_cast %27 : vector<1x8x128xf32> to vector<8x128xf32>
    %29 = vector.shape_cast %25 : vector<8x128xf32> to vector<1x8x128xf32>
    tpu.vector_store %arg11[%26, %c0_22, %c0_23], %29 {strides = array<i32>} : memref<8x8x128xf32, #tpu.memory_space<vmem>>, vector<1x8x128xf32>,
    %c2_i32 = arith.constant 2 : i32
    %30 = arith.index_cast %c2_i32 : i32 to index
    %c0_24 = arith.constant 0 : index
    %c0_25 = arith.constant 0 : index
    %31 = vector.load %arg11[%30, %c0_24, %c0_25] : memref<8x8x128xf32, #tpu.memory_space<vmem>>, vector<1x8x128xf32>
    %32 = vector.shape_cast %31 : vector<1x8x128xf32> to vector<8x128xf32>
    %33 = arith.truncf %25 : vector<8x128xf32> to vector<8x128xbf16>
    %cst_26 = arith.constant dense<0.000000e+00> : vector<8x128xf32>
    %34 = tpu.matmul %33, %1, %cst_26 {dimension_numbers = #tpu.dot_dimension_numbers<[1], [0], [0], [1], [0, 0, 1, 1], [], []>} : vector<8x128xbf16>, vector<128x128xbf16>, vector<8x128xf32> -> vector<8x128xf32>
    %35 = arith.addf %32, %34 : vector<8x128xf32>
    %cst_27 = arith.constant 0.000000e+00 : f32
    %36 = vector.broadcast %cst_27 : f32 to vector<8x128xf32>
    %37 = arith.maximumf %35, %36 : vector<8x128xf32>
    %38 = arith.index_cast %c2_i32 : i32 to index
    %c0_28 = arith.constant 0 : index
    %c0_29 = arith.constant 0 : index
    %39 = vector.load %arg11[%38, %c0_28, %c0_29] : memref<8x8x128xf32, #tpu.memory_space<vmem>>, vector<1x8x128xf32>
    %40 = vector.shape_cast %39 : vector<1x8x128xf32> to vector<8x128xf32>
    %41 = vector.shape_cast %37 : vector<8x128xf32> to vector<1x8x128xf32>
    tpu.vector_store %arg11[%38, %c0_28, %c0_29], %41 {strides = array<i32>} : memref<8x8x128xf32, #tpu.memory_space<vmem>>, vector<1x8x128xf32>,
    %c3_i32 = arith.constant 3 : i32
    %42 = arith.index_cast %c3_i32 : i32 to index
    %c0_30 = arith.constant 0 : index
    %c0_31 = arith.constant 0 : index
    %43 = vector.load %arg11[%42, %c0_30, %c0_31] : memref<8x8x128xf32, #tpu.memory_space<vmem>>, vector<1x8x128xf32>
    %44 = vector.shape_cast %43 : vector<1x8x128xf32> to vector<8x128xf32>
    %45 = arith.truncf %37 : vector<8x128xf32> to vector<8x128xbf16>
    %cst_32 = arith.constant dense<0.000000e+00> : vector<8x128xf32>
    %46 = tpu.matmul %45, %1, %cst_32 {dimension_numbers = #tpu.dot_dimension_numbers<[1], [0], [0], [1], [0, 0, 1, 1], [], []>} : vector<8x128xbf16>, vector<128x128xbf16>, vector<8x128xf32> -> vector<8x128xf32>
    %47 = arith.addf %44, %46 : vector<8x128xf32>
    %cst_33 = arith.constant 0.000000e+00 : f32
    %48 = vector.broadcast %cst_33 : f32 to vector<8x128xf32>
    %49 = arith.maximumf %47, %48 : vector<8x128xf32>
    %50 = arith.index_cast %c3_i32 : i32 to index
    %c0_34 = arith.constant 0 : index
    %c0_35 = arith.constant 0 : index
    %51 = vector.load %arg11[%50, %c0_34, %c0_35] : memref<8x8x128xf32, #tpu.memory_space<vmem>>, vector<1x8x128xf32>
    %52 = vector.shape_cast %51 : vector<1x8x128xf32> to vector<8x128xf32>
    %53 = vector.shape_cast %49 : vector<8x128xf32> to vector<1x8x128xf32>
    tpu.vector_store %arg11[%50, %c0_34, %c0_35], %53 {strides = array<i32>} : memref<8x8x128xf32, #tpu.memory_space<vmem>>, vector<1x8x128xf32>,
    %c4_i32 = arith.constant 4 : i32
    %54 = arith.index_cast %c4_i32 : i32 to index
    %c0_36 = arith.constant 0 : index
    %c0_37 = arith.constant 0 : index
    %55 = vector.load %arg11[%54, %c0_36, %c0_37] : memref<8x8x128xf32, #tpu.memory_space<vmem>>, vector<1x8x128xf32>
    %56 = vector.shape_cast %55 : vector<1x8x128xf32> to vector<8x128xf32>
    %57 = arith.truncf %49 : vector<8x128xf32> to vector<8x128xbf16>
    %cst_38 = arith.constant dense<0.000000e+00> : vector<8x128xf32>
    %58 = tpu.matmul %57, %1, %cst_38 {dimension_numbers = #tpu.dot_dimension_numbers<[1], [0], [0], [1], [0, 0, 1, 1], [], []>} : vector<8x128xbf16>, vector<128x128xbf16>, vector<8x128xf32> -> vector<8x128xf32>
    %59 = arith.addf %56, %58 : vector<8x128xf32>
    %cst_39 = arith.constant 0.000000e+00 : f32
    %60 = vector.broadcast %cst_39 : f32 to vector<8x128xf32>
    %61 = arith.maximumf %59, %60 : vector<8x128xf32>
    %62 = arith.index_cast %c4_i32 : i32 to index
    %c0_40 = arith.constant 0 : index
    %c0_41 = arith.constant 0 : index
    %63 = vector.load %arg11[%62, %c0_40, %c0_41] : memref<8x8x128xf32, #tpu.memory_space<vmem>>, vector<1x8x128xf32>
    %64 = vector.shape_cast %63 : vector<1x8x128xf32> to vector<8x128xf32>
    %65 = vector.shape_cast %61 : vector<8x128xf32> to vector<1x8x128xf32>
    tpu.vector_store %arg11[%62, %c0_40, %c0_41], %65 {strides = array<i32>} : memref<8x8x128xf32, #tpu.memory_space<vmem>>, vector<1x8x128xf32>,
    %c5_i32 = arith.constant 5 : i32
    %66 = arith.index_cast %c5_i32 : i32 to index
    %c0_42 = arith.constant 0 : index
    %c0_43 = arith.constant 0 : index
    %67 = vector.load %arg11[%66, %c0_42, %c0_43] : memref<8x8x128xf32, #tpu.memory_space<vmem>>, vector<1x8x128xf32>
    %68 = vector.shape_cast %67 : vector<1x8x128xf32> to vector<8x128xf32>
    %69 = arith.truncf %61 : vector<8x128xf32> to vector<8x128xbf16>
    %cst_44 = arith.constant dense<0.000000e+00> : vector<8x128xf32>
    %70 = tpu.matmul %69, %1, %cst_44 {dimension_numbers = #tpu.dot_dimension_numbers<[1], [0], [0], [1], [0, 0, 1, 1], [], []>} : vector<8x128xbf16>, vector<128x128xbf16>, vector<8x128xf32> -> vector<8x128xf32>
    %71 = arith.addf %68, %70 : vector<8x128xf32>
    %cst_45 = arith.constant 0.000000e+00 : f32
    %72 = vector.broadcast %cst_45 : f32 to vector<8x128xf32>
    %73 = arith.maximumf %71, %72 : vector<8x128xf32>
    %74 = arith.index_cast %c5_i32 : i32 to index
    %c0_46 = arith.constant 0 : index
    %c0_47 = arith.constant 0 : index
    %75 = vector.load %arg11[%74, %c0_46, %c0_47] : memref<8x8x128xf32, #tpu.memory_space<vmem>>, vector<1x8x128xf32>
    %76 = vector.shape_cast %75 : vector<1x8x128xf32> to vector<8x128xf32>
    %77 = vector.shape_cast %73 : vector<8x128xf32> to vector<1x8x128xf32>
    tpu.vector_store %arg11[%74, %c0_46, %c0_47], %77 {strides = array<i32>} : memref<8x8x128xf32, #tpu.memory_space<vmem>>, vector<1x8x128xf32>,
    %c6_i32 = arith.constant 6 : i32
    %78 = arith.index_cast %c6_i32 : i32 to index
    %c0_48 = arith.constant 0 : index
    %c0_49 = arith.constant 0 : index
    %79 = vector.load %arg11[%78, %c0_48, %c0_49] : memref<8x8x128xf32, #tpu.memory_space<vmem>>, vector<1x8x128xf32>
    %80 = vector.shape_cast %79 : vector<1x8x128xf32> to vector<8x128xf32>
    %81 = arith.truncf %73 : vector<8x128xf32> to vector<8x128xbf16>
    %cst_50 = arith.constant dense<0.000000e+00> : vector<8x128xf32>
    %82 = tpu.matmul %81, %1, %cst_50 {dimension_numbers = #tpu.dot_dimension_numbers<[1], [0], [0], [1], [0, 0, 1, 1], [], []>} : vector<8x128xbf16>, vector<128x128xbf16>, vector<8x128xf32> -> vector<8x128xf32>
    %83 = arith.addf %80, %82 : vector<8x128xf32>
    %cst_51 = arith.constant 0.000000e+00 : f32
    %84 = vector.broadcast %cst_51 : f32 to vector<8x128xf32>
    %85 = arith.maximumf %83, %84 : vector<8x128xf32>
    %86 = arith.index_cast %c6_i32 : i32 to index
    %c0_52 = arith.constant 0 : index
    %c0_53 = arith.constant 0 : index
    %87 = vector.load %arg11[%86, %c0_52, %c0_53] : memref<8x8x128xf32, #tpu.memory_space<vmem>>, vector<1x8x128xf32>
    %88 = vector.shape_cast %87 : vector<1x8x128xf32> to vector<8x128xf32>
    %89 = vector.shape_cast %85 : vector<8x128xf32> to vector<1x8x128xf32>
    tpu.vector_store %arg11[%86, %c0_52, %c0_53], %89 {strides = array<i32>} : memref<8x8x128xf32, #tpu.memory_space<vmem>>, vector<1x8x128xf32>,
    %c7_i32 = arith.constant 7 : i32
    %90 = arith.index_cast %c7_i32 : i32 to index
    %c0_54 = arith.constant 0 : index
    %c0_55 = arith.constant 0 : index
    %91 = vector.load %arg11[%90, %c0_54, %c0_55] : memref<8x8x128xf32, #tpu.memory_space<vmem>>, vector<1x8x128xf32>
    %92 = vector.shape_cast %91 : vector<1x8x128xf32> to vector<8x128xf32>
    %93 = arith.truncf %85 : vector<8x128xf32> to vector<8x128xbf16>
    %cst_56 = arith.constant dense<0.000000e+00> : vector<8x128xf32>
    %94 = tpu.matmul %93, %1, %cst_56 {dimension_numbers = #tpu.dot_dimension_numbers<[1], [0], [0], [1], [0, 0, 1, 1], [], []>} : vector<8x128xbf16>, vector<128x128xbf16>, vector<8x128xf32> -> vector<8x128xf32>
    %95 = arith.addf %92, %94 : vector<8x128xf32>
    %cst_57 = arith.constant 0.000000e+00 : f32
    %96 = vector.broadcast %cst_57 : f32 to vector<8x128xf32>
    %97 = arith.maximumf %95, %96 : vector<8x128xf32>
    %98 = arith.index_cast %c7_i32 : i32 to index
    %c0_58 = arith.constant 0 : index
    %c0_59 = arith.constant 0 : index
    %99 = vector.load %arg11[%98, %c0_58, %c0_59] : memref<8x8x128xf32, #tpu.memory_space<vmem>>, vector<1x8x128xf32>
    %100 = vector.shape_cast %99 : vector<1x8x128xf32> to vector<8x128xf32>
    %101 = vector.shape_cast %97 : vector<8x128xf32> to vector<1x8x128xf32>
    tpu.vector_store %arg11[%98, %c0_58, %c0_59], %101 {strides = array<i32>} : memref<8x8x128xf32, #tpu.memory_space<vmem>>, vector<1x8x128xf32>,
    %c7_i32_60 = arith.constant 7 : i32
    %c0_61 = arith.constant 0 : index
    %c0_62 = arith.constant 0 : index
    %102 = vector.load %arg5[%c0_61, %c0_62] : memref<128x128xbf16, #tpu.memory_space<vmem>>, vector<128x128xbf16>
    %c0_63 = arith.constant 0 : index
    %c0_64 = arith.constant 0 : index
    %103 = vector.load %arg6[%c0_63, %c0_64] : memref<128x128xbf16, #tpu.memory_space<vmem>>, vector<128x128xbf16>
    %c0_65 = arith.constant 0 : index
    %c0_66 = arith.constant 0 : index
    %104 = vector.load %arg7[%c0_65, %c0_66] : memref<1x128xf32, #tpu.memory_space<vmem>>, vector<1x128xf32>
    %c0_67 = arith.constant 0 : index
    %c0_68 = arith.constant 0 : index
    %c0_69 = arith.constant 0 : index
    %105 = vector.load %arg11[%c0_67, %c0_68, %c0_69] : memref<8x8x128xf32, #tpu.memory_space<vmem>>, vector<8x8x128xf32>
    %106 = vector.shape_cast %105 : vector<8x8x128xf32> to vector<64x128xf32>
    %107 = arith.truncf %106 : vector<64x128xf32> to vector<64x128xbf16>
    %cst_70 = arith.constant dense<0.000000e+00> : vector<64x128xf32>
    %108 = tpu.matmul %107, %102, %cst_70 {dimension_numbers = #tpu.dot_dimension_numbers<[1], [0], [0], [1], [0, 0, 1, 1], [], []>} : vector<64x128xbf16>, vector<128x128xbf16>, vector<64x128xf32> -> vector<64x128xf32>
    %109 = vector.broadcast %104 : vector<1x128xf32> to vector<64x128xf32>
    %110 = arith.addf %108, %109 : vector<64x128xf32>
    %111 = vector.shape_cast %110 : vector<64x128xf32> to vector<8x8x128xf32>
    %c0_71 = arith.constant 0 : index
    %c0_72 = arith.constant 0 : index
    %c0_73 = arith.constant 0 : index
    %112 = vector.load %arg11[%c0_71, %c0_72, %c0_73] : memref<8x8x128xf32, #tpu.memory_space<vmem>>, vector<8x8x128xf32>
    tpu.vector_store %arg11[%c0_71, %c0_72, %c0_73], %111 {strides = array<i32>} : memref<8x8x128xf32, #tpu.memory_space<vmem>>, vector<8x8x128xf32>,
    %c0_74 = arith.constant 0 : index
    %c0_75 = arith.constant 0 : index
    %c0_76 = arith.constant 0 : index
    %113 = vector.load %arg11[%c0_74, %c0_75, %c0_76] : memref<8x8x128xf32, #tpu.memory_space<vmem>>, vector<1x8x128xf32>
    %114 = vector.shape_cast %113 : vector<1x8x128xf32> to vector<8x128xf32>
    %cst_77 = arith.constant 0.000000e+00 : f32
    %115 = vector.broadcast %cst_77 : f32 to vector<8x128xf32>
    %116 = arith.maximumf %114, %115 : vector<8x128xf32>
    %c1_i32_78 = arith.constant 1 : i32
    %117 = arith.index_cast %c1_i32_78 : i32 to index
    %c0_79 = arith.constant 0 : index
    %c0_80 = arith.constant 0 : index
    %118 = vector.load %arg11[%117, %c0_79, %c0_80] : memref<8x8x128xf32, #tpu.memory_space<vmem>>, vector<1x8x128xf32>
    %119 = vector.shape_cast %118 : vector<1x8x128xf32> to vector<8x128xf32>
    %120 = arith.truncf %116 : vector<8x128xf32> to vector<8x128xbf16>
    %cst_81 = arith.constant dense<0.000000e+00> : vector<8x128xf32>
    %121 = tpu.matmul %120, %103, %cst_81 {dimension_numbers = #tpu.dot_dimension_numbers<[1], [0], [0], [1], [0, 0, 1, 1], [], []>} : vector<8x128xbf16>, vector<128x128xbf16>, vector<8x128xf32> -> vector<8x128xf32>
    %122 = arith.addf %119, %121 : vector<8x128xf32>
    %cst_82 = arith.constant 0.000000e+00 : f32
    %123 = vector.broadcast %cst_82 : f32 to vector<8x128xf32>
    %124 = arith.maximumf %122, %123 : vector<8x128xf32>
    %c2_i32_83 = arith.constant 2 : i32
    %125 = arith.index_cast %c2_i32_83 : i32 to index
    %c0_84 = arith.constant 0 : index
    %c0_85 = arith.constant 0 : index
    %126 = vector.load %arg11[%125, %c0_84, %c0_85] : memref<8x8x128xf32, #tpu.memory_space<vmem>>, vector<1x8x128xf32>
    %127 = vector.shape_cast %126 : vector<1x8x128xf32> to vector<8x128xf32>
    %128 = arith.truncf %124 : vector<8x128xf32> to vector<8x128xbf16>
    %cst_86 = arith.constant dense<0.000000e+00> : vector<8x128xf32>
    %129 = tpu.matmul %128, %103, %cst_86 {dimension_numbers = #tpu.dot_dimension_numbers<[1], [0], [0], [1], [0, 0, 1, 1], [], []>} : vector<8x128xbf16>, vector<128x128xbf16>, vector<8x128xf32> -> vector<8x128xf32>
    %130 = arith.addf %127, %129 : vector<8x128xf32>
    %cst_87 = arith.constant 0.000000e+00 : f32
    %131 = vector.broadcast %cst_87 : f32 to vector<8x128xf32>
    %132 = arith.maximumf %130, %131 : vector<8x128xf32>
    %c3_i32_88 = arith.constant 3 : i32
    %133 = arith.index_cast %c3_i32_88 : i32 to index
    %c0_89 = arith.constant 0 : index
    %c0_90 = arith.constant 0 : index
    %134 = vector.load %arg11[%133, %c0_89, %c0_90] : memref<8x8x128xf32, #tpu.memory_space<vmem>>, vector<1x8x128xf32>
    %135 = vector.shape_cast %134 : vector<1x8x128xf32> to vector<8x128xf32>
    %136 = arith.truncf %132 : vector<8x128xf32> to vector<8x128xbf16>
    %cst_91 = arith.constant dense<0.000000e+00> : vector<8x128xf32>
    %137 = tpu.matmul %136, %103, %cst_91 {dimension_numbers = #tpu.dot_dimension_numbers<[1], [0], [0], [1], [0, 0, 1, 1], [], []>} : vector<8x128xbf16>, vector<128x128xbf16>, vector<8x128xf32> -> vector<8x128xf32>
    %138 = arith.addf %135, %137 : vector<8x128xf32>
    %cst_92 = arith.constant 0.000000e+00 : f32
    %139 = vector.broadcast %cst_92 : f32 to vector<8x128xf32>
    %140 = arith.maximumf %138, %139 : vector<8x128xf32>
    %c4_i32_93 = arith.constant 4 : i32
    %141 = arith.index_cast %c4_i32_93 : i32 to index
    %c0_94 = arith.constant 0 : index
    %c0_95 = arith.constant 0 : index
    %142 = vector.load %arg11[%141, %c0_94, %c0_95] : memref<8x8x128xf32, #tpu.memory_space<vmem>>, vector<1x8x128xf32>
    %143 = vector.shape_cast %142 : vector<1x8x128xf32> to vector<8x128xf32>
    %144 = arith.truncf %140 : vector<8x128xf32> to vector<8x128xbf16>
    %cst_96 = arith.constant dense<0.000000e+00> : vector<8x128xf32>
    %145 = tpu.matmul %144, %103, %cst_96 {dimension_numbers = #tpu.dot_dimension_numbers<[1], [0], [0], [1], [0, 0, 1, 1], [], []>} : vector<8x128xbf16>, vector<128x128xbf16>, vector<8x128xf32> -> vector<8x128xf32>
    %146 = arith.addf %143, %145 : vector<8x128xf32>
    %cst_97 = arith.constant 0.000000e+00 : f32
    %147 = vector.broadcast %cst_97 : f32 to vector<8x128xf32>
    %148 = arith.maximumf %146, %147 : vector<8x128xf32>
    %c5_i32_98 = arith.constant 5 : i32
    %149 = arith.index_cast %c5_i32_98 : i32 to index
    %c0_99 = arith.constant 0 : index
    %c0_100 = arith.constant 0 : index
    %150 = vector.load %arg11[%149, %c0_99, %c0_100] : memref<8x8x128xf32, #tpu.memory_space<vmem>>, vector<1x8x128xf32>
    %151 = vector.shape_cast %150 : vector<1x8x128xf32> to vector<8x128xf32>
    %152 = arith.truncf %148 : vector<8x128xf32> to vector<8x128xbf16>
    %cst_101 = arith.constant dense<0.000000e+00> : vector<8x128xf32>
    %153 = tpu.matmul %152, %103, %cst_101 {dimension_numbers = #tpu.dot_dimension_numbers<[1], [0], [0], [1], [0, 0, 1, 1], [], []>} : vector<8x128xbf16>, vector<128x128xbf16>, vector<8x128xf32> -> vector<8x128xf32>
    %154 = arith.addf %151, %153 : vector<8x128xf32>
    %cst_102 = arith.constant 0.000000e+00 : f32
    %155 = vector.broadcast %cst_102 : f32 to vector<8x128xf32>
    %156 = arith.maximumf %154, %155 : vector<8x128xf32>
    %c6_i32_103 = arith.constant 6 : i32
    %157 = arith.index_cast %c6_i32_103 : i32 to index
    %c0_104 = arith.constant 0 : index
    %c0_105 = arith.constant 0 : index
    %158 = vector.load %arg11[%157, %c0_104, %c0_105] : memref<8x8x128xf32, #tpu.memory_space<vmem>>, vector<1x8x128xf32>
    %159 = vector.shape_cast %158 : vector<1x8x128xf32> to vector<8x128xf32>
    %160 = arith.truncf %156 : vector<8x128xf32> to vector<8x128xbf16>
    %cst_106 = arith.constant dense<0.000000e+00> : vector<8x128xf32>
    %161 = tpu.matmul %160, %103, %cst_106 {dimension_numbers = #tpu.dot_dimension_numbers<[1], [0], [0], [1], [0, 0, 1, 1], [], []>} : vector<8x128xbf16>, vector<128x128xbf16>, vector<8x128xf32> -> vector<8x128xf32>
    %162 = arith.addf %159, %161 : vector<8x128xf32>
    %cst_107 = arith.constant 0.000000e+00 : f32
    %163 = vector.broadcast %cst_107 : f32 to vector<8x128xf32>
    %164 = arith.maximumf %162, %163 : vector<8x128xf32>
    %c7_i32_108 = arith.constant 7 : i32
    %165 = arith.index_cast %c7_i32_108 : i32 to index
    %c0_109 = arith.constant 0 : index
    %c0_110 = arith.constant 0 : index
    %166 = vector.load %arg11[%165, %c0_109, %c0_110] : memref<8x8x128xf32, #tpu.memory_space<vmem>>, vector<1x8x128xf32>
    %167 = vector.shape_cast %166 : vector<1x8x128xf32> to vector<8x128xf32>
    %168 = arith.truncf %164 : vector<8x128xf32> to vector<8x128xbf16>
    %cst_111 = arith.constant dense<0.000000e+00> : vector<8x128xf32>
    %169 = tpu.matmul %168, %103, %cst_111 {dimension_numbers = #tpu.dot_dimension_numbers<[1], [0], [0], [1], [0, 0, 1, 1], [], []>} : vector<8x128xbf16>, vector<128x128xbf16>, vector<8x128xf32> -> vector<8x128xf32>
    %170 = arith.addf %167, %169 : vector<8x128xf32>
    %cst_112 = arith.constant 0.000000e+00 : f32
    %171 = vector.broadcast %cst_112 : f32 to vector<8x128xf32>
    %172 = arith.maximumf %170, %171 : vector<8x128xf32>
    %c7_i32_113 = arith.constant 7 : i32
    %173 = arith.truncf %172 : vector<8x128xf32> to vector<8x128xbf16>
    %c0_114 = arith.constant 0 : index
    %c0_115 = arith.constant 0 : index
    %174 = vector.load %arg8[%c0_114, %c0_115] : memref<128x128xbf16, #tpu.memory_space<vmem>>, vector<128x128xbf16>
    %cst_116 = arith.constant dense<0.000000e+00> : vector<8x128xf32>
    %175 = tpu.matmul %173, %174, %cst_116 {dimension_numbers = #tpu.dot_dimension_numbers<[1], [0], [0], [1], [0, 0, 1, 1], [], []>} : vector<8x128xbf16>, vector<128x128xbf16>, vector<8x128xf32> -> vector<8x128xf32>
    %c0_117 = arith.constant 0 : index
    %c0_118 = arith.constant 0 : index
    %176 = vector.load %arg9[%c0_117, %c0_118] : memref<1x128xf32, #tpu.memory_space<vmem>>, vector<1x128xf32>
    %177 = vector.broadcast %176 : vector<1x128xf32> to vector<8x128xf32>
    %178 = arith.addf %175, %177 : vector<8x128xf32>
    %c0_119 = arith.constant 0 : index
    %c0_120 = arith.constant 0 : index
    %179 = vector.load %arg10[%c0_119, %c0_120] : memref<8x128xf32, #tpu.memory_space<vmem>>, vector<8x128xf32>
    tpu.vector_store %arg10[%c0_119, %c0_120], %178 {strides = array<i32>} : memref<8x128xf32, #tpu.memory_space<vmem>>, vector<8x128xf32>,
    return
  }
  func.func @transform_0(%arg0: i32) -> (i32, i32, i32) {
    %c0_i32 = arith.constant 0 : i32
    %c0_i32_0 = arith.constant 0 : i32
    %c0_i32_1 = arith.constant 0 : i32
    return %c0_i32, %arg0, %c0_i32_0 : i32, i32, i32
  }
  func.func @transform_1(%arg0: i32) -> (i32, i32) {
    %c0_i32 = arith.constant 0 : i32
    %c0_i32_0 = arith.constant 0 : i32
    %c0_i32_1 = arith.constant 0 : i32
    return %c0_i32, %c0_i32_0 : i32, i32
  }
  func.func @transform_2(%arg0: i32) -> (i32, i32) {
    %c0_i32 = arith.constant 0 : i32
    %c0_i32_0 = arith.constant 0 : i32
    %c0_i32_1 = arith.constant 0 : i32
    return %c0_i32, %c0_i32_0 : i32, i32
  }
  func.func @transform_3(%arg0: i32) -> (i32, i32) {
    %c0_i32 = arith.constant 0 : i32
    %c0_i32_0 = arith.constant 0 : i32
    %c0_i32_1 = arith.constant 0 : i32
    return %c0_i32, %c0_i32_0 : i32, i32
  }
  func.func @transform_4(%arg0: i32) -> (i32, i32) {
    %c0_i32 = arith.constant 0 : i32
    %c0_i32_0 = arith.constant 0 : i32
    %c0_i32_1 = arith.constant 0 : i32
    return %c0_i32, %c0_i32_0 : i32, i32
  }
  func.func @transform_5(%arg0: i32) -> (i32, i32) {
    %c0_i32 = arith.constant 0 : i32
    %c0_i32_0 = arith.constant 0 : i32
    %c0_i32_1 = arith.constant 0 : i32
    return %c0_i32, %c0_i32_0 : i32, i32
  }
  func.func @transform_6(%arg0: i32) -> (i32, i32) {
    %c0_i32 = arith.constant 0 : i32
    %c0_i32_0 = arith.constant 0 : i32
    %c0_i32_1 = arith.constant 0 : i32
    return %c0_i32, %c0_i32_0 : i32, i32
  }
  func.func @transform_7(%arg0: i32) -> (i32, i32) {
    %c0_i32 = arith.constant 0 : i32
    %c0_i32_0 = arith.constant 0 : i32
    %c0_i32_1 = arith.constant 0 : i32
    return %c0_i32, %c0_i32_0 : i32, i32
  }
  func.func @transform_8(%arg0: i32) -> (i32, i32) {
    %c0_i32 = arith.constant 0 : i32
    %c0_i32_0 = arith.constant 0 : i32
    %c0_i32_1 = arith.constant 0 : i32
    return %c0_i32, %c0_i32_0 : i32, i32
  }
  func.func @transform_9(%arg0: i32) -> (i32, i32) {
    %c0_i32 = arith.constant 0 : i32
    %c0_i32_0 = arith.constant 0 : i32
    return %arg0, %c0_i32 : i32, i32
  }
}

</mosaic_0001>

<llo_original>
// kernel: tpu_custom_call.1
$region0: #{tpu_custom_call.1}
  #allocation0 [shape = 'u32[]', space=smem, size = 0x4, offset = 0x4, fixed_abs, tag = 'smem constant byte address 0x4 - core index']
  #allocation1 [shape = 'u32[144,128]{1,0:T(1,128)}', space=vmem, size = 0x12000, scoped, tag = 'internal scratch']
  #allocation2 [shape = 'f32[8,8,128]{2,1,0:T(8,128)}', space=vmem, size = 0x8000, scoped, tag = 'scratch operand']
  %s0 = inlined_call_operand.hbm [shape: f32[8,8,128], index: 0, kind: input, shape index: {}]
  %s1 = inlined_call_operand.hbm [shape: bf16[128,128], index: 1, kind: input, shape index: {}]
  %s2 = inlined_call_operand.hbm [shape: bf16[128,128], index: 2, kind: input, shape index: {}]
  %s3 = inlined_call_operand.vmem [shape: f32[1,128], index: 3, kind: input, shape index: {}]
  %s4 = inlined_call_operand.hbm [shape: bf16[128,128], index: 4, kind: input, shape index: {}]
  %s5 = inlined_call_operand.hbm [shape: bf16[128,128], index: 5, kind: input, shape index: {}]
  %s6 = inlined_call_operand.vmem [shape: f32[1,128], index: 6, kind: input, shape index: {}]
  %s7 = inlined_call_operand.hbm [shape: bf16[128,128], index: 7, kind: input, shape index: {}]
  %s8 = inlined_call_operand.vmem [shape: f32[1,128], index: 8, kind: input, shape index: {}]
  %s9 = inlined_call_operand.hbm [shape: f32[8,128], index: 9, kind: output, shape index: {}]
  %s10 = sld [smem:[#allocation0]]
  $region70: #{tpu_custom_call.1} parent=0
    _
  %s12 = ssub.s32 1, %s10
  %s13 = scalar_select 0, %s12, %s10
  $region1: #{tpu_custom_call.1} parent=0
    #allocation3 [shape = 'u8[32768]{0}', space=vmem, size = 0x8000, scoped, tag = 'input window, operand 0, single buffered']
    #allocation4 [shape = 's32[1]{0}', space=sflag, size = 0x4, scoped, tag = 'scoped memory for tpu_custom_call.1']
    #allocation5 [shape = 's32[1]{0}', space=sflag, size = 0x4, scoped, tag = 'scoped memory for tpu_custom_call.1']
    #allocation6 [shape = 'u8[32768]{0}', space=vmem, size = 0x8000, scoped, tag = 'input window, operand 1, single buffered']
    #allocation7 [shape = 's32[1]{0}', space=sflag, size = 0x4, scoped, tag = 'scoped memory for tpu_custom_call.1']
    #allocation8 [shape = 'u8[32768]{0}', space=vmem, size = 0x8000, scoped, tag = 'input window, operand 2, single buffered']
    #allocation9 [shape = 'u8[32768]{0}', space=vmem, size = 0x8000, scoped, tag = 'input window, operand 4, single buffered']
    #allocation10 [shape = 's32[1]{0}', space=sflag, size = 0x4, scoped, tag = 'scoped memory for tpu_custom_call.1']
    #allocation11 [shape = 'u8[32768]{0}', space=vmem, size = 0x8000, scoped, tag = 'input window, operand 5, single buffered']
    #allocation12 [shape = 'u8[32768]{0}', space=vmem, size = 0x8000, scoped, tag = 'input window, operand 7, single buffered']
    #allocation13 [shape = 's32[1]{0}', space=sflag, size = 0x4, scoped, tag = 'scoped memory for tpu_custom_call.1']
    #allocation14 [shape = 'u8[4096]{0}', space=vmem, size = 0x1000, scoped, tag = 'output window, operand 0, single buffered']
    %14 = vsyncpa [#allocation4], 0
    %15 = vsyncpa [#allocation7], 0
    %16 = vsyncpa [#allocation10], 0
    %17 = vsyncpa [#allocation13], 0
    %18 = vsyncpa [#allocation5], 0
    // Predicated region
    $region2: #{tpu_custom_call.1} parent=1 // pred_check
      _
    $region3: #{tpu_custom_call.1} parent=1 // pred_check_branch
      %20 = sbr.rel (0) target = $region5
    $region4: #{tpu_custom_call.1} parent=1 // pred_region
      %s22 = ssub.s32 1024, 1024
      %23 = vsyncadd [#allocation4], %s22
      %s24 = sshll.u32 [#allocation3], 4
      %s25 = int_to_ptr.vmem [resolvable:$true] %s24
      %30 = dma.hbm_to_vmem [thread:$0]  %s0, 1024, %s25, [#allocation4], 128, 128, 8
    $region5: #{tpu_custom_call.1} parent=1 // pred_fallthru
      _
    // Predicated region
    $region6: #{tpu_custom_call.1} parent=1 // pred_check
      _
    $region7: #{tpu_custom_call.1} parent=1 // pred_check_branch
      %32 = sbr.rel (0) target = $region9
    $region8: #{tpu_custom_call.1} parent=1 // pred_region
      %s34 = ssub.s32 1024, 1024
      %35 = vsyncadd [#allocation7], %s34
      %s36 = sshll.u32 [#allocation6], 4
      %s37 = int_to_ptr.vmem [resolvable:$true] %s36
      %42 = dma.hbm_to_vmem [thread:$0]  %s1, 1024, %s37, [#allocation7], 64, 64, 4
    $region9: #{tpu_custom_call.1} parent=1 // pred_fallthru
      _
    // Predicated region
    $region10: #{tpu_custom_call.1} parent=1 // pred_check
      _
    $region11: #{tpu_custom_call.1} parent=1 // pred_check_branch
      %44 = sbr.rel (0) target = $region13
    $region12: #{tpu_custom_call.1} parent=1 // pred_region
      %s46 = ssub.s32 1024, 1024
      %47 = vsyncadd [#allocation7], %s46
      %s48 = sshll.u32 [#allocation8], 4
      %s49 = int_to_ptr.vmem [resolvable:$true] %s48
      %54 = dma.hbm_to_vmem [thread:$0]  %s2, 1024, %s49, [#allocation7], 64, 64, 4
    $region13: #{tpu_custom_call.1} parent=1 // pred_fallthru
      _
    // Predicated region
    $region14: #{tpu_custom_call.1} parent=1 // pred_check
      _
    $region15: #{tpu_custom_call.1} parent=1 // pred_check_branch
      %56 = sbr.rel (0) target = $region17
    $region16: #{tpu_custom_call.1} parent=1 // pred_region
      _
    $region17: #{tpu_custom_call.1} parent=1 // pred_fallthru
      _
    // Predicated region
    $region18: #{tpu_custom_call.1} parent=1 // pred_check
      _
    $region19: #{tpu_custom_call.1} parent=1 // pred_check_branch
      %58 = sbr.rel (0) target = $region21
    $region20: #{tpu_custom_call.1} parent=1 // pred_region
      %s60 = ssub.s32 1024, 1024
      %61 = vsyncadd [#allocation10], %s60
      %s62 = sshll.u32 [#allocation9], 4
      %s63 = int_to_ptr.vmem [resolvable:$true] %s62
      %68 = dma.hbm_to_vmem [thread:$0]  %s4, 1024, %s63, [#allocation10], 64, 64, 4
    $region21: #{tpu_custom_call.1} parent=1 // pred_fallthru
      _
    // Predicated region
    $region22: #{tpu_custom_call.1} parent=1 // pred_check
      _
    $region23: #{tpu_custom_call.1} parent=1 // pred_check_branch
      %70 = sbr.rel (0) target = $region25
    $region24: #{tpu_custom_call.1} parent=1 // pred_region
      %s72 = ssub.s32 1024, 1024
      %73 = vsyncadd [#allocation10], %s72
      %s74 = sshll.u32 [#allocation11], 4
      %s75 = int_to_ptr.vmem [resolvable:$true] %s74
      %80 = dma.hbm_to_vmem [thread:$0]  %s5, 1024, %s75, [#allocation10], 64, 64, 4
    $region25: #{tpu_custom_call.1} parent=1 // pred_fallthru
      _
    // Predicated region
    $region26: #{tpu_custom_call.1} parent=1 // pred_check
      _
    $region27: #{tpu_custom_call.1} parent=1 // pred_check_branch
      %82 = sbr.rel (0) target = $region29
    $region28: #{tpu_custom_call.1} parent=1 // pred_region
      _
    $region29: #{tpu_custom_call.1} parent=1 // pred_fallthru
      _
    // Predicated region
    $region30: #{tpu_custom_call.1} parent=1 // pred_check
      _
    $region31: #{tpu_custom_call.1} parent=1 // pred_check_branch
      %84 = sbr.rel (0) target = $region33
    $region32: #{tpu_custom_call.1} parent=1 // pred_region
      %s86 = ssub.s32 1024, 1024
      %87 = vsyncadd [#allocation13], %s86
      %s88 = sshll.u32 [#allocation12], 4
      %s89 = int_to_ptr.vmem [resolvable:$true] %s88
      %94 = dma.hbm_to_vmem [thread:$0]  %s7, 1024, %s89, [#allocation13], 64, 64, 4
    $region33: #{tpu_custom_call.1} parent=1 // pred_fallthru
      _
    // Predicated region
    $region34: #{tpu_custom_call.1} parent=1 // pred_check
      _
    $region35: #{tpu_custom_call.1} parent=1 // pred_check_branch
      %96 = sbr.rel (0) target = $region37
    $region36: #{tpu_custom_call.1} parent=1 // pred_region
      _
    $region37: #{tpu_custom_call.1} parent=1 // pred_fallthru
      _
    // Predicated region
    $region38: #{tpu_custom_call.1} parent=1 // pred_check
      _
    $region39: #{tpu_custom_call.1} parent=1 // pred_check_branch
      %98 = sbr.rel (0) target = $region41
    $region40: #{tpu_custom_call.1} parent=1 // pred_region
      %99 = dma.done [#allocation4], 1024
    $region41: #{tpu_custom_call.1} parent=1 // pred_fallthru
      _
    // Predicated region
    $region42: #{tpu_custom_call.1} parent=1 // pred_check
      _
    $region43: #{tpu_custom_call.1} parent=1 // pred_check_branch
      %101 = sbr.rel (0) target = $region45
    $region44: #{tpu_custom_call.1} parent=1 // pred_region
      %102 = dma.done [#allocation7], 1024
    $region45: #{tpu_custom_call.1} parent=1 // pred_fallthru
      _
    // Predicated region
    $region46: #{tpu_custom_call.1} parent=1 // pred_check
      _
    $region47: #{tpu_custom_call.1} parent=1 // pred_check_branch
      %104 = sbr.rel (0) target = $region49
    $region48: #{tpu_custom_call.1} parent=1 // pred_region
      %105 = dma.done [#allocation7], 1024
    $region49: #{tpu_custom_call.1} parent=1 // pred_fallthru
      _
    // Predicated region
    $region50: #{tpu_custom_call.1} parent=1 // pred_check
      _
    $region51: #{tpu_custom_call.1} parent=1 // pred_check_branch
      %107 = sbr.rel (0) target = $region53
    $region52: #{tpu_custom_call.1} parent=1 // pred_region
      %108 = dma.done [#allocation10], 1024
    $region53: #{tpu_custom_call.1} parent=1 // pred_fallthru
      _
    // Predicated region
    $region54: #{tpu_custom_call.1} parent=1 // pred_check
      _
    $region55: #{tpu_custom_call.1} parent=1 // pred_check_branch
      %110 = sbr.rel (0) target = $region57
    $region56: #{tpu_custom_call.1} parent=1 // pred_region
      %111 = dma.done [#allocation10], 1024
    $region57: #{tpu_custom_call.1} parent=1 // pred_fallthru
      _
    // Predicated region
    $region58: #{tpu_custom_call.1} parent=1 // pred_check
      _
    $region59: #{tpu_custom_call.1} parent=1 // pred_check_branch
      %113 = sbr.rel (0) target = $region61
    $region60: #{tpu_custom_call.1} parent=1 // pred_region
      %114 = dma.done [#allocation13], 1024
    $region61: #{tpu_custom_call.1} parent=1 // pred_fallthru
      _
    %v116 = vld [vmem:[#allocation6] sm:$0xf]
    %v117 = vld [vmem:[#allocation6 + $0x4] sm:$0xf]
    %v118 = vld [vmem:[#allocation6 + $0x8] sm:$0xf]
    %v119 = vld [vmem:[#allocation6 + $0xc] sm:$0xf]
    %v120 = vld [vmem:[#allocation6 + $0x10] sm:$0xf]
    %v121 = vld [vmem:[#allocation6 + $0x14] sm:$0xf]
    %v122 = vld [vmem:[#allocation6 + $0x18] sm:$0xf]
    %v123 = vld [vmem:[#allocation6 + $0x1c] sm:$0xf]
    %v124 = vld [vmem:[#allocation6 + $0x20] sm:$0xf]
    %v125 = vld [vmem:[#allocation6 + $0x24] sm:$0xf]
    %v126 = vld [vmem:[#allocation6 + $0x28] sm:$0xf]
    %v127 = vld [vmem:[#allocation6 + $0x2c] sm:$0xf]
    %v128 = vld [vmem:[#allocation6 + $0x30] sm:$0xf]
    %v129 = vld [vmem:[#allocation6 + $0x34] sm:$0xf]
    %v130 = vld [vmem:[#allocation6 + $0x38] sm:$0xf]
    %v131 = vld [vmem:[#allocation6 + $0x3c] sm:$0xf]
    %v132 = vld [vmem:[#allocation8] sm:$0xf]
    %v133 = vld [vmem:[#allocation8 + $0x4] sm:$0xf]
    %v134 = vld [vmem:[#allocation8 + $0x8] sm:$0xf]
    %v135 = vld [vmem:[#allocation8 + $0xc] sm:$0xf]
    %v136 = vld [vmem:[#allocation8 + $0x10] sm:$0xf]
    %v137 = vld [vmem:[#allocation8 + $0x14] sm:$0xf]
    %v138 = vld [vmem:[#allocation8 + $0x18] sm:$0xf]
    %v139 = vld [vmem:[#allocation8 + $0x1c] sm:$0xf]
    %v140 = vld [vmem:[#allocation8 + $0x20] sm:$0xf]
    %v141 = vld [vmem:[#allocation8 + $0x24] sm:$0xf]
    %v142 = vld [vmem:[#allocation8 + $0x28] sm:$0xf]
    %v143 = vld [vmem:[#allocation8 + $0x2c] sm:$0xf]
    %v144 = vld [vmem:[#allocation8 + $0x30] sm:$0xf]
    %v145 = vld [vmem:[#allocation8 + $0x34] sm:$0xf]
    %v146 = vld [vmem:[#allocation8 + $0x38] sm:$0xf]
    %v147 = vld [vmem:[#allocation8 + $0x3c] sm:$0xf]
    %v148 = vld [vmem:[%s3] sm:$0x1]
    %v149 = vld [vmem:[#allocation3] sm:$0xff]
    %v150 = vld [vmem:[#allocation3 + $0x8] sm:$0xff]
    %v151 = vld [vmem:[#allocation3 + $0x10] sm:$0xff]
    %v152 = vld [vmem:[#allocation3 + $0x18] sm:$0xff]
    %v153 = vld [vmem:[#allocation3 + $0x20] sm:$0xff]
    %v154 = vld [vmem:[#allocation3 + $0x28] sm:$0xff]
    %v155 = vld [vmem:[#allocation3 + $0x30] sm:$0xff]
    %v156 = vld [vmem:[#allocation3 + $0x38] sm:$0xff]
    %v157 = vpack.c.bf16 %v150, %v149
    %v158 = vpack.c.bf16 %v152, %v151
    %v159 = vpack.c.bf16 %v154, %v153
    %v160 = vpack.c.bf16 %v156, %v155
    %v162 = vlaneseq
    %v163 = vshrl.u32 %v162, 7
    %v164 = vsub.s32 0, %v163
    %v165 = vrot.slane %v148, %v164
    %v183 = vunpack.c.l.b16 %v116
    %v184 = vunpack.c.l.b16 %v117
    %v185 = vunpack.c.l.b16 %v118
    %v186 = vunpack.c.l.b16 %v119
    %v187 = vunpack.c.l.b16 %v120
    %v188 = vunpack.c.l.b16 %v121
    %v189 = vunpack.c.l.b16 %v122
    %v190 = vunpack.c.l.b16 %v123
    %v191 = vunpack.c.l.b16 %v124
    %v192 = vunpack.c.l.b16 %v125
    %v193 = vunpack.c.l.b16 %v126
    %v194 = vunpack.c.l.b16 %v127
    %v195 = vunpack.c.l.b16 %v128
    %v196 = vunpack.c.l.b16 %v129
    %v197 = vunpack.c.l.b16 %v130
    %v198 = vunpack.c.l.b16 %v131
    %v199 = vpack.c.b16 %v184, %v183
    %v200 = vpack.c.b16 %v186, %v185
    %v201 = vpack.c.b16 %v188, %v187
    %v202 = vpack.c.b16 %v190, %v189
    %v203 = vpack.c.b16 %v192, %v191
    %v204 = vpack.c.b16 %v194, %v193
    %v205 = vpack.c.b16 %v196, %v195
    %v206 = vpack.c.b16 %v198, %v197
    %215 = vmatprep.subr.bf16.mxu0 0
    %216 = vmatpush1.bf16.msra.mxu0 %v199
    %217 = vmatprep.subr.bf16.mxu0 0
    %218 = vmatpush1.bf16.msra.mxu0 %v200
    %219 = vmatprep.subr.bf16.mxu0 0
    %220 = vmatpush1.bf16.msra.mxu0 %v201
    %221 = vmatprep.subr.bf16.mxu0 0
    %222 = vmatpush1.bf16.msra.mxu0 %v202
    %223 = vmatprep.subr.bf16.mxu0 0
    %224 = vmatpush1.bf16.msra.mxu0 %v203
    %225 = vmatprep.subr.bf16.mxu0 0
    %226 = vmatpush1.bf16.msra.mxu0 %v204
    %227 = vmatprep.subr.bf16.mxu0 0
    %228 = vmatpush1.bf16.msra.mxu0 %v205
    %229 = vmatprep.subr.bf16.mxu0 0
    %230 = vmatpush1.bf16.msra.mxu0 %v206
    %231 = vmatprep.subr.bf16.mxu0 0
    %232 = vmatpush1.bf16.msra.mxu0 0
    %233 = vmatprep.subr.bf16.mxu0 0
    %234 = vmatpush1.bf16.msra.mxu0 0
    %235 = vmatprep.subr.bf16.mxu0 0
    %236 = vmatpush1.bf16.msra.mxu0 0
    %237 = vmatprep.subr.bf16.mxu0 0
    %238 = vmatpush1.bf16.msra.mxu0 0
    %239 = vmatprep.subr.bf16.mxu0 0
    %240 = vmatpush1.bf16.msra.mxu0 0
    %241 = vmatprep.subr.bf16.mxu0 0
    %242 = vmatpush1.bf16.msra.mxu0 0
    %243 = vmatprep.subr.bf16.mxu0 0
    %244 = vmatpush1.bf16.msra.mxu0 0
    %245 = vmatprep.subr.bf16.mxu0 0
    %246 = vmatpush1.bf16.msra.mxu0 0
    %247 = vmatprep.mubr.bf16.mxu0 0
    %248 = vmatmul.mubr.bf16.gmra.mrb[0].mxu0 %v157
    %v249 = vpop.f32.mrb[0].mxu0
    %v250 = vadd.f32 %v165, %v249
    %v251 = vpop.f32.mrb[0].mxu0
    %v252 = vpop.f32.mrb[0].mxu0
    %v253 = vadd.f32 %v165, %v252
    %v254 = vpop.f32.mrb[0].mxu0
    %255 = vmatprep.mubr.bf16.mxu0 0
    %256 = vmatmul.mubr.bf16.gmra.mrb[0].mxu0 %v158
    %v257 = vpop.f32.mrb[0].mxu0
    %v258 = vadd.f32 %v165, %v257
    %v259 = vpop.f32.mrb[0].mxu0
    %v260 = vpop.f32.mrb[0].mxu0
    %v261 = vadd.f32 %v165, %v260
    %v262 = vpop.f32.mrb[0].mxu0
    %263 = vmatprep.mubr.bf16.mxu0 0
    %264 = vmatmul.mubr.bf16.gmra.mrb[0].mxu0 %v159
    %v265 = vpop.f32.mrb[0].mxu0
    %v266 = vadd.f32 %v165, %v265
    %v267 = vpop.f32.mrb[0].mxu0
    %v268 = vpop.f32.mrb[0].mxu0
    %v269 = vadd.f32 %v165, %v268
    %v270 = vpop.f32.mrb[0].mxu0
    %271 = vmatprep.mubr.bf16.mxu0 0
    %272 = vmatmul.mubr.bf16.gmra.mrb[0].mxu0 %v160
    %v273 = vpop.f32.mrb[0].mxu0
    %v274 = vadd.f32 %v165, %v273
    %v275 = vpop.f32.mrb[0].mxu0
    %v276 = vpop.f32.mrb[0].mxu0
    %v277 = vadd.f32 %v165, %v276
    %v278 = vpop.f32.mrb[0].mxu0
    %279 = vdwg.mxu0
    %280 = vst [vmem:[#allocation2] sm:$0xff] %v250
    %281 = vst [vmem:[#allocation2 + $0x8] sm:$0xff] %v253
    %282 = vst [vmem:[#allocation2 + $0x10] sm:$0xff] %v258
    %283 = vst [vmem:[#allocation2 + $0x18] sm:$0xff] %v261
    %284 = vst [vmem:[#allocation2 + $0x20] sm:$0xff] %v266
    %285 = vst [vmem:[#allocation2 + $0x28] sm:$0xff] %v269
    %286 = vst [vmem:[#allocation2 + $0x30] sm:$0xff] %v274
    %287 = vst [vmem:[#allocation2 + $0x38] sm:$0xff] %v277
    %v288 = vld [vmem:[#allocation2] sm:$0xff]
    %v289 = vmax.f32 %v288, 0.0
    %290 = vst [vmem:[#allocation2] sm:$0xff] %v289
    %s291 = scalar_lea.vmem [#allocation2], 8
    %v292 = vld [vmem:[%s291] sm:$0xff]
    %v293 = vpack.c.bf16 %v289, %v289
    %v310 = vunpack.c.l.b16 %v132
    %v311 = vunpack.c.l.b16 %v133
    %v312 = vunpack.c.l.b16 %v134
    %v313 = vunpack.c.l.b16 %v135
    %v314 = vunpack.c.l.b16 %v136
    %v315 = vunpack.c.l.b16 %v137
    %v316 = vunpack.c.l.b16 %v138
    %v317 = vunpack.c.l.b16 %v139
    %v318 = vunpack.c.l.b16 %v140
    %v319 = vunpack.c.l.b16 %v141
    %v320 = vunpack.c.l.b16 %v142
    %v321 = vunpack.c.l.b16 %v143
    %v322 = vunpack.c.l.b16 %v144
    %v323 = vunpack.c.l.b16 %v145
    %v324 = vunpack.c.l.b16 %v146
    %v325 = vunpack.c.l.b16 %v147
    %v326 = vpack.c.b16 %v311, %v310
    %v327 = vpack.c.b16 %v313, %v312
    %v328 = vpack.c.b16 %v315, %v314
    %v329 = vpack.c.b16 %v317, %v316
    %v330 = vpack.c.b16 %v319, %v318
    %v331 = vpack.c.b16 %v321, %v320
    %v332 = vpack.c.b16 %v323, %v322
    %v333 = vpack.c.b16 %v325, %v324
    %342 = vmatprep.subr.bf16.mxu0 0
    %343 = vmatpush1.bf16.msra.mxu0 %v326
    %344 = vmatprep.subr.bf16.mxu0 0
    %345 = vmatpush1.bf16.msra.mxu0 %v327
    %346 = vmatprep.subr.bf16.mxu0 0
    %347 = vmatpush1.bf16.msra.mxu0 %v328
    %348 = vmatprep.subr.bf16.mxu0 0
    %349 = vmatpush1.bf16.msra.mxu0 %v329
    %350 = vmatprep.subr.bf16.mxu0 0
    %351 = vmatpush1.bf16.msra.mxu0 %v330
    %352 = vmatprep.subr.bf16.mxu0 0
    %353 = vmatpush1.bf16.msra.mxu0 %v331
    %354 = vmatprep.subr.bf16.mxu0 0
    %355 = vmatpush1.bf16.msra.mxu0 %v332
    %356 = vmatprep.subr.bf16.mxu0 0
    %357 = vmatpush1.bf16.msra.mxu0 %v333
    %358 = vmatprep.subr.bf16.mxu0 0
    %359 = vmatpush1.bf16.msra.mxu0 0
    %360 = vmatprep.subr.bf16.mxu0 0
    %361 = vmatpush1.bf16.msra.mxu0 0
    %362 = vmatprep.subr.bf16.mxu0 0
    %363 = vmatpush1.bf16.msra.mxu0 0
    %364 = vmatprep.subr.bf16.mxu0 0
    %365 = vmatpush1.bf16.msra.mxu0 0
    %366 = vmatprep.subr.bf16.mxu0 0
    %367 = vmatpush1.bf16.msra.mxu0 0
    %368 = vmatprep.subr.bf16.mxu0 0
    %369 = vmatpush1.bf16.msra.mxu0 0
    %370 = vmatprep.subr.bf16.mxu0 0
    %371 = vmatpush1.bf16.msra.mxu0 0
    %372 = vmatprep.subr.bf16.mxu0 0
    %373 = vmatpush1.bf16.msra.mxu0 0
    %374 = vmatprep.mubr.bf16.mxu0 0
    %375 = vmatmul.mubr.bf16.gmra.mrb[0].mxu0 %v293
    %v376 = vpop.f32.mrb[0].mxu0
    %v377 = vadd.f32 0.0, %v376
    %v378 = vpop.f32.mrb[0].mxu0
    %v379 = vpop.f32.mrb[0].mxu0
    %v380 = vpop.f32.mrb[0].mxu0
    %381 = vdwg.mxu0
    %v382 = vadd.f32 %v292, %v377
    %v383 = vmax.f32 %v382, 0.0
    %384 = vst [vmem:[%s291] sm:$0xff] %v383
    %s385 = scalar_lea.vmem [#allocation2], 16
    %v386 = vld [vmem:[%s385] sm:$0xff]
    %v387 = vpack.c.bf16 %v383, %v383
    %388 = vmatprep.subr.bf16.mxu0 0
    %389 = vmatpush1.bf16.msra.mxu0 %v326
    %390 = vmatprep.subr.bf16.mxu0 0
    %391 = vmatpush1.bf16.msra.mxu0 %v327
    %392 = vmatprep.subr.bf16.mxu0 0
    %393 = vmatpush1.bf16.msra.mxu0 %v328
    %394 = vmatprep.subr.bf16.mxu0 0
    %395 = vmatpush1.bf16.msra.mxu0 %v329
    %396 = vmatprep.subr.bf16.mxu0 0
    %397 = vmatpush1.bf16.msra.mxu0 %v330
    %398 = vmatprep.subr.bf16.mxu0 0
    %399 = vmatpush1.bf16.msra.mxu0 %v331
    %400 = vmatprep.subr.bf16.mxu0 0
    %401 = vmatpush1.bf16.msra.mxu0 %v332
    %402 = vmatprep.subr.bf16.mxu0 0
    %403 = vmatpush1.bf16.msra.mxu0 %v333
    %404 = vmatprep.subr.bf16.mxu0 0
    %405 = vmatpush1.bf16.msra.mxu0 0
    %406 = vmatprep.subr.bf16.mxu0 0
    %407 = vmatpush1.bf16.msra.mxu0 0
    %408 = vmatprep.subr.bf16.mxu0 0
    %409 = vmatpush1.bf16.msra.mxu0 0
    %410 = vmatprep.subr.bf16.mxu0 0
    %411 = vmatpush1.bf16.msra.mxu0 0
    %412 = vmatprep.subr.bf16.mxu0 0
    %413 = vmatpush1.bf16.msra.mxu0 0
    %414 = vmatprep.subr.bf16.mxu0 0
    %415 = vmatpush1.bf16.msra.mxu0 0
    %416 = vmatprep.subr.bf16.mxu0 0
    %417 = vmatpush1.bf16.msra.mxu0 0
    %418 = vmatprep.subr.bf16.mxu0 0
    %419 = vmatpush1.bf16.msra.mxu0 0
    %420 = vmatprep.mubr.bf16.mxu0 0
    %421 = vmatmul.mubr.bf16.gmra.mrb[0].mxu0 %v387
    %v422 = vpop.f32.mrb[0].mxu0
    %v423 = vadd.f32 0.0, %v422
    %v424 = vpop.f32.mrb[0].mxu0
    %v425 = vpop.f32.mrb[0].mxu0
    %v426 = vpop.f32.mrb[0].mxu0
    %427 = vdwg.mxu0
    %v428 = vadd.f32 %v386, %v423
    %v429 = vmax.f32 %v428, 0.0
    %430 = vst [vmem:[%s385] sm:$0xff] %v429
    %s431 = scalar_lea.vmem [#allocation2], 24
    %v432 = vld [vmem:[%s431] sm:$0xff]
    %v433 = vpack.c.bf16 %v429, %v429
    %434 = vmatprep.subr.bf16.mxu0 0
    %435 = vmatpush1.bf16.msra.mxu0 %v326
    %436 = vmatprep.subr.bf16.mxu0 0
    %437 = vmatpush1.bf16.msra.mxu0 %v327
    %438 = vmatprep.subr.bf16.mxu0 0
    %439 = vmatpush1.bf16.msra.mxu0 %v328
    %440 = vmatprep.subr.bf16.mxu0 0
    %441 = vmatpush1.bf16.msra.mxu0 %v329
    %442 = vmatprep.subr.bf16.mxu0 0
    %443 = vmatpush1.bf16.msra.mxu0 %v330
    %444 = vmatprep.subr.bf16.mxu0 0
    %445 = vmatpush1.bf16.msra.mxu0 %v331
    %446 = vmatprep.subr.bf16.mxu0 0
    %447 = vmatpush1.bf16.msra.mxu0 %v332
    %448 = vmatprep.subr.bf16.mxu0 0
    %449 = vmatpush1.bf16.msra.mxu0 %v333
    %450 = vmatprep.subr.bf16.mxu0 0
    %451 = vmatpush1.bf16.msra.mxu0 0
    %452 = vmatprep.subr.bf16.mxu0 0
    %453 = vmatpush1.bf16.msra.mxu0 0
    %454 = vmatprep.subr.bf16.mxu0 0
    %455 = vmatpush1.bf16.msra.mxu0 0
    %456 = vmatprep.subr.bf16.mxu0 0
    %457 = vmatpush1.bf16.msra.mxu0 0
    %458 = vmatprep.subr.bf16.mxu0 0
    %459 = vmatpush1.bf16.msra.mxu0 0
    %460 = vmatprep.subr.bf16.mxu0 0
    %461 = vmatpush1.bf16.msra.mxu0 0
    %462 = vmatprep.subr.bf16.mxu0 0
    %463 = vmatpush1.bf16.msra.mxu0 0
    %464 = vmatprep.subr.bf16.mxu0 0
    %465 = vmatpush1.bf16.msra.mxu0 0
    %466 = vmatprep.mubr.bf16.mxu0 0
    %467 = vmatmul.mubr.bf16.gmra.mrb[0].mxu0 %v433
    %v468 = vpop.f32.mrb[0].mxu0
    %v469 = vadd.f32 0.0, %v468
    %v470 = vpop.f32.mrb[0].mxu0
    %v471 = vpop.f32.mrb[0].mxu0
    %v472 = vpop.f32.mrb[0].mxu0
    %473 = vdwg.mxu0
    %v474 = vadd.f32 %v432, %v469
    %v475 = vmax.f32 %v474, 0.0
    %476 = vst [vmem:[%s431] sm:$0xff] %v475
    %s477 = scalar_lea.vmem [#allocation2], 32
    %v478 = vld [vmem:[%s477] sm:$0xff]
    %v479 = vpack.c.bf16 %v475, %v475
    %480 = vmatprep.subr.bf16.mxu0 0
    %481 = vmatpush1.bf16.msra.mxu0 %v326
    %482 = vmatprep.subr.bf16.mxu0 0
    %483 = vmatpush1.bf16.msra.mxu0 %v327
    %484 = vmatprep.subr.bf16.mxu0 0
    %485 = vmatpush1.bf16.msra.mxu0 %v328
    %486 = vmatprep.subr.bf16.mxu0 0
    %487 = vmatpush1.bf16.msra.mxu0 %v329
    %488 = vmatprep.subr.bf16.mxu0 0
    %489 = vmatpush1.bf16.msra.mxu0 %v330
    %490 = vmatprep.subr.bf16.mxu0 0
    %491 = vmatpush1.bf16.msra.mxu0 %v331
    %492 = vmatprep.subr.bf16.mxu0 0
    %493 = vmatpush1.bf16.msra.mxu0 %v332
    %494 = vmatprep.subr.bf16.mxu0 0
    %495 = vmatpush1.bf16.msra.mxu0 %v333
    %496 = vmatprep.subr.bf16.mxu0 0
    %497 = vmatpush1.bf16.msra.mxu0 0
    %498 = vmatprep.subr.bf16.mxu0 0
    %499 = vmatpush1.bf16.msra.mxu0 0
    %500 = vmatprep.subr.bf16.mxu0 0
    %501 = vmatpush1.bf16.msra.mxu0 0
    %502 = vmatprep.subr.bf16.mxu0 0
    %503 = vmatpush1.bf16.msra.mxu0 0
    %504 = vmatprep.subr.bf16.mxu0 0
    %505 = vmatpush1.bf16.msra.mxu0 0
    %506 = vmatprep.subr.bf16.mxu0 0
    %507 = vmatpush1.bf16.msra.mxu0 0
    %508 = vmatprep.subr.bf16.mxu0 0
    %509 = vmatpush1.bf16.msra.mxu0 0
    %510 = vmatprep.subr.bf16.mxu0 0
    %511 = vmatpush1.bf16.msra.mxu0 0
    %512 = vmatprep.mubr.bf16.mxu0 0
    %513 = vmatmul.mubr.bf16.gmra.mrb[0].mxu0 %v479
    %v514 = vpop.f32.mrb[0].mxu0
    %v515 = vadd.f32 0.0, %v514
    %v516 = vpop.f32.mrb[0].mxu0
    %v517 = vpop.f32.mrb[0].mxu0
    %v518 = vpop.f32.mrb[0].mxu0
    %519 = vdwg.mxu0
    %v520 = vadd.f32 %v478, %v515
    %v521 = vmax.f32 %v520, 0.0
    %522 = vst [vmem:[%s477] sm:$0xff] %v521
    %s523 = scalar_lea.vmem [#allocation2], 40
    %v524 = vld [vmem:[%s523] sm:$0xff]
    %v525 = vpack.c.bf16 %v521, %v521
    %526 = vmatprep.subr.bf16.mxu0 0
    %527 = vmatpush1.bf16.msra.mxu0 %v326
    %528 = vmatprep.subr.bf16.mxu0 0
    %529 = vmatpush1.bf16.msra.mxu0 %v327
    %530 = vmatprep.subr.bf16.mxu0 0
    %531 = vmatpush1.bf16.msra.mxu0 %v328
    %532 = vmatprep.subr.bf16.mxu0 0
    %533 = vmatpush1.bf16.msra.mxu0 %v329
    %534 = vmatprep.subr.bf16.mxu0 0
    %535 = vmatpush1.bf16.msra.mxu0 %v330
    %536 = vmatprep.subr.bf16.mxu0 0
    %537 = vmatpush1.bf16.msra.mxu0 %v331
    %538 = vmatprep.subr.bf16.mxu0 0
    %539 = vmatpush1.bf16.msra.mxu0 %v332
    %540 = vmatprep.subr.bf16.mxu0 0
    %541 = vmatpush1.bf16.msra.mxu0 %v333
    %542 = vmatprep.subr.bf16.mxu0 0
    %543 = vmatpush1.bf16.msra.mxu0 0
    %544 = vmatprep.subr.bf16.mxu0 0
    %545 = vmatpush1.bf16.msra.mxu0 0
    %546 = vmatprep.subr.bf16.mxu0 0
    %547 = vmatpush1.bf16.msra.mxu0 0
    %548 = vmatprep.subr.bf16.mxu0 0
    %549 = vmatpush1.bf16.msra.mxu0 0
    %550 = vmatprep.subr.bf16.mxu0 0
    %551 = vmatpush1.bf16.msra.mxu0 0
    %552 = vmatprep.subr.bf16.mxu0 0
    %553 = vmatpush1.bf16.msra.mxu0 0
    %554 = vmatprep.subr.bf16.mxu0 0
    %555 = vmatpush1.bf16.msra.mxu0 0
    %556 = vmatprep.subr.bf16.mxu0 0
    %557 = vmatpush1.bf16.msra.mxu0 0
    %558 = vmatprep.mubr.bf16.mxu0 0
    %559 = vmatmul.mubr.bf16.gmra.mrb[0].mxu0 %v525
    %v560 = vpop.f32.mrb[0].mxu0
    %v561 = vadd.f32 0.0, %v560
    %v562 = vpop.f32.mrb[0].mxu0
    %v563 = vpop.f32.mrb[0].mxu0
    %v564 = vpop.f32.mrb[0].mxu0
    %565 = vdwg.mxu0
    %v566 = vadd.f32 %v524, %v561
    %v567 = vmax.f32 %v566, 0.0
    %568 = vst [vmem:[%s523] sm:$0xff] %v567
    %s569 = scalar_lea.vmem [#allocation2], 48
    %v570 = vld [vmem:[%s569] sm:$0xff]
    %v571 = vpack.c.bf16 %v567, %v567
    %572 = vmatprep.subr.bf16.mxu0 0
    %573 = vmatpush1.bf16.msra.mxu0 %v326
    %574 = vmatprep.subr.bf16.mxu0 0
    %575 = vmatpush1.bf16.msra.mxu0 %v327
    %576 = vmatprep.subr.bf16.mxu0 0
    %577 = vmatpush1.bf16.msra.mxu0 %v328
    %578 = vmatprep.subr.bf16.mxu0 0
    %579 = vmatpush1.bf16.msra.mxu0 %v329
    %580 = vmatprep.subr.bf16.mxu0 0
    %581 = vmatpush1.bf16.msra.mxu0 %v330
    %582 = vmatprep.subr.bf16.mxu0 0
    %583 = vmatpush1.bf16.msra.mxu0 %v331
    %584 = vmatprep.subr.bf16.mxu0 0
    %585 = vmatpush1.bf16.msra.mxu0 %v332
    %586 = vmatprep.subr.bf16.mxu0 0
    %587 = vmatpush1.bf16.msra.mxu0 %v333
    %588 = vmatprep.subr.bf16.mxu0 0
    %589 = vmatpush1.bf16.msra.mxu0 0
    %590 = vmatprep.subr.bf16.mxu0 0
    %591 = vmatpush1.bf16.msra.mxu0 0
    %592 = vmatprep.subr.bf16.mxu0 0
    %593 = vmatpush1.bf16.msra.mxu0 0
    %594 = vmatprep.subr.bf16.mxu0 0
    %595 = vmatpush1.bf16.msra.mxu0 0
    %596 = vmatprep.subr.bf16.mxu0 0
    %597 = vmatpush1.bf16.msra.mxu0 0
    %598 = vmatprep.subr.bf16.mxu0 0
    %599 = vmatpush1.bf16.msra.mxu0 0
    %600 = vmatprep.subr.bf16.mxu0 0
    %601 = vmatpush1.bf16.msra.mxu0 0
    %602 = vmatprep.subr.bf16.mxu0 0
    %603 = vmatpush1.bf16.msra.mxu0 0
    %604 = vmatprep.mubr.bf16.mxu0 0
    %605 = vmatmul.mubr.bf16.gmra.mrb[0].mxu0 %v571
    %v606 = vpop.f32.mrb[0].mxu0
    %v607 = vadd.f32 0.0, %v606
    %v608 = vpop.f32.mrb[0].mxu0
    %v609 = vpop.f32.mrb[0].mxu0
    %v610 = vpop.f32.mrb[0].mxu0
    %611 = vdwg.mxu0
    %v612 = vadd.f32 %v570, %v607
    %v613 = vmax.f32 %v612, 0.0
    %614 = vst [vmem:[%s569] sm:$0xff] %v613
    %s615 = scalar_lea.vmem [#allocation2], 56
    %v616 = vld [vmem:[%s615] sm:$0xff]
    %v617 = vpack.c.bf16 %v613, %v613
    %618 = vmatprep.subr.bf16.mxu0 0
    %619 = vmatpush1.bf16.msra.mxu0 %v326
    %620 = vmatprep.subr.bf16.mxu0 0
    %621 = vmatpush1.bf16.msra.mxu0 %v327
    %622 = vmatprep.subr.bf16.mxu0 0
    %623 = vmatpush1.bf16.msra.mxu0 %v328
    %624 = vmatprep.subr.bf16.mxu0 0
    %625 = vmatpush1.bf16.msra.mxu0 %v329
    %626 = vmatprep.subr.bf16.mxu0 0
    %627 = vmatpush1.bf16.msra.mxu0 %v330
    %628 = vmatprep.subr.bf16.mxu0 0
    %629 = vmatpush1.bf16.msra.mxu0 %v331
    %630 = vmatprep.subr.bf16.mxu0 0
    %631 = vmatpush1.bf16.msra.mxu0 %v332
    %632 = vmatprep.subr.bf16.mxu0 0
    %633 = vmatpush1.bf16.msra.mxu0 %v333
    %634 = vmatprep.subr.bf16.mxu0 0
    %635 = vmatpush1.bf16.msra.mxu0 0
    %636 = vmatprep.subr.bf16.mxu0 0
    %637 = vmatpush1.bf16.msra.mxu0 0
    %638 = vmatprep.subr.bf16.mxu0 0
    %639 = vmatpush1.bf16.msra.mxu0 0
    %640 = vmatprep.subr.bf16.mxu0 0
    %641 = vmatpush1.bf16.msra.mxu0 0
    %642 = vmatprep.subr.bf16.mxu0 0
    %643 = vmatpush1.bf16.msra.mxu0 0
    %644 = vmatprep.subr.bf16.mxu0 0
    %645 = vmatpush1.bf16.msra.mxu0 0
    %646 = vmatprep.subr.bf16.mxu0 0
    %647 = vmatpush1.bf16.msra.mxu0 0
    %648 = vmatprep.subr.bf16.mxu0 0
    %649 = vmatpush1.bf16.msra.mxu0 0
    %650 = vmatprep.mubr.bf16.mxu0 0
    %651 = vmatmul.mubr.bf16.gmra.mrb[0].mxu0 %v617
    %v652 = vpop.f32.mrb[0].mxu0
    %v653 = vadd.f32 0.0, %v652
    %v654 = vpop.f32.mrb[0].mxu0
    %v655 = vpop.f32.mrb[0].mxu0
    %v656 = vpop.f32.mrb[0].mxu0
    %657 = vdwg.mxu0
    %v658 = vadd.f32 %v616, %v653
    %v659 = vmax.f32 %v658, 0.0
    %660 = vst [vmem:[%s615] sm:$0xff] %v659
    %v661 = vld [vmem:[#allocation9] sm:$0xf]
    %v662 = vld [vmem:[#allocation9 + $0x4] sm:$0xf]
    %v663 = vld [vmem:[#allocation9 + $0x8] sm:$0xf]
    %v664 = vld [vmem:[#allocation9 + $0xc] sm:$0xf]
    %v665 = vld [vmem:[#allocation9 + $0x10] sm:$0xf]
    %v666 = vld [vmem:[#allocation9 + $0x14] sm:$0xf]
    %v667 = vld [vmem:[#allocation9 + $0x18] sm:$0xf]
    %v668 = vld [vmem:[#allocation9 + $0x1c] sm:$0xf]
    %v669 = vld [vmem:[#allocation9 + $0x20] sm:$0xf]
    %v670 = vld [vmem:[#allocation9 + $0x24] sm:$0xf]
    %v671 = vld [vmem:[#allocation9 + $0x28] sm:$0xf]
    %v672 = vld [vmem:[#allocation9 + $0x2c] sm:$0xf]
    %v673 = vld [vmem:[#allocation9 + $0x30] sm:$0xf]
    %v674 = vld [vmem:[#allocation9 + $0x34] sm:$0xf]
    %v675 = vld [vmem:[#allocation9 + $0x38] sm:$0xf]
    %v676 = vld [vmem:[#allocation9 + $0x3c] sm:$0xf]
    %v677 = vld [vmem:[#allocation11] sm:$0xf]
    %v678 = vld [vmem:[#allocation11 + $0x4] sm:$0xf]
    %v679 = vld [vmem:[#allocation11 + $0x8] sm:$0xf]
    %v680 = vld [vmem:[#allocation11 + $0xc] sm:$0xf]
    %v681 = vld [vmem:[#allocation11 + $0x10] sm:$0xf]
    %v682 = vld [vmem:[#allocation11 + $0x14] sm:$0xf]
    %v683 = vld [vmem:[#allocation11 + $0x18] sm:$0xf]
    %v684 = vld [vmem:[#allocation11 + $0x1c] sm:$0xf]
    %v685 = vld [vmem:[#allocation11 + $0x20] sm:$0xf]
    %v686 = vld [vmem:[#allocation11 + $0x24] sm:$0xf]
    %v687 = vld [vmem:[#allocation11 + $0x28] sm:$0xf]
    %v688 = vld [vmem:[#allocation11 + $0x2c] sm:$0xf]
    %v689 = vld [vmem:[#allocation11 + $0x30] sm:$0xf]
    %v690 = vld [vmem:[#allocation11 + $0x34] sm:$0xf]
    %v691 = vld [vmem:[#allocation11 + $0x38] sm:$0xf]
    %v692 = vld [vmem:[#allocation11 + $0x3c] sm:$0xf]
    %v693 = vld [vmem:[%s6] sm:$0x1]
    %v694 = vld [vmem:[#allocation2] sm:$0xff]
    %v695 = vld [vmem:[#allocation2 + $0x8] sm:$0xff]
    %v696 = vld [vmem:[#allocation2 + $0x10] sm:$0xff]
    %v697 = vld [vmem:[#allocation2 + $0x18] sm:$0xff]
    %v698 = vld [vmem:[#allocation2 + $0x20] sm:$0xff]
    %v699 = vld [vmem:[#allocation2 + $0x28] sm:$0xff]
    %v700 = vld [vmem:[#allocation2 + $0x30] sm:$0xff]
    %v701 = vld [vmem:[#allocation2 + $0x38] sm:$0xff]
    %v702 = vpack.c.bf16 %v695, %v694
    %v703 = vpack.c.bf16 %v697, %v696
    %v704 = vpack.c.bf16 %v699, %v698
    %v705 = vpack.c.bf16 %v701, %v700
    %v707 = vlaneseq
    %v708 = vshrl.u32 %v707, 7
    %v709 = vsub.s32 0, %v708
    %v710 = vrot.slane %v693, %v709
    %v728 = vunpack.c.l.b16 %v661
    %v729 = vunpack.c.l.b16 %v662
    %v730 = vunpack.c.l.b16 %v663
    %v731 = vunpack.c.l.b16 %v664
    %v732 = vunpack.c.l.b16 %v665
    %v733 = vunpack.c.l.b16 %v666
    %v734 = vunpack.c.l.b16 %v667
    %v735 = vunpack.c.l.b16 %v668
    %v736 = vunpack.c.l.b16 %v669
    %v737 = vunpack.c.l.b16 %v670
    %v738 = vunpack.c.l.b16 %v671
    %v739 = vunpack.c.l.b16 %v672
    %v740 = vunpack.c.l.b16 %v673
    %v741 = vunpack.c.l.b16 %v674
    %v742 = vunpack.c.l.b16 %v675
    %v743 = vunpack.c.l.b16 %v676
    %v744 = vpack.c.b16 %v729, %v728
    %v745 = vpack.c.b16 %v731, %v730
    %v746 = vpack.c.b16 %v733, %v732
    %v747 = vpack.c.b16 %v735, %v734
    %v748 = vpack.c.b16 %v737, %v736
    %v749 = vpack.c.b16 %v739, %v738
    %v750 = vpack.c.b16 %v741, %v740
    %v751 = vpack.c.b16 %v743, %v742
    %760 = vmatprep.subr.bf16.mxu0 0
    %761 = vmatpush1.bf16.msra.mxu0 %v744
    %762 = vmatprep.subr.bf16.mxu0 0
    %763 = vmatpush1.bf16.msra.mxu0 %v745
    %764 = vmatprep.subr.bf16.mxu0 0
    %765 = vmatpush1.bf16.msra.mxu0 %v746
    %766 = vmatprep.subr.bf16.mxu0 0
    %767 = vmatpush1.bf16.msra.mxu0 %v747
    %768 = vmatprep.subr.bf16.mxu0 0
    %769 = vmatpush1.bf16.msra.mxu0 %v748
    %770 = vmatprep.subr.bf16.mxu0 0
    %771 = vmatpush1.bf16.msra.mxu0 %v749
    %772 = vmatprep.subr.bf16.mxu0 0
    %773 = vmatpush1.bf16.msra.mxu0 %v750
    %774 = vmatprep.subr.bf16.mxu0 0
    %775 = vmatpush1.bf16.msra.mxu0 %v751
    %776 = vmatprep.subr.bf16.mxu0 0
    %777 = vmatpush1.bf16.msra.mxu0 0
    %778 = vmatprep.subr.bf16.mxu0 0
    %779 = vmatpush1.bf16.msra.mxu0 0
    %780 = vmatprep.subr.bf16.mxu0 0
    %781 = vmatpush1.bf16.msra.mxu0 0
    %782 = vmatprep.subr.bf16.mxu0 0
    %783 = vmatpush1.bf16.msra.mxu0 0
    %784 = vmatprep.subr.bf16.mxu0 0
    %785 = vmatpush1.bf16.msra.mxu0 0
    %786 = vmatprep.subr.bf16.mxu0 0
    %787 = vmatpush1.bf16.msra.mxu0 0
    %788 = vmatprep.subr.bf16.mxu0 0
    %789 = vmatpush1.bf16.msra.mxu0 0
    %790 = vmatprep.subr.bf16.mxu0 0
    %791 = vmatpush1.bf16.msra.mxu0 0
    %792 = vmatprep.mubr.bf16.mxu0 0
    %793 = vmatmul.mubr.bf16.gmra.mrb[0].mxu0 %v702
    %v794 = vpop.f32.mrb[0].mxu0
    %v795 = vadd.f32 %v710, %v794
    %v796 = vpop.f32.mrb[0].mxu0
    %v797 = vpop.f32.mrb[0].mxu0
    %v798 = vadd.f32 %v710, %v797
    %v799 = vpop.f32.mrb[0].mxu0
    %800 = vmatprep.mubr.bf16.mxu0 0
    %801 = vmatmul.mubr.bf16.gmra.mrb[0].mxu0 %v703
    %v802 = vpop.f32.mrb[0].mxu0
    %v803 = vadd.f32 %v710, %v802
    %v804 = vpop.f32.mrb[0].mxu0
    %v805 = vpop.f32.mrb[0].mxu0
    %v806 = vadd.f32 %v710, %v805
    %v807 = vpop.f32.mrb[0].mxu0
    %808 = vmatprep.mubr.bf16.mxu0 0
    %809 = vmatmul.mubr.bf16.gmra.mrb[0].mxu0 %v704
    %v810 = vpop.f32.mrb[0].mxu0
    %v811 = vadd.f32 %v710, %v810
    %v812 = vpop.f32.mrb[0].mxu0
    %v813 = vpop.f32.mrb[0].mxu0
    %v814 = vadd.f32 %v710, %v813
    %v815 = vpop.f32.mrb[0].mxu0
    %816 = vmatprep.mubr.bf16.mxu0 0
    %817 = vmatmul.mubr.bf16.gmra.mrb[0].mxu0 %v705
    %v818 = vpop.f32.mrb[0].mxu0
    %v819 = vadd.f32 %v710, %v818
    %v820 = vpop.f32.mrb[0].mxu0
    %v821 = vpop.f32.mrb[0].mxu0
    %v822 = vadd.f32 %v710, %v821
    %v823 = vpop.f32.mrb[0].mxu0
    %824 = vdwg.mxu0
    %825 = vst [vmem:[#allocation2] sm:$0xff] %v795
    %826 = vst [vmem:[#allocation2 + $0x8] sm:$0xff] %v798
    %827 = vst [vmem:[#allocation2 + $0x10] sm:$0xff] %v803
    %828 = vst [vmem:[#allocation2 + $0x18] sm:$0xff] %v806
    %829 = vst [vmem:[#allocation2 + $0x20] sm:$0xff] %v811
    %830 = vst [vmem:[#allocation2 + $0x28] sm:$0xff] %v814
    %831 = vst [vmem:[#allocation2 + $0x30] sm:$0xff] %v819
    %832 = vst [vmem:[#allocation2 + $0x38] sm:$0xff] %v822
    %v833 = vld [vmem:[#allocation2] sm:$0xff]
    %v834 = vmax.f32 %v833, 0.0
    %v835 = vld [vmem:[%s291] sm:$0xff]
    %v836 = vpack.c.bf16 %v834, %v834
    %v853 = vunpack.c.l.b16 %v677
    %v854 = vunpack.c.l.b16 %v678
    %v855 = vunpack.c.l.b16 %v679
    %v856 = vunpack.c.l.b16 %v680
    %v857 = vunpack.c.l.b16 %v681
    %v858 = vunpack.c.l.b16 %v682
    %v859 = vunpack.c.l.b16 %v683
    %v860 = vunpack.c.l.b16 %v684
    %v861 = vunpack.c.l.b16 %v685
    %v862 = vunpack.c.l.b16 %v686
    %v863 = vunpack.c.l.b16 %v687
    %v864 = vunpack.c.l.b16 %v688
    %v865 = vunpack.c.l.b16 %v689
    %v866 = vunpack.c.l.b16 %v690
    %v867 = vunpack.c.l.b16 %v691
    %v868 = vunpack.c.l.b16 %v692
    %v869 = vpack.c.b16 %v854, %v853
    %v870 = vpack.c.b16 %v856, %v855
    %v871 = vpack.c.b16 %v858, %v857
    %v872 = vpack.c.b16 %v860, %v859
    %v873 = vpack.c.b16 %v862, %v861
    %v874 = vpack.c.b16 %v864, %v863
    %v875 = vpack.c.b16 %v866, %v865
    %v876 = vpack.c.b16 %v868, %v867
    %885 = vmatprep.subr.bf16.mxu0 0
    %886 = vmatpush1.bf16.msra.mxu0 %v869
    %887 = vmatprep.subr.bf16.mxu0 0
    %888 = vmatpush1.bf16.msra.mxu0 %v870
    %889 = vmatprep.subr.bf16.mxu0 0
    %890 = vmatpush1.bf16.msra.mxu0 %v871
    %891 = vmatprep.subr.bf16.mxu0 0
    %892 = vmatpush1.bf16.msra.mxu0 %v872
    %893 = vmatprep.subr.bf16.mxu0 0
    %894 = vmatpush1.bf16.msra.mxu0 %v873
    %895 = vmatprep.subr.bf16.mxu0 0
    %896 = vmatpush1.bf16.msra.mxu0 %v874
    %897 = vmatprep.subr.bf16.mxu0 0
    %898 = vmatpush1.bf16.msra.mxu0 %v875
    %899 = vmatprep.subr.bf16.mxu0 0
    %900 = vmatpush1.bf16.msra.mxu0 %v876
    %901 = vmatprep.subr.bf16.mxu0 0
    %902 = vmatpush1.bf16.msra.mxu0 0
    %903 = vmatprep.subr.bf16.mxu0 0
    %904 = vmatpush1.bf16.msra.mxu0 0
    %905 = vmatprep.subr.bf16.mxu0 0
    %906 = vmatpush1.bf16.msra.mxu0 0
    %907 = vmatprep.subr.bf16.mxu0 0
    %908 = vmatpush1.bf16.msra.mxu0 0
    %909 = vmatprep.subr.bf16.mxu0 0
    %910 = vmatpush1.bf16.msra.mxu0 0
    %911 = vmatprep.subr.bf16.mxu0 0
    %912 = vmatpush1.bf16.msra.mxu0 0
    %913 = vmatprep.subr.bf16.mxu0 0
    %914 = vmatpush1.bf16.msra.mxu0 0
    %915 = vmatprep.subr.bf16.mxu0 0
    %916 = vmatpush1.bf16.msra.mxu0 0
    %917 = vmatprep.mubr.bf16.mxu0 0
    %918 = vmatmul.mubr.bf16.gmra.mrb[0].mxu0 %v836
    %v919 = vpop.f32.mrb[0].mxu0
    %v920 = vadd.f32 0.0, %v919
    %v921 = vpop.f32.mrb[0].mxu0
    %v922 = vpop.f32.mrb[0].mxu0
    %v923 = vpop.f32.mrb[0].mxu0
    %924 = vdwg.mxu0
    %v925 = vadd.f32 %v835, %v920
    %v926 = vmax.f32 %v925, 0.0
    %v927 = vld [vmem:[%s385] sm:$0xff]
    %v928 = vpack.c.bf16 %v926, %v926
    %929 = vmatprep.subr.bf16.mxu0 0
    %930 = vmatpush1.bf16.msra.mxu0 %v869
    %931 = vmatprep.subr.bf16.mxu0 0
    %932 = vmatpush1.bf16.msra.mxu0 %v870
    %933 = vmatprep.subr.bf16.mxu0 0
    %934 = vmatpush1.bf16.msra.mxu0 %v871
    %935 = vmatprep.subr.bf16.mxu0 0
    %936 = vmatpush1.bf16.msra.mxu0 %v872
    %937 = vmatprep.subr.bf16.mxu0 0
    %938 = vmatpush1.bf16.msra.mxu0 %v873
    %939 = vmatprep.subr.bf16.mxu0 0
    %940 = vmatpush1.bf16.msra.mxu0 %v874
    %941 = vmatprep.subr.bf16.mxu0 0
    %942 = vmatpush1.bf16.msra.mxu0 %v875
    %943 = vmatprep.subr.bf16.mxu0 0
    %944 = vmatpush1.bf16.msra.mxu0 %v876
    %945 = vmatprep.subr.bf16.mxu0 0
    %946 = vmatpush1.bf16.msra.mxu0 0
    %947 = vmatprep.subr.bf16.mxu0 0
    %948 = vmatpush1.bf16.msra.mxu0 0
    %949 = vmatprep.subr.bf16.mxu0 0
    %950 = vmatpush1.bf16.msra.mxu0 0
    %951 = vmatprep.subr.bf16.mxu0 0
    %952 = vmatpush1.bf16.msra.mxu0 0
    %953 = vmatprep.subr.bf16.mxu0 0
    %954 = vmatpush1.bf16.msra.mxu0 0
    %955 = vmatprep.subr.bf16.mxu0 0
    %956 = vmatpush1.bf16.msra.mxu0 0
    %957 = vmatprep.subr.bf16.mxu0 0
    %958 = vmatpush1.bf16.msra.mxu0 0
    %959 = vmatprep.subr.bf16.mxu0 0
    %960 = vmatpush1.bf16.msra.mxu0 0
    %961 = vmatprep.mubr.bf16.mxu0 0
    %962 = vmatmul.mubr.bf16.gmra.mrb[0].mxu0 %v928
    %v963 = vpop.f32.mrb[0].mxu0
    %v964 = vadd.f32 0.0, %v963
    %v965 = vpop.f32.mrb[0].mxu0
    %v966 = vpop.f32.mrb[0].mxu0
    %v967 = vpop.f32.mrb[0].mxu0
    %968 = vdwg.mxu0
    %v969 = vadd.f32 %v927, %v964
    %v970 = vmax.f32 %v969, 0.0
    %v971 = vld [vmem:[%s431] sm:$0xff]
    %v972 = vpack.c.bf16 %v970, %v970
    %973 = vmatprep.subr.bf16.mxu0 0
    %974 = vmatpush1.bf16.msra.mxu0 %v869
    %975 = vmatprep.subr.bf16.mxu0 0
    %976 = vmatpush1.bf16.msra.mxu0 %v870
    %977 = vmatprep.subr.bf16.mxu0 0
    %978 = vmatpush1.bf16.msra.mxu0 %v871
    %979 = vmatprep.subr.bf16.mxu0 0
    %980 = vmatpush1.bf16.msra.mxu0 %v872
    %981 = vmatprep.subr.bf16.mxu0 0
    %982 = vmatpush1.bf16.msra.mxu0 %v873
    %983 = vmatprep.subr.bf16.mxu0 0
    %984 = vmatpush1.bf16.msra.mxu0 %v874
    %985 = vmatprep.subr.bf16.mxu0 0
    %986 = vmatpush1.bf16.msra.mxu0 %v875
    %987 = vmatprep.subr.bf16.mxu0 0
    %988 = vmatpush1.bf16.msra.mxu0 %v876
    %989 = vmatprep.subr.bf16.mxu0 0
    %990 = vmatpush1.bf16.msra.mxu0 0
    %991 = vmatprep.subr.bf16.mxu0 0
    %992 = vmatpush1.bf16.msra.mxu0 0
    %993 = vmatprep.subr.bf16.mxu0 0
    %994 = vmatpush1.bf16.msra.mxu0 0
    %995 = vmatprep.subr.bf16.mxu0 0
    %996 = vmatpush1.bf16.msra.mxu0 0
    %997 = vmatprep.subr.bf16.mxu0 0
    %998 = vmatpush1.bf16.msra.mxu0 0
    %999 = vmatprep.subr.bf16.mxu0 0
    %1000 = vmatpush1.bf16.msra.mxu0 0
    %1001 = vmatprep.subr.bf16.mxu0 0
    %1002 = vmatpush1.bf16.msra.mxu0 0
    %1003 = vmatprep.subr.bf16.mxu0 0
    %1004 = vmatpush1.bf16.msra.mxu0 0
    %1005 = vmatprep.mubr.bf16.mxu0 0
    %1006 = vmatmul.mubr.bf16.gmra.mrb[0].mxu0 %v972
    %v1007 = vpop.f32.mrb[0].mxu0
    %v1008 = vadd.f32 0.0, %v1007
    %v1009 = vpop.f32.mrb[0].mxu0
    %v1010 = vpop.f32.mrb[0].mxu0
    %v1011 = vpop.f32.mrb[0].mxu0
    %1012 = vdwg.mxu0
    %v1013 = vadd.f32 %v971, %v1008
    %v1014 = vmax.f32 %v1013, 0.0
    %v1015 = vld [vmem:[%s477] sm:$0xff]
    %v1016 = vpack.c.bf16 %v1014, %v1014
    %1017 = vmatprep.subr.bf16.mxu0 0
    %1018 = vmatpush1.bf16.msra.mxu0 %v869
    %1019 = vmatprep.subr.bf16.mxu0 0
    %1020 = vmatpush1.bf16.msra.mxu0 %v870
    %1021 = vmatprep.subr.bf16.mxu0 0
    %1022 = vmatpush1.bf16.msra.mxu0 %v871
    %1023 = vmatprep.subr.bf16.mxu0 0
    %1024 = vmatpush1.bf16.msra.mxu0 %v872
    %1025 = vmatprep.subr.bf16.mxu0 0
    %1026 = vmatpush1.bf16.msra.mxu0 %v873
    %1027 = vmatprep.subr.bf16.mxu0 0
    %1028 = vmatpush1.bf16.msra.mxu0 %v874
    %1029 = vmatprep.subr.bf16.mxu0 0
    %1030 = vmatpush1.bf16.msra.mxu0 %v875
    %1031 = vmatprep.subr.bf16.mxu0 0
    %1032 = vmatpush1.bf16.msra.mxu0 %v876
    %1033 = vmatprep.subr.bf16.mxu0 0
    %1034 = vmatpush1.bf16.msra.mxu0 0
    %1035 = vmatprep.subr.bf16.mxu0 0
    %1036 = vmatpush1.bf16.msra.mxu0 0
    %1037 = vmatprep.subr.bf16.mxu0 0
    %1038 = vmatpush1.bf16.msra.mxu0 0
    %1039 = vmatprep.subr.bf16.mxu0 0
    %1040 = vmatpush1.bf16.msra.mxu0 0
    %1041 = vmatprep.subr.bf16.mxu0 0
    %1042 = vmatpush1.bf16.msra.mxu0 0
    %1043 = vmatprep.subr.bf16.mxu0 0
    %1044 = vmatpush1.bf16.msra.mxu0 0
    %1045 = vmatprep.subr.bf16.mxu0 0
    %1046 = vmatpush1.bf16.msra.mxu0 0
    %1047 = vmatprep.subr.bf16.mxu0 0
    %1048 = vmatpush1.bf16.msra.mxu0 0
    %1049 = vmatprep.mubr.bf16.mxu0 0
    %1050 = vmatmul.mubr.bf16.gmra.mrb[0].mxu0 %v1016
    %v1051 = vpop.f32.mrb[0].mxu0
    %v1052 = vadd.f32 0.0, %v1051
    %v1053 = vpop.f32.mrb[0].mxu0
    %v1054 = vpop.f32.mrb[0].mxu0
    %v1055 = vpop.f32.mrb[0].mxu0
    %1056 = vdwg.mxu0
    %v1057 = vadd.f32 %v1015, %v1052
    %v1058 = vmax.f32 %v1057, 0.0
    %v1059 = vld [vmem:[%s523] sm:$0xff]
    %v1060 = vpack.c.bf16 %v1058, %v1058
    %1061 = vmatprep.subr.bf16.mxu0 0
    %1062 = vmatpush1.bf16.msra.mxu0 %v869
    %1063 = vmatprep.subr.bf16.mxu0 0
    %1064 = vmatpush1.bf16.msra.mxu0 %v870
    %1065 = vmatprep.subr.bf16.mxu0 0
    %1066 = vmatpush1.bf16.msra.mxu0 %v871
    %1067 = vmatprep.subr.bf16.mxu0 0
    %1068 = vmatpush1.bf16.msra.mxu0 %v872
    %1069 = vmatprep.subr.bf16.mxu0 0
    %1070 = vmatpush1.bf16.msra.mxu0 %v873
    %1071 = vmatprep.subr.bf16.mxu0 0
    %1072 = vmatpush1.bf16.msra.mxu0 %v874
    %1073 = vmatprep.subr.bf16.mxu0 0
    %1074 = vmatpush1.bf16.msra.mxu0 %v875
    %1075 = vmatprep.subr.bf16.mxu0 0
    %1076 = vmatpush1.bf16.msra.mxu0 %v876
    %1077 = vmatprep.subr.bf16.mxu0 0
    %1078 = vmatpush1.bf16.msra.mxu0 0
    %1079 = vmatprep.subr.bf16.mxu0 0
    %1080 = vmatpush1.bf16.msra.mxu0 0
    %1081 = vmatprep.subr.bf16.mxu0 0
    %1082 = vmatpush1.bf16.msra.mxu0 0
    %1083 = vmatprep.subr.bf16.mxu0 0
    %1084 = vmatpush1.bf16.msra.mxu0 0
    %1085 = vmatprep.subr.bf16.mxu0 0
    %1086 = vmatpush1.bf16.msra.mxu0 0
    %1087 = vmatprep.subr.bf16.mxu0 0
    %1088 = vmatpush1.bf16.msra.mxu0 0
    %1089 = vmatprep.subr.bf16.mxu0 0
    %1090 = vmatpush1.bf16.msra.mxu0 0
    %1091 = vmatprep.subr.bf16.mxu0 0
    %1092 = vmatpush1.bf16.msra.mxu0 0
    %1093 = vmatprep.mubr.bf16.mxu0 0
    %1094 = vmatmul.mubr.bf16.gmra.mrb[0].mxu0 %v1060
    %v1095 = vpop.f32.mrb[0].mxu0
    %v1096 = vadd.f32 0.0, %v1095
    %v1097 = vpop.f32.mrb[0].mxu0
    %v1098 = vpop.f32.mrb[0].mxu0
    %v1099 = vpop.f32.mrb[0].mxu0
    %1100 = vdwg.mxu0
    %v1101 = vadd.f32 %v1059, %v1096
    %v1102 = vmax.f32 %v1101, 0.0
    %v1103 = vld [vmem:[%s569] sm:$0xff]
    %v1104 = vpack.c.bf16 %v1102, %v1102
    %1105 = vmatprep.subr.bf16.mxu0 0
    %1106 = vmatpush1.bf16.msra.mxu0 %v869
    %1107 = vmatprep.subr.bf16.mxu0 0
    %1108 = vmatpush1.bf16.msra.mxu0 %v870
    %1109 = vmatprep.subr.bf16.mxu0 0
    %1110 = vmatpush1.bf16.msra.mxu0 %v871
    %1111 = vmatprep.subr.bf16.mxu0 0
    %1112 = vmatpush1.bf16.msra.mxu0 %v872
    %1113 = vmatprep.subr.bf16.mxu0 0
    %1114 = vmatpush1.bf16.msra.mxu0 %v873
    %1115 = vmatprep.subr.bf16.mxu0 0
    %1116 = vmatpush1.bf16.msra.mxu0 %v874
    %1117 = vmatprep.subr.bf16.mxu0 0
    %1118 = vmatpush1.bf16.msra.mxu0 %v875
    %1119 = vmatprep.subr.bf16.mxu0 0
    %1120 = vmatpush1.bf16.msra.mxu0 %v876
    %1121 = vmatprep.subr.bf16.mxu0 0
    %1122 = vmatpush1.bf16.msra.mxu0 0
    %1123 = vmatprep.subr.bf16.mxu0 0
    %1124 = vmatpush1.bf16.msra.mxu0 0
    %1125 = vmatprep.subr.bf16.mxu0 0
    %1126 = vmatpush1.bf16.msra.mxu0 0
    %1127 = vmatprep.subr.bf16.mxu0 0
    %1128 = vmatpush1.bf16.msra.mxu0 0
    %1129 = vmatprep.subr.bf16.mxu0 0
    %1130 = vmatpush1.bf16.msra.mxu0 0
    %1131 = vmatprep.subr.bf16.mxu0 0
    %1132 = vmatpush1.bf16.msra.mxu0 0
    %1133 = vmatprep.subr.bf16.mxu0 0
    %1134 = vmatpush1.bf16.msra.mxu0 0
    %1135 = vmatprep.subr.bf16.mxu0 0
    %1136 = vmatpush1.bf16.msra.mxu0 0
    %1137 = vmatprep.mubr.bf16.mxu0 0
    %1138 = vmatmul.mubr.bf16.gmra.mrb[0].mxu0 %v1104
    %v1139 = vpop.f32.mrb[0].mxu0
    %v1140 = vadd.f32 0.0, %v1139
    %v1141 = vpop.f32.mrb[0].mxu0
    %v1142 = vpop.f32.mrb[0].mxu0
    %v1143 = vpop.f32.mrb[0].mxu0
    %1144 = vdwg.mxu0
    %v1145 = vadd.f32 %v1103, %v1140
    %v1146 = vmax.f32 %v1145, 0.0
    %v1147 = vld [vmem:[%s615] sm:$0xff]
    %v1148 = vpack.c.bf16 %v1146, %v1146
    %1149 = vmatprep.subr.bf16.mxu0 0
    %1150 = vmatpush1.bf16.msra.mxu0 %v869
    %1151 = vmatprep.subr.bf16.mxu0 0
    %1152 = vmatpush1.bf16.msra.mxu0 %v870
    %1153 = vmatprep.subr.bf16.mxu0 0
    %1154 = vmatpush1.bf16.msra.mxu0 %v871
    %1155 = vmatprep.subr.bf16.mxu0 0
    %1156 = vmatpush1.bf16.msra.mxu0 %v872
    %1157 = vmatprep.subr.bf16.mxu0 0
    %1158 = vmatpush1.bf16.msra.mxu0 %v873
    %1159 = vmatprep.subr.bf16.mxu0 0
    %1160 = vmatpush1.bf16.msra.mxu0 %v874
    %1161 = vmatprep.subr.bf16.mxu0 0
    %1162 = vmatpush1.bf16.msra.mxu0 %v875
    %1163 = vmatprep.subr.bf16.mxu0 0
    %1164 = vmatpush1.bf16.msra.mxu0 %v876
    %1165 = vmatprep.subr.bf16.mxu0 0
    %1166 = vmatpush1.bf16.msra.mxu0 0
    %1167 = vmatprep.subr.bf16.mxu0 0
    %1168 = vmatpush1.bf16.msra.mxu0 0
    %1169 = vmatprep.subr.bf16.mxu0 0
    %1170 = vmatpush1.bf16.msra.mxu0 0
    %1171 = vmatprep.subr.bf16.mxu0 0
    %1172 = vmatpush1.bf16.msra.mxu0 0
    %1173 = vmatprep.subr.bf16.mxu0 0
    %1174 = vmatpush1.bf16.msra.mxu0 0
    %1175 = vmatprep.subr.bf16.mxu0 0
    %1176 = vmatpush1.bf16.msra.mxu0 0
    %1177 = vmatprep.subr.bf16.mxu0 0
    %1178 = vmatpush1.bf16.msra.mxu0 0
    %1179 = vmatprep.subr.bf16.mxu0 0
    %1180 = vmatpush1.bf16.msra.mxu0 0
    %1181 = vmatprep.mubr.bf16.mxu0 0
    %1182 = vmatmul.mubr.bf16.gmra.mrb[0].mxu0 %v1148
    %v1183 = vpop.f32.mrb[0].mxu0
    %v1184 = vadd.f32 0.0, %v1183
    %v1185 = vpop.f32.mrb[0].mxu0
    %v1186 = vpop.f32.mrb[0].mxu0
    %v1187 = vpop.f32.mrb[0].mxu0
    %1188 = vdwg.mxu0
    %v1189 = vadd.f32 %v1147, %v1184
    %v1190 = vmax.f32 %v1189, 0.0
    %v1191 = vpack.c.bf16 %v1190, %v1190
    %v1192 = vld [vmem:[#allocation12] sm:$0xf]
    %v1193 = vld [vmem:[#allocation12 + $0x4] sm:$0xf]
    %v1194 = vld [vmem:[#allocation12 + $0x8] sm:$0xf]
    %v1195 = vld [vmem:[#allocation12 + $0xc] sm:$0xf]
    %v1196 = vld [vmem:[#allocation12 + $0x10] sm:$0xf]
    %v1197 = vld [vmem:[#allocation12 + $0x14] sm:$0xf]
    %v1198 = vld [vmem:[#allocation12 + $0x18] sm:$0xf]
    %v1199 = vld [vmem:[#allocation12 + $0x1c] sm:$0xf]
    %v1200 = vld [vmem:[#allocation12 + $0x20] sm:$0xf]
    %v1201 = vld [vmem:[#allocation12 + $0x24] sm:$0xf]
    %v1202 = vld [vmem:[#allocation12 + $0x28] sm:$0xf]
    %v1203 = vld [vmem:[#allocation12 + $0x2c] sm:$0xf]
    %v1204 = vld [vmem:[#allocation12 + $0x30] sm:$0xf]
    %v1205 = vld [vmem:[#allocation12 + $0x34] sm:$0xf]
    %v1206 = vld [vmem:[#allocation12 + $0x38] sm:$0xf]
    %v1207 = vld [vmem:[#allocation12 + $0x3c] sm:$0xf]
    %v1208 = vld [vmem:[%s8] sm:$0x1]
    %v1210 = vlaneseq
    %v1211 = vshrl.u32 %v1210, 7
    %v1212 = vsub.s32 0, %v1211
    %v1213 = vrot.slane %v1208, %v1212
    %v1231 = vunpack.c.l.b16 %v1192
    %v1232 = vunpack.c.l.b16 %v1193
    %v1233 = vunpack.c.l.b16 %v1194
    %v1234 = vunpack.c.l.b16 %v1195
    %v1235 = vunpack.c.l.b16 %v1196
    %v1236 = vunpack.c.l.b16 %v1197
    %v1237 = vunpack.c.l.b16 %v1198
    %v1238 = vunpack.c.l.b16 %v1199
    %v1239 = vunpack.c.l.b16 %v1200
    %v1240 = vunpack.c.l.b16 %v1201
    %v1241 = vunpack.c.l.b16 %v1202
    %v1242 = vunpack.c.l.b16 %v1203
    %v1243 = vunpack.c.l.b16 %v1204
    %v1244 = vunpack.c.l.b16 %v1205
    %v1245 = vunpack.c.l.b16 %v1206
    %v1246 = vunpack.c.l.b16 %v1207
    %v1247 = vpack.c.b16 %v1232, %v1231
    %v1248 = vpack.c.b16 %v1234, %v1233
    %v1249 = vpack.c.b16 %v1236, %v1235
    %v1250 = vpack.c.b16 %v1238, %v1237
    %v1251 = vpack.c.b16 %v1240, %v1239
    %v1252 = vpack.c.b16 %v1242, %v1241
    %v1253 = vpack.c.b16 %v1244, %v1243
    %v1254 = vpack.c.b16 %v1246, %v1245
    %1263 = vmatprep.subr.bf16.mxu0 0
    %1264 = vmatpush1.bf16.msra.mxu0 %v1247
    %1265 = vmatprep.subr.bf16.mxu0 0
    %1266 = vmatpush1.bf16.msra.mxu0 %v1248
    %1267 = vmatprep.subr.bf16.mxu0 0
    %1268 = vmatpush1.bf16.msra.mxu0 %v1249
    %1269 = vmatprep.subr.bf16.mxu0 0
    %1270 = vmatpush1.bf16.msra.mxu0 %v1250
    %1271 = vmatprep.subr.bf16.mxu0 0
    %1272 = vmatpush1.bf16.msra.mxu0 %v1251
    %1273 = vmatprep.subr.bf16.mxu0 0
    %1274 = vmatpush1.bf16.msra.mxu0 %v1252
    %1275 = vmatprep.subr.bf16.mxu0 0
    %1276 = vmatpush1.bf16.msra.mxu0 %v1253
    %1277 = vmatprep.subr.bf16.mxu0 0
    %1278 = vmatpush1.bf16.msra.mxu0 %v1254
    %1279 = vmatprep.subr.bf16.mxu0 0
    %1280 = vmatpush1.bf16.msra.mxu0 0
    %1281 = vmatprep.subr.bf16.mxu0 0
    %1282 = vmatpush1.bf16.msra.mxu0 0
    %1283 = vmatprep.subr.bf16.mxu0 0
    %1284 = vmatpush1.bf16.msra.mxu0 0
    %1285 = vmatprep.subr.bf16.mxu0 0
    %1286 = vmatpush1.bf16.msra.mxu0 0
    %1287 = vmatprep.subr.bf16.mxu0 0
    %1288 = vmatpush1.bf16.msra.mxu0 0
    %1289 = vmatprep.subr.bf16.mxu0 0
    %1290 = vmatpush1.bf16.msra.mxu0 0
    %1291 = vmatprep.subr.bf16.mxu0 0
    %1292 = vmatpush1.bf16.msra.mxu0 0
    %1293 = vmatprep.subr.bf16.mxu0 0
    %1294 = vmatpush1.bf16.msra.mxu0 0
    %1295 = vmatprep.mubr.bf16.mxu0 0
    %1296 = vmatmul.mubr.bf16.gmra.mrb[0].mxu0 %v1191
    %v1297 = vpop.f32.mrb[0].mxu0
    %v1298 = vadd.f32 %v1213, %v1297
    %v1299 = vpop.f32.mrb[0].mxu0
    %v1300 = vpop.f32.mrb[0].mxu0
    %v1301 = vpop.f32.mrb[0].mxu0
    %1302 = vdwg.mxu0
    %1303 = vst [vmem:[#allocation14] sm:$0xff] %v1298
    // Predicated region
    $region62: #{tpu_custom_call.1} parent=1 // pred_check
      _
    $region63: #{tpu_custom_call.1} parent=1 // pred_check_branch
      %1305 = sbr.rel (0) target = $region65
    $region64: #{tpu_custom_call.1} parent=1 // pred_region
      %s1307 = ssub.s32 128, 128
      %1308 = vsyncadd [#allocation5], %s1307
      %s1310 = sshll.u32 [#allocation14], 4
      %s1311 = int_to_ptr.vmem [resolvable:$true] %s1310
      %1313 = dma.vmem_to_hbm [thread:$0]  %s1311, 128, %s9, [#allocation5]
    $region65: #{tpu_custom_call.1} parent=1 // pred_fallthru
      _
    // Predicated region
    $region66: #{tpu_custom_call.1} parent=1 // pred_check
      _
    $region67: #{tpu_custom_call.1} parent=1 // pred_check_branch
      %1315 = sbr.rel (0) target = $region69
    $region68: #{tpu_custom_call.1} parent=1 // pred_region
      %1316 = dma.done [#allocation5], 128
    $region69: #{tpu_custom_call.1} parent=1 // pred_fallthru
      _
    %1317 = vsyncpa [#allocation4], 1
    %1318 = vsyncpa [#allocation7], 1
    %1319 = vsyncpa [#allocation10], 1
    %1320 = vsyncpa [#allocation13], 1
    %1321 = vsyncpa [#allocation5], 1

// kernel: tpu_custom_call.1
$region0: #{tpu_custom_call.1}
  #allocation0 [shape = 'u32[]', space=smem, size = 0x4, offset = 0x4, fixed_abs, tag = 'smem constant byte address 0x4 - core index']
  #allocation1 [shape = 'u32[144,128]{1,0:T(1,128)}', space=vmem, size = 0x12000, scoped, tag = 'internal scratch']
  #allocation2 [shape = 'f32[8,8,128]{2,1,0:T(8,128)}', space=vmem, size = 0x8000, scoped, tag = 'scratch operand']
  %s0 = inlined_call_operand.hbm [shape: f32[8,8,128], index: 0, kind: input, shape index: {}]
  %s1 = inlined_call_operand.hbm [shape: bf16[128,128], index: 1, kind: input, shape index: {}]
  %s2 = inlined_call_operand.hbm [shape: bf16[128,128], index: 2, kind: input, shape index: {}]
  %s3 = inlined_call_operand.vmem [shape: f32[1,128], index: 3, kind: input, shape index: {}]
  %s4 = inlined_call_operand.hbm [shape: bf16[128,128], index: 4, kind: input, shape index: {}]
  %s5 = inlined_call_operand.hbm [shape: bf16[128,128], index: 5, kind: input, shape index: {}]
  %s6 = inlined_call_operand.vmem [shape: f32[1,128], index: 6, kind: input, shape index: {}]
  %s7 = inlined_call_operand.hbm [shape: bf16[128,128], index: 7, kind: input, shape index: {}]
  %s8 = inlined_call_operand.vmem [shape: f32[1,128], index: 8, kind: input, shape index: {}]
  %s9 = inlined_call_operand.hbm [shape: f32[8,128], index: 9, kind: output, shape index: {}]
  %s10 = sld [smem:[#allocation0]]
  $region70: #{tpu_custom_call.1} parent=0
    _
  %s12 = ssub.s32 1, %s10
  %s13 = scalar_select 0, %s12, %s10
  $region1: #{tpu_custom_call.1} parent=0
    #allocation3 [shape = 'u8[32768]{0}', space=vmem, size = 0x8000, scoped, tag = 'input window, operand 0, single buffered']
    #allocation4 [shape = 's32[1]{0}', space=sflag, size = 0x4, scoped, tag = 'scoped memory for tpu_custom_call.1']
    #allocation5 [shape = 's32[1]{0}', space=sflag, size = 0x4, scoped, tag = 'scoped memory for tpu_custom_call.1']
    #allocation6 [shape = 'u8[32768]{0}', space=vmem, size = 0x8000, scoped, tag = 'input window, operand 1, single buffered']
    #allocation7 [shape = 's32[1]{0}', space=sflag, size = 0x4, scoped, tag = 'scoped memory for tpu_custom_call.1']
    #allocation8 [shape = 'u8[32768]{0}', space=vmem, size = 0x8000, scoped, tag = 'input window, operand 2, single buffered']
    #allocation9 [shape = 'u8[32768]{0}', space=vmem, size = 0x8000, scoped, tag = 'input window, operand 4, single buffered']
    #allocation10 [shape = 's32[1]{0}', space=sflag, size = 0x4, scoped, tag = 'scoped memory for tpu_custom_call.1']
    #allocation11 [shape = 'u8[32768]{0}', space=vmem, size = 0x8000, scoped, tag = 'input window, operand 5, single buffered']
    #allocation12 [shape = 'u8[32768]{0}', space=vmem, size = 0x8000, scoped, tag = 'input window, operand 7, single buffered']
    #allocation13 [shape = 's32[1]{0}', space=sflag, size = 0x4, scoped, tag = 'scoped memory for tpu_custom_call.1']
    #allocation14 [shape = 'u8[4096]{0}', space=vmem, size = 0x1000, scoped, tag = 'output window, operand 0, single buffered']
    %14 = vsyncpa [#allocation4], 0
    %15 = vsyncpa [#allocation7], 0
    %16 = vsyncpa [#allocation10], 0
    %17 = vsyncpa [#allocation13], 0
    %18 = vsyncpa [#allocation5], 0
    // Predicated region
    $region2: #{tpu_custom_call.1} parent=1 // pred_check
      _
    $region3: #{tpu_custom_call.1} parent=1 // pred_check_branch
      %20 = sbr.rel (0) target = $region5
    $region4: #{tpu_custom_call.1} parent=1 // pred_region
      %s22 = ssub.s32 1024, 1024
      %23 = vsyncadd [#allocation4], %s22
      %s24 = sshll.u32 [#allocation3], 4
      %s25 = int_to_ptr.vmem [resolvable:$true] %s24
      %30 = dma.hbm_to_vmem [thread:$0]  %s0, 1024, %s25, [#allocation4], 128, 128, 8
    $region5: #{tpu_custom_call.1} parent=1 // pred_fallthru
      _
    // Predicated region
    $region6: #{tpu_custom_call.1} parent=1 // pred_check
      _
    $region7: #{tpu_custom_call.1} parent=1 // pred_check_branch
      %32 = sbr.rel (0) target = $region9
    $region8: #{tpu_custom_call.1} parent=1 // pred_region
      %s34 = ssub.s32 1024, 1024
      %35 = vsyncadd [#allocation7], %s34
      %s36 = sshll.u32 [#allocation6], 4
      %s37 = int_to_ptr.vmem [resolvable:$true] %s36
      %42 = dma.hbm_to_vmem [thread:$0]  %s1, 1024, %s37, [#allocation7], 64, 64, 4
    $region9: #{tpu_custom_call.1} parent=1 // pred_fallthru
      _
    // Predicated region
    $region10: #{tpu_custom_call.1} parent=1 // pred_check
      _
    $region11: #{tpu_custom_call.1} parent=1 // pred_check_branch
      %44 = sbr.rel (0) target = $region13
    $region12: #{tpu_custom_call.1} parent=1 // pred_region
      %s46 = ssub.s32 1024, 1024
      %47 = vsyncadd [#allocation7], %s46
      %s48 = sshll.u32 [#allocation8], 4
      %s49 = int_to_ptr.vmem [resolvable:$true] %s48
      %54 = dma.hbm_to_vmem [thread:$0]  %s2, 1024, %s49, [#allocation7], 64, 64, 4
    $region13: #{tpu_custom_call.1} parent=1 // pred_fallthru
      _
    // Predicated region
    $region14: #{tpu_custom_call.1} parent=1 // pred_check
      _
    $region15: #{tpu_custom_call.1} parent=1 // pred_check_branch
      %56 = sbr.rel (0) target = $region17
    $region16: #{tpu_custom_call.1} parent=1 // pred_region
      _
    $region17: #{tpu_custom_call.1} parent=1 // pred_fallthru
      _
    // Predicated region
    $region18: #{tpu_custom_call.1} parent=1 // pred_check
      _
    $region19: #{tpu_custom_call.1} parent=1 // pred_check_branch
      %58 = sbr.rel (0) target = $region21
    $region20: #{tpu_custom_call.1} parent=1 // pred_region
      %s60 = ssub.s32 1024, 1024
      %61 = vsyncadd [#allocation10], %s60
      %s62 = sshll.u32 [#allocation9], 4
      %s63 = int_to_ptr.vmem [resolvable:$true] %s62
      %68 = dma.hbm_to_vmem [thread:$0]  %s4, 1024, %s63, [#allocation10], 64, 64, 4
    $region21: #{tpu_custom_call.1} parent=1 // pred_fallthru
      _
    // Predicated region
    $region22: #{tpu_custom_call.1} parent=1 // pred_check
      _
    $region23: #{tpu_custom_call.1} parent=1 // pred_check_branch
      %70 = sbr.rel (0) target = $region25
    $region24: #{tpu_custom_call.1} parent=1 // pred_region
      %s72 = ssub.s32 1024, 1024
      %73 = vsyncadd [#allocation10], %s72
      %s74 = sshll.u32 [#allocation11], 4
      %s75 = int_to_ptr.vmem [resolvable:$true] %s74
      %80 = dma.hbm_to_vmem [thread:$0]  %s5, 1024, %s75, [#allocation10], 64, 64, 4
    $region25: #{tpu_custom_call.1} parent=1 // pred_fallthru
      _
    // Predicated region
    $region26: #{tpu_custom_call.1} parent=1 // pred_check
      _
    $region27: #{tpu_custom_call.1} parent=1 // pred_check_branch
      %82 = sbr.rel (0) target = $region29
    $region28: #{tpu_custom_call.1} parent=1 // pred_region
      _
    $region29: #{tpu_custom_call.1} parent=1 // pred_fallthru
      _
    // Predicated region
    $region30: #{tpu_custom_call.1} parent=1 // pred_check
      _
    $region31: #{tpu_custom_call.1} parent=1 // pred_check_branch
      %84 = sbr.rel (0) target = $region33
    $region32: #{tpu_custom_call.1} parent=1 // pred_region
      %s86 = ssub.s32 1024, 1024
      %87 = vsyncadd [#allocation13], %s86
      %s88 = sshll.u32 [#allocation12], 4
      %s89 = int_to_ptr.vmem [resolvable:$true] %s88
      %94 = dma.hbm_to_vmem [thread:$0]  %s7, 1024, %s89, [#allocation13], 64, 64, 4
    $region33: #{tpu_custom_call.1} parent=1 // pred_fallthru
      _
    // Predicated region
    $region34: #{tpu_custom_call.1} parent=1 // pred_check
      _
    $region35: #{tpu_custom_call.1} parent=1 // pred_check_branch
      %96 = sbr.rel (0) target = $region37
    $region36: #{tpu_custom_call.1} parent=1 // pred_region
      _
    $region37: #{tpu_custom_call.1} parent=1 // pred_fallthru
      _
    // Predicated region
    $region38: #{tpu_custom_call.1} parent=1 // pred_check
      _
    $region39: #{tpu_custom_call.1} parent=1 // pred_check_branch
      %98 = sbr.rel (0) target = $region41
    $region40: #{tpu_custom_call.1} parent=1 // pred_region
      %99 = dma.done [#allocation4], 1024
    $region41: #{tpu_custom_call.1} parent=1 // pred_fallthru
      _
    // Predicated region
    $region42: #{tpu_custom_call.1} parent=1 // pred_check
      _
    $region43: #{tpu_custom_call.1} parent=1 // pred_check_branch
      %101 = sbr.rel (0) target = $region45
    $region44: #{tpu_custom_call.1} parent=1 // pred_region
      %102 = dma.done [#allocation7], 1024
    $region45: #{tpu_custom_call.1} parent=1 // pred_fallthru
      _
    // Predicated region
    $region46: #{tpu_custom_call.1} parent=1 // pred_check
      _
    $region47: #{tpu_custom_call.1} parent=1 // pred_check_branch
      %104 = sbr.rel (0) target = $region49
    $region48: #{tpu_custom_call.1} parent=1 // pred_region
      %105 = dma.done [#allocation7], 1024
    $region49: #{tpu_custom_call.1} parent=1 // pred_fallthru
      _
    // Predicated region
    $region50: #{tpu_custom_call.1} parent=1 // pred_check
      _
    $region51: #{tpu_custom_call.1} parent=1 // pred_check_branch
      %107 = sbr.rel (0) target = $region53
    $region52: #{tpu_custom_call.1} parent=1 // pred_region
      %108 = dma.done [#allocation10], 1024
    $region53: #{tpu_custom_call.1} parent=1 // pred_fallthru
      _
    // Predicated region
    $region54: #{tpu_custom_call.1} parent=1 // pred_check
      _
    $region55: #{tpu_custom_call.1} parent=1 // pred_check_branch
      %110 = sbr.rel (0) target = $region57
    $region56: #{tpu_custom_call.1} parent=1 // pred_region
      %111 = dma.done [#allocation10], 1024
    $region57: #{tpu_custom_call.1} parent=1 // pred_fallthru
      _
    // Predicated region
    $region58: #{tpu_custom_call.1} parent=1 // pred_check
      _
    $region59: #{tpu_custom_call.1} parent=1 // pred_check_branch
      %113 = sbr.rel (0) target = $region61
    $region60: #{tpu_custom_call.1} parent=1 // pred_region
      %114 = dma.done [#allocation13], 1024
    $region61: #{tpu_custom_call.1} parent=1 // pred_fallthru
      _
    %v116 = vld [vmem:[#allocation6] sm:$0xf]
    %v117 = vld [vmem:[#allocation6 + $0x4] sm:$0xf]
    %v118 = vld [vmem:[#allocation6 + $0x8] sm:$0xf]
    %v119 = vld [vmem:[#allocation6 + $0xc] sm:$0xf]
    %v120 = vld [vmem:[#allocation6 + $0x10] sm:$0xf]
    %v121 = vld [vmem:[#allocation6 + $0x14] sm:$0xf]
    %v122 = vld [vmem:[#allocation6 + $0x18] sm:$0xf]
    %v123 = vld [vmem:[#allocation6 + $0x1c] sm:$0xf]
    %v124 = vld [vmem:[#allocation6 + $0x20] sm:$0xf]
    %v125 = vld [vmem:[#allocation6 + $0x24] sm:$0xf]
    %v126 = vld [vmem:[#allocation6 + $0x28] sm:$0xf]
    %v127 = vld [vmem:[#allocation6 + $0x2c] sm:$0xf]
    %v128 = vld [vmem:[#allocation6 + $0x30] sm:$0xf]
    %v129 = vld [vmem:[#allocation6 + $0x34] sm:$0xf]
    %v130 = vld [vmem:[#allocation6 + $0x38] sm:$0xf]
    %v131 = vld [vmem:[#allocation6 + $0x3c] sm:$0xf]
    %v132 = vld [vmem:[#allocation8] sm:$0xf]
    %v133 = vld [vmem:[#allocation8 + $0x4] sm:$0xf]
    %v134 = vld [vmem:[#allocation8 + $0x8] sm:$0xf]
    %v135 = vld [vmem:[#allocation8 + $0xc] sm:$0xf]
    %v136 = vld [vmem:[#allocation8 + $0x10] sm:$0xf]
    %v137 = vld [vmem:[#allocation8 + $0x14] sm:$0xf]
    %v138 = vld [vmem:[#allocation8 + $0x18] sm:$0xf]
    %v139 = vld [vmem:[#allocation8 + $0x1c] sm:$0xf]
    %v140 = vld [vmem:[#allocation8 + $0x20] sm:$0xf]
    %v141 = vld [vmem:[#allocation8 + $0x24] sm:$0xf]
    %v142 = vld [vmem:[#allocation8 + $0x28] sm:$0xf]
    %v143 = vld [vmem:[#allocation8 + $0x2c] sm:$0xf]
    %v144 = vld [vmem:[#allocation8 + $0x30] sm:$0xf]
    %v145 = vld [vmem:[#allocation8 + $0x34] sm:$0xf]
    %v146 = vld [vmem:[#allocation8 + $0x38] sm:$0xf]
    %v147 = vld [vmem:[#allocation8 + $0x3c] sm:$0xf]
    %v148 = vld [vmem:[%s3] sm:$0x1]
    %v149 = vld [vmem:[#allocation3] sm:$0xff]
    %v150 = vld [vmem:[#allocation3 + $0x8] sm:$0xff]
    %v151 = vld [vmem:[#allocation3 + $0x10] sm:$0xff]
    %v152 = vld [vmem:[#allocation3 + $0x18] sm:$0xff]
    %v153 = vld [vmem:[#allocation3 + $0x20] sm:$0xff]
    %v154 = vld [vmem:[#allocation3 + $0x28] sm:$0xff]
    %v155 = vld [vmem:[#allocation3 + $0x30] sm:$0xff]
    %v156 = vld [vmem:[#allocation3 + $0x38] sm:$0xff]
    %v157 = vpack.c.bf16 %v150, %v149
    %v158 = vpack.c.bf16 %v152, %v151
    %v159 = vpack.c.bf16 %v154, %v153
    %v160 = vpack.c.bf16 %v156, %v155
    %v162 = vlaneseq
    %v163 = vshrl.u32 %v162, 7
    %v164 = vsub.s32 0, %v163
    %v165 = vrot.slane %v148, %v164
    %v183 = vunpack.c.l.b16 %v116
    %v184 = vunpack.c.l.b16 %v117
    %v185 = vunpack.c.l.b16 %v118
    %v186 = vunpack.c.l.b16 %v119
    %v187 = vunpack.c.l.b16 %v120
    %v188 = vunpack.c.l.b16 %v121
    %v189 = vunpack.c.l.b16 %v122
    %v190 = vunpack.c.l.b16 %v123
    %v191 = vunpack.c.l.b16 %v124
    %v192 = vunpack.c.l.b16 %v125
    %v193 = vunpack.c.l.b16 %v126
    %v194 = vunpack.c.l.b16 %v127
    %v195 = vunpack.c.l.b16 %v128
    %v196 = vunpack.c.l.b16 %v129
    %v197 = vunpack.c.l.b16 %v130
    %v198 = vunpack.c.l.b16 %v131
    %v199 = vpack.c.b16 %v184, %v183
    %v200 = vpack.c.b16 %v186, %v185
    %v201 = vpack.c.b16 %v188, %v187
    %v202 = vpack.c.b16 %v190, %v189
    %v203 = vpack.c.b16 %v192, %v191
    %v204 = vpack.c.b16 %v194, %v193
    %v205 = vpack.c.b16 %v196, %v195
    %v206 = vpack.c.b16 %v198, %v197
    %215 = vmatprep.subr.bf16.mxu0 0
    %216 = vmatpush1.bf16.msra.mxu0 %v199
    %217 = vmatprep.subr.bf16.mxu0 0
    %218 = vmatpush1.bf16.msra.mxu0 %v200
    %219 = vmatprep.subr.bf16.mxu0 0
    %220 = vmatpush1.bf16.msra.mxu0 %v201
    %221 = vmatprep.subr.bf16.mxu0 0
    %222 = vmatpush1.bf16.msra.mxu0 %v202
    %223 = vmatprep.subr.bf16.mxu0 0
    %224 = vmatpush1.bf16.msra.mxu0 %v203
    %225 = vmatprep.subr.bf16.mxu0 0
    %226 = vmatpush1.bf16.msra.mxu0 %v204
    %227 = vmatprep.subr.bf16.mxu0 0
    %228 = vmatpush1.bf16.msra.mxu0 %v205
    %229 = vmatprep.subr.bf16.mxu0 0
    %230 = vmatpush1.bf16.msra.mxu0 %v206
    %231 = vmatprep.subr.bf16.mxu0 0
    %232 = vmatpush1.bf16.msra.mxu0 0
    %233 = vmatprep.subr.bf16.mxu0 0
    %234 = vmatpush1.bf16.msra.mxu0 0
    %235 = vmatprep.subr.bf16.mxu0 0
    %236 = vmatpush1.bf16.msra.mxu0 0
    %237 = vmatprep.subr.bf16.mxu0 0
    %238 = vmatpush1.bf16.msra.mxu0 0
    %239 = vmatprep.subr.bf16.mxu0 0
    %240 = vmatpush1.bf16.msra.mxu0 0
    %241 = vmatprep.subr.bf16.mxu0 0
    %242 = vmatpush1.bf16.msra.mxu0 0
    %243 = vmatprep.subr.bf16.mxu0 0
    %244 = vmatpush1.bf16.msra.mxu0 0
    %245 = vmatprep.subr.bf16.mxu0 0
    %246 = vmatpush1.bf16.msra.mxu0 0
    %247 = vmatprep.mubr.bf16.mxu0 0
    %248 = vmatmul.mubr.bf16.gmra.mrb[0].mxu0 %v157
    %v249 = vpop.f32.mrb[0].mxu0
    %v250 = vadd.f32 %v165, %v249
    %v251 = vpop.f32.mrb[0].mxu0
    %v252 = vpop.f32.mrb[0].mxu0
    %v253 = vadd.f32 %v165, %v252
    %v254 = vpop.f32.mrb[0].mxu0
    %255 = vmatprep.mubr.bf16.mxu0 0
    %256 = vmatmul.mubr.bf16.gmra.mrb[0].mxu0 %v158
    %v257 = vpop.f32.mrb[0].mxu0
    %v258 = vadd.f32 %v165, %v257
    %v259 = vpop.f32.mrb[0].mxu0
    %v260 = vpop.f32.mrb[0].mxu0
    %v261 = vadd.f32 %v165, %v260
    %v262 = vpop.f32.mrb[0].mxu0
    %263 = vmatprep.mubr.bf16.mxu0 0
    %264 = vmatmul.mubr.bf16.gmra.mrb[0].mxu0 %v159
    %v265 = vpop.f32.mrb[0].mxu0
    %v266 = vadd.f32 %v165, %v265
    %v267 = vpop.f32.mrb[0].mxu0
    %v268 = vpop.f32.mrb[0].mxu0
    %v269 = vadd.f32 %v165, %v268
    %v270 = vpop.f32.mrb[0].mxu0
    %271 = vmatprep.mubr.bf16.mxu0 0
    %272 = vmatmul.mubr.bf16.gmra.mrb[0].mxu0 %v160
    %v273 = vpop.f32.mrb[0].mxu0
    %v274 = vadd.f32 %v165, %v273
    %v275 = vpop.f32.mrb[0].mxu0
    %v276 = vpop.f32.mrb[0].mxu0
    %v277 = vadd.f32 %v165, %v276
    %v278 = vpop.f32.mrb[0].mxu0
    %279 = vdwg.mxu0
    %280 = vst [vmem:[#allocation2] sm:$0xff] %v250
    %281 = vst [vmem:[#allocation2 + $0x8] sm:$0xff] %v253
    %282 = vst [vmem:[#allocation2 + $0x10] sm:$0xff] %v258
    %283 = vst [vmem:[#allocation2 + $0x18] sm:$0xff] %v261
    %284 = vst [vmem:[#allocation2 + $0x20] sm:$0xff] %v266
    %285 = vst [vmem:[#allocation2 + $0x28] sm:$0xff] %v269
    %286 = vst [vmem:[#allocation2 + $0x30] sm:$0xff] %v274
    %287 = vst [vmem:[#allocation2 + $0x38] sm:$0xff] %v277
    %v288 = vld [vmem:[#allocation2] sm:$0xff]
    %v289 = vmax.f32 %v288, 0.0
    %290 = vst [vmem:[#allocation2] sm:$0xff] %v289
    %s291 = scalar_lea.vmem [#allocation2], 8
    %v292 = vld [vmem:[%s291] sm:$0xff]
    %v293 = vpack.c.bf16 %v289, %v289
    %v310 = vunpack.c.l.b16 %v132
    %v311 = vunpack.c.l.b16 %v133
    %v312 = vunpack.c.l.b16 %v134
    %v313 = vunpack.c.l.b16 %v135
    %v314 = vunpack.c.l.b16 %v136
    %v315 = vunpack.c.l.b16 %v137
    %v316 = vunpack.c.l.b16 %v138
    %v317 = vunpack.c.l.b16 %v139
    %v318 = vunpack.c.l.b16 %v140
    %v319 = vunpack.c.l.b16 %v141
    %v320 = vunpack.c.l.b16 %v142
    %v321 = vunpack.c.l.b16 %v143
    %v322 = vunpack.c.l.b16 %v144
    %v323 = vunpack.c.l.b16 %v145
    %v324 = vunpack.c.l.b16 %v146
    %v325 = vunpack.c.l.b16 %v147
    %v326 = vpack.c.b16 %v311, %v310
    %v327 = vpack.c.b16 %v313, %v312
    %v328 = vpack.c.b16 %v315, %v314
    %v329 = vpack.c.b16 %v317, %v316
    %v330 = vpack.c.b16 %v319, %v318
    %v331 = vpack.c.b16 %v321, %v320
    %v332 = vpack.c.b16 %v323, %v322
    %v333 = vpack.c.b16 %v325, %v324
    %342 = vmatprep.subr.bf16.mxu0 0
    %343 = vmatpush1.bf16.msra.mxu0 %v326
    %344 = vmatprep.subr.bf16.mxu0 0
    %345 = vmatpush1.bf16.msra.mxu0 %v327
    %346 = vmatprep.subr.bf16.mxu0 0
    %347 = vmatpush1.bf16.msra.mxu0 %v328
    %348 = vmatprep.subr.bf16.mxu0 0
    %349 = vmatpush1.bf16.msra.mxu0 %v329
    %350 = vmatprep.subr.bf16.mxu0 0
    %351 = vmatpush1.bf16.msra.mxu0 %v330
    %352 = vmatprep.subr.bf16.mxu0 0
    %353 = vmatpush1.bf16.msra.mxu0 %v331
    %354 = vmatprep.subr.bf16.mxu0 0
    %355 = vmatpush1.bf16.msra.mxu0 %v332
    %356 = vmatprep.subr.bf16.mxu0 0
    %357 = vmatpush1.bf16.msra.mxu0 %v333
    %358 = vmatprep.subr.bf16.mxu0 0
    %359 = vmatpush1.bf16.msra.mxu0 0
    %360 = vmatprep.subr.bf16.mxu0 0
    %361 = vmatpush1.bf16.msra.mxu0 0
    %362 = vmatprep.subr.bf16.mxu0 0
    %363 = vmatpush1.bf16.msra.mxu0 0
    %364 = vmatprep.subr.bf16.mxu0 0
    %365 = vmatpush1.bf16.msra.mxu0 0
    %366 = vmatprep.subr.bf16.mxu0 0
    %367 = vmatpush1.bf16.msra.mxu0 0
    %368 = vmatprep.subr.bf16.mxu0 0
    %369 = vmatpush1.bf16.msra.mxu0 0
    %370 = vmatprep.subr.bf16.mxu0 0
    %371 = vmatpush1.bf16.msra.mxu0 0
    %372 = vmatprep.subr.bf16.mxu0 0
    %373 = vmatpush1.bf16.msra.mxu0 0
    %374 = vmatprep.mubr.bf16.mxu0 0
    %375 = vmatmul.mubr.bf16.gmra.mrb[0].mxu0 %v293
    %v376 = vpop.f32.mrb[0].mxu0
    %v377 = vadd.f32 0.0, %v376
    %v378 = vpop.f32.mrb[0].mxu0
    %v379 = vpop.f32.mrb[0].mxu0
    %v380 = vpop.f32.mrb[0].mxu0
    %381 = vdwg.mxu0
    %v382 = vadd.f32 %v292, %v377
    %v383 = vmax.f32 %v382, 0.0
    %384 = vst [vmem:[%s291] sm:$0xff] %v383
    %s385 = scalar_lea.vmem [#allocation2], 16
    %v386 = vld [vmem:[%s385] sm:$0xff]
    %v387 = vpack.c.bf16 %v383, %v383
    %388 = vmatprep.subr.bf16.mxu0 0
    %389 = vmatpush1.bf16.msra.mxu0 %v326
    %390 = vmatprep.subr.bf16.mxu0 0
    %391 = vmatpush1.bf16.msra.mxu0 %v327
    %392 = vmatprep.subr.bf16.mxu0 0
    %393 = vmatpush1.bf16.msra.mxu0 %v328
    %394 = vmatprep.subr.bf16.mxu0 0
    %395 = vmatpush1.bf16.msra.mxu0 %v329
    %396 = vmatprep.subr.bf16.mxu0 0
    %397 = vmatpush1.bf16.msra.mxu0 %v330
    %398 = vmatprep.subr.bf16.mxu0 0
    %399 = vmatpush1.bf16.msra.mxu0 %v331
    %400 = vmatprep.subr.bf16.mxu0 0
    %401 = vmatpush1.bf16.msra.mxu0 %v332
    %402 = vmatprep.subr.bf16.mxu0 0
    %403 = vmatpush1.bf16.msra.mxu0 %v333
    %404 = vmatprep.subr.bf16.mxu0 0
    %405 = vmatpush1.bf16.msra.mxu0 0
    %406 = vmatprep.subr.bf16.mxu0 0
    %407 = vmatpush1.bf16.msra.mxu0 0
    %408 = vmatprep.subr.bf16.mxu0 0
    %409 = vmatpush1.bf16.msra.mxu0 0
    %410 = vmatprep.subr.bf16.mxu0 0
    %411 = vmatpush1.bf16.msra.mxu0 0
    %412 = vmatprep.subr.bf16.mxu0 0
    %413 = vmatpush1.bf16.msra.mxu0 0
    %414 = vmatprep.subr.bf16.mxu0 0
    %415 = vmatpush1.bf16.msra.mxu0 0
    %416 = vmatprep.subr.bf16.mxu0 0
    %417 = vmatpush1.bf16.msra.mxu0 0
    %418 = vmatprep.subr.bf16.mxu0 0
    %419 = vmatpush1.bf16.msra.mxu0 0
    %420 = vmatprep.mubr.bf16.mxu0 0
    %421 = vmatmul.mubr.bf16.gmra.mrb[0].mxu0 %v387
    %v422 = vpop.f32.mrb[0].mxu0
    %v423 = vadd.f32 0.0, %v422
    %v424 = vpop.f32.mrb[0].mxu0
    %v425 = vpop.f32.mrb[0].mxu0
    %v426 = vpop.f32.mrb[0].mxu0
    %427 = vdwg.mxu0
    %v428 = vadd.f32 %v386, %v423
    %v429 = vmax.f32 %v428, 0.0
    %430 = vst [vmem:[%s385] sm:$0xff] %v429
    %s431 = scalar_lea.vmem [#allocation2], 24
    %v432 = vld [vmem:[%s431] sm:$0xff]
    %v433 = vpack.c.bf16 %v429, %v429
    %434 = vmatprep.subr.bf16.mxu0 0
    %435 = vmatpush1.bf16.msra.mxu0 %v326
    %436 = vmatprep.subr.bf16.mxu0 0
    %437 = vmatpush1.bf16.msra.mxu0 %v327
    %438 = vmatprep.subr.bf16.mxu0 0
    %439 = vmatpush1.bf16.msra.mxu0 %v328
    %440 = vmatprep.subr.bf16.mxu0 0
    %441 = vmatpush1.bf16.msra.mxu0 %v329
    %442 = vmatprep.subr.bf16.mxu0 0
    %443 = vmatpush1.bf16.msra.mxu0 %v330
    %444 = vmatprep.subr.bf16.mxu0 0
    %445 = vmatpush1.bf16.msra.mxu0 %v331
    %446 = vmatprep.subr.bf16.mxu0 0
    %447 = vmatpush1.bf16.msra.mxu0 %v332
    %448 = vmatprep.subr.bf16.mxu0 0
    %449 = vmatpush1.bf16.msra.mxu0 %v333
    %450 = vmatprep.subr.bf16.mxu0 0
    %451 = vmatpush1.bf16.msra.mxu0 0
    %452 = vmatprep.subr.bf16.mxu0 0
    %453 = vmatpush1.bf16.msra.mxu0 0
    %454 = vmatprep.subr.bf16.mxu0 0
    %455 = vmatpush1.bf16.msra.mxu0 0
    %456 = vmatprep.subr.bf16.mxu0 0
    %457 = vmatpush1.bf16.msra.mxu0 0
    %458 = vmatprep.subr.bf16.mxu0 0
    %459 = vmatpush1.bf16.msra.mxu0 0
    %460 = vmatprep.subr.bf16.mxu0 0
    %461 = vmatpush1.bf16.msra.mxu0 0
    %462 = vmatprep.subr.bf16.mxu0 0
    %463 = vmatpush1.bf16.msra.mxu0 0
    %464 = vmatprep.subr.bf16.mxu0 0
    %465 = vmatpush1.bf16.msra.mxu0 0
    %466 = vmatprep.mubr.bf16.mxu0 0
    %467 = vmatmul.mubr.bf16.gmra.mrb[0].mxu0 %v433
    %v468 = vpop.f32.mrb[0].mxu0
    %v469 = vadd.f32 0.0, %v468
    %v470 = vpop.f32.mrb[0].mxu0
    %v471 = vpop.f32.mrb[0].mxu0
    %v472 = vpop.f32.mrb[0].mxu0
    %473 = vdwg.mxu0
    %v474 = vadd.f32 %v432, %v469
    %v475 = vmax.f32 %v474, 0.0
    %476 = vst [vmem:[%s431] sm:$0xff] %v475
    %s477 = scalar_lea.vmem [#allocation2], 32
    %v478 = vld [vmem:[%s477] sm:$0xff]
    %v479 = vpack.c.bf16 %v475, %v475
    %480 = vmatprep.subr.bf16.mxu0 0
    %481 = vmatpush1.bf16.msra.mxu0 %v326
    %482 = vmatprep.subr.bf16.mxu0 0
    %483 = vmatpush1.bf16.msra.mxu0 %v327
    %484 = vmatprep.subr.bf16.mxu0 0
    %485 = vmatpush1.bf16.msra.mxu0 %v328
    %486 = vmatprep.subr.bf16.mxu0 0
    %487 = vmatpush1.bf16.msra.mxu0 %v329
    %488 = vmatprep.subr.bf16.mxu0 0
    %489 = vmatpush1.bf16.msra.mxu0 %v330
    %490 = vmatprep.subr.bf16.mxu0 0
    %491 = vmatpush1.bf16.msra.mxu0 %v331
    %492 = vmatprep.subr.bf16.mxu0 0
    %493 = vmatpush1.bf16.msra.mxu0 %v332
    %494 = vmatprep.subr.bf16.mxu0 0
    %495 = vmatpush1.bf16.msra.mxu0 %v333
    %496 = vmatprep.subr.bf16.mxu0 0
    %497 = vmatpush1.bf16.msra.mxu0 0
    %498 = vmatprep.subr.bf16.mxu0 0
    %499 = vmatpush1.bf16.msra.mxu0 0
    %500 = vmatprep.subr.bf16.mxu0 0
    %501 = vmatpush1.bf16.msra.mxu0 0
    %502 = vmatprep.subr.bf16.mxu0 0
    %503 = vmatpush1.bf16.msra.mxu0 0
    %504 = vmatprep.subr.bf16.mxu0 0
    %505 = vmatpush1.bf16.msra.mxu0 0
    %506 = vmatprep.subr.bf16.mxu0 0
    %507 = vmatpush1.bf16.msra.mxu0 0
    %508 = vmatprep.subr.bf16.mxu0 0
    %509 = vmatpush1.bf16.msra.mxu0 0
    %510 = vmatprep.subr.bf16.mxu0 0
    %511 = vmatpush1.bf16.msra.mxu0 0
    %512 = vmatprep.mubr.bf16.mxu0 0
    %513 = vmatmul.mubr.bf16.gmra.mrb[0].mxu0 %v479
    %v514 = vpop.f32.mrb[0].mxu0
    %v515 = vadd.f32 0.0, %v514
    %v516 = vpop.f32.mrb[0].mxu0
    %v517 = vpop.f32.mrb[0].mxu0
    %v518 = vpop.f32.mrb[0].mxu0
    %519 = vdwg.mxu0
    %v520 = vadd.f32 %v478, %v515
    %v521 = vmax.f32 %v520, 0.0
    %522 = vst [vmem:[%s477] sm:$0xff] %v521
    %s523 = scalar_lea.vmem [#allocation2], 40
    %v524 = vld [vmem:[%s523] sm:$0xff]
    %v525 = vpack.c.bf16 %v521, %v521
    %526 = vmatprep.subr.bf16.mxu0 0
    %527 = vmatpush1.bf16.msra.mxu0 %v326
    %528 = vmatprep.subr.bf16.mxu0 0
    %529 = vmatpush1.bf16.msra.mxu0 %v327
    %530 = vmatprep.subr.bf16.mxu0 0
    %531 = vmatpush1.bf16.msra.mxu0 %v328
    %532 = vmatprep.subr.bf16.mxu0 0
    %533 = vmatpush1.bf16.msra.mxu0 %v329
    %534 = vmatprep.subr.bf16.mxu0 0
    %535 = vmatpush1.bf16.msra.mxu0 %v330
    %536 = vmatprep.subr.bf16.mxu0 0
    %537 = vmatpush1.bf16.msra.mxu0 %v331
    %538 = vmatprep.subr.bf16.mxu0 0
    %539 = vmatpush1.bf16.msra.mxu0 %v332
    %540 = vmatprep.subr.bf16.mxu0 0
    %541 = vmatpush1.bf16.msra.mxu0 %v333
    %542 = vmatprep.subr.bf16.mxu0 0
    %543 = vmatpush1.bf16.msra.mxu0 0
    %544 = vmatprep.subr.bf16.mxu0 0
    %545 = vmatpush1.bf16.msra.mxu0 0
    %546 = vmatprep.subr.bf16.mxu0 0
    %547 = vmatpush1.bf16.msra.mxu0 0
    %548 = vmatprep.subr.bf16.mxu0 0
    %549 = vmatpush1.bf16.msra.mxu0 0
    %550 = vmatprep.subr.bf16.mxu0 0
    %551 = vmatpush1.bf16.msra.mxu0 0
    %552 = vmatprep.subr.bf16.mxu0 0
    %553 = vmatpush1.bf16.msra.mxu0 0
    %554 = vmatprep.subr.bf16.mxu0 0
    %555 = vmatpush1.bf16.msra.mxu0 0
    %556 = vmatprep.subr.bf16.mxu0 0
    %557 = vmatpush1.bf16.msra.mxu0 0
    %558 = vmatprep.mubr.bf16.mxu0 0
    %559 = vmatmul.mubr.bf16.gmra.mrb[0].mxu0 %v525
    %v560 = vpop.f32.mrb[0].mxu0
    %v561 = vadd.f32 0.0, %v560
    %v562 = vpop.f32.mrb[0].mxu0
    %v563 = vpop.f32.mrb[0].mxu0
    %v564 = vpop.f32.mrb[0].mxu0
    %565 = vdwg.mxu0
    %v566 = vadd.f32 %v524, %v561
    %v567 = vmax.f32 %v566, 0.0
    %568 = vst [vmem:[%s523] sm:$0xff] %v567
    %s569 = scalar_lea.vmem [#allocation2], 48
    %v570 = vld [vmem:[%s569] sm:$0xff]
    %v571 = vpack.c.bf16 %v567, %v567
    %572 = vmatprep.subr.bf16.mxu0 0
    %573 = vmatpush1.bf16.msra.mxu0 %v326
    %574 = vmatprep.subr.bf16.mxu0 0
    %575 = vmatpush1.bf16.msra.mxu0 %v327
    %576 = vmatprep.subr.bf16.mxu0 0
    %577 = vmatpush1.bf16.msra.mxu0 %v328
    %578 = vmatprep.subr.bf16.mxu0 0
    %579 = vmatpush1.bf16.msra.mxu0 %v329
    %580 = vmatprep.subr.bf16.mxu0 0
    %581 = vmatpush1.bf16.msra.mxu0 %v330
    %582 = vmatprep.subr.bf16.mxu0 0
    %583 = vmatpush1.bf16.msra.mxu0 %v331
    %584 = vmatprep.subr.bf16.mxu0 0
    %585 = vmatpush1.bf16.msra.mxu0 %v332
    %586 = vmatprep.subr.bf16.mxu0 0
    %587 = vmatpush1.bf16.msra.mxu0 %v333
    %588 = vmatprep.subr.bf16.mxu0 0
    %589 = vmatpush1.bf16.msra.mxu0 0
    %590 = vmatprep.subr.bf16.mxu0 0
    %591 = vmatpush1.bf16.msra.mxu0 0
    %592 = vmatprep.subr.bf16.mxu0 0
    %593 = vmatpush1.bf16.msra.mxu0 0
    %594 = vmatprep.subr.bf16.mxu0 0
    %595 = vmatpush1.bf16.msra.mxu0 0
    %596 = vmatprep.subr.bf16.mxu0 0
    %597 = vmatpush1.bf16.msra.mxu0 0
    %598 = vmatprep.subr.bf16.mxu0 0
    %599 = vmatpush1.bf16.msra.mxu0 0
    %600 = vmatprep.subr.bf16.mxu0 0
    %601 = vmatpush1.bf16.msra.mxu0 0
    %602 = vmatprep.subr.bf16.mxu0 0
    %603 = vmatpush1.bf16.msra.mxu0 0
    %604 = vmatprep.mubr.bf16.mxu0 0
    %605 = vmatmul.mubr.bf16.gmra.mrb[0].mxu0 %v571
    %v606 = vpop.f32.mrb[0].mxu0
    %v607 = vadd.f32 0.0, %v606
    %v608 = vpop.f32.mrb[0].mxu0
    %v609 = vpop.f32.mrb[0].mxu0
    %v610 = vpop.f32.mrb[0].mxu0
    %611 = vdwg.mxu0
    %v612 = vadd.f32 %v570, %v607
    %v613 = vmax.f32 %v612, 0.0
    %614 = vst [vmem:[%s569] sm:$0xff] %v613
    %s615 = scalar_lea.vmem [#allocation2], 56
    %v616 = vld [vmem:[%s615] sm:$0xff]
    %v617 = vpack.c.bf16 %v613, %v613
    %618 = vmatprep.subr.bf16.mxu0 0
    %619 = vmatpush1.bf16.msra.mxu0 %v326
    %620 = vmatprep.subr.bf16.mxu0 0
    %621 = vmatpush1.bf16.msra.mxu0 %v327
    %622 = vmatprep.subr.bf16.mxu0 0
    %623 = vmatpush1.bf16.msra.mxu0 %v328
    %624 = vmatprep.subr.bf16.mxu0 0
    %625 = vmatpush1.bf16.msra.mxu0 %v329
    %626 = vmatprep.subr.bf16.mxu0 0
    %627 = vmatpush1.bf16.msra.mxu0 %v330
    %628 = vmatprep.subr.bf16.mxu0 0
    %629 = vmatpush1.bf16.msra.mxu0 %v331
    %630 = vmatprep.subr.bf16.mxu0 0
    %631 = vmatpush1.bf16.msra.mxu0 %v332
    %632 = vmatprep.subr.bf16.mxu0 0
    %633 = vmatpush1.bf16.msra.mxu0 %v333
    %634 = vmatprep.subr.bf16.mxu0 0
    %635 = vmatpush1.bf16.msra.mxu0 0
    %636 = vmatprep.subr.bf16.mxu0 0
    %637 = vmatpush1.bf16.msra.mxu0 0
    %638 = vmatprep.subr.bf16.mxu0 0
    %639 = vmatpush1.bf16.msra.mxu0 0
    %640 = vmatprep.subr.bf16.mxu0 0
    %641 = vmatpush1.bf16.msra.mxu0 0
    %642 = vmatprep.subr.bf16.mxu0 0
    %643 = vmatpush1.bf16.msra.mxu0 0
    %644 = vmatprep.subr.bf16.mxu0 0
    %645 = vmatpush1.bf16.msra.mxu0 0
    %646 = vmatprep.subr.bf16.mxu0 0
    %647 = vmatpush1.bf16.msra.mxu0 0
    %648 = vmatprep.subr.bf16.mxu0 0
    %649 = vmatpush1.bf16.msra.mxu0 0
    %650 = vmatprep.mubr.bf16.mxu0 0
    %651 = vmatmul.mubr.bf16.gmra.mrb[0].mxu0 %v617
    %v652 = vpop.f32.mrb[0].mxu0
    %v653 = vadd.f32 0.0, %v652
    %v654 = vpop.f32.mrb[0].mxu0
    %v655 = vpop.f32.mrb[0].mxu0
    %v656 = vpop.f32.mrb[0].mxu0
    %657 = vdwg.mxu0
    %v658 = vadd.f32 %v616, %v653
    %v659 = vmax.f32 %v658, 0.0
    %660 = vst [vmem:[%s615] sm:$0xff] %v659
    %v661 = vld [vmem:[#allocation9] sm:$0xf]
    %v662 = vld [vmem:[#allocation9 + $0x4] sm:$0xf]
    %v663 = vld [vmem:[#allocation9 + $0x8] sm:$0xf]
    %v664 = vld [vmem:[#allocation9 + $0xc] sm:$0xf]
    %v665 = vld [vmem:[#allocation9 + $0x10] sm:$0xf]
    %v666 = vld [vmem:[#allocation9 + $0x14] sm:$0xf]
    %v667 = vld [vmem:[#allocation9 + $0x18] sm:$0xf]
    %v668 = vld [vmem:[#allocation9 + $0x1c] sm:$0xf]
    %v669 = vld [vmem:[#allocation9 + $0x20] sm:$0xf]
    %v670 = vld [vmem:[#allocation9 + $0x24] sm:$0xf]
    %v671 = vld [vmem:[#allocation9 + $0x28] sm:$0xf]
    %v672 = vld [vmem:[#allocation9 + $0x2c] sm:$0xf]
    %v673 = vld [vmem:[#allocation9 + $0x30] sm:$0xf]
    %v674 = vld [vmem:[#allocation9 + $0x34] sm:$0xf]
    %v675 = vld [vmem:[#allocation9 + $0x38] sm:$0xf]
    %v676 = vld [vmem:[#allocation9 + $0x3c] sm:$0xf]
    %v677 = vld [vmem:[#allocation11] sm:$0xf]
    %v678 = vld [vmem:[#allocation11 + $0x4] sm:$0xf]
    %v679 = vld [vmem:[#allocation11 + $0x8] sm:$0xf]
    %v680 = vld [vmem:[#allocation11 + $0xc] sm:$0xf]
    %v681 = vld [vmem:[#allocation11 + $0x10] sm:$0xf]
    %v682 = vld [vmem:[#allocation11 + $0x14] sm:$0xf]
    %v683 = vld [vmem:[#allocation11 + $0x18] sm:$0xf]
    %v684 = vld [vmem:[#allocation11 + $0x1c] sm:$0xf]
    %v685 = vld [vmem:[#allocation11 + $0x20] sm:$0xf]
    %v686 = vld [vmem:[#allocation11 + $0x24] sm:$0xf]
    %v687 = vld [vmem:[#allocation11 + $0x28] sm:$0xf]
    %v688 = vld [vmem:[#allocation11 + $0x2c] sm:$0xf]
    %v689 = vld [vmem:[#allocation11 + $0x30] sm:$0xf]
    %v690 = vld [vmem:[#allocation11 + $0x34] sm:$0xf]
    %v691 = vld [vmem:[#allocation11 + $0x38] sm:$0xf]
    %v692 = vld [vmem:[#allocation11 + $0x3c] sm:$0xf]
    %v693 = vld [vmem:[%s6] sm:$0x1]
    %v694 = vld [vmem:[#allocation2] sm:$0xff]
    %v695 = vld [vmem:[#allocation2 + $0x8] sm:$0xff]
    %v696 = vld [vmem:[#allocation2 + $0x10] sm:$0xff]
    %v697 = vld [vmem:[#allocation2 + $0x18] sm:$0xff]
    %v698 = vld [vmem:[#allocation2 + $0x20] sm:$0xff]
    %v699 = vld [vmem:[#allocation2 + $0x28] sm:$0xff]
    %v700 = vld [vmem:[#allocation2 + $0x30] sm:$0xff]
    %v701 = vld [vmem:[#allocation2 + $0x38] sm:$0xff]
    %v702 = vpack.c.bf16 %v695, %v694
    %v703 = vpack.c.bf16 %v697, %v696
    %v704 = vpack.c.bf16 %v699, %v698
    %v705 = vpack.c.bf16 %v701, %v700
    %v707 = vlaneseq
    %v708 = vshrl.u32 %v707, 7
    %v709 = vsub.s32 0, %v708
    %v710 = vrot.slane %v693, %v709
    %v728 = vunpack.c.l.b16 %v661
    %v729 = vunpack.c.l.b16 %v662
    %v730 = vunpack.c.l.b16 %v663
    %v731 = vunpack.c.l.b16 %v664
    %v732 = vunpack.c.l.b16 %v665
    %v733 = vunpack.c.l.b16 %v666
    %v734 = vunpack.c.l.b16 %v667
    %v735 = vunpack.c.l.b16 %v668
    %v736 = vunpack.c.l.b16 %v669
    %v737 = vunpack.c.l.b16 %v670
    %v738 = vunpack.c.l.b16 %v671
    %v739 = vunpack.c.l.b16 %v672
    %v740 = vunpack.c.l.b16 %v673
    %v741 = vunpack.c.l.b16 %v674
    %v742 = vunpack.c.l.b16 %v675
    %v743 = vunpack.c.l.b16 %v676
    %v744 = vpack.c.b16 %v729, %v728
    %v745 = vpack.c.b16 %v731, %v730
    %v746 = vpack.c.b16 %v733, %v732
    %v747 = vpack.c.b16 %v735, %v734
    %v748 = vpack.c.b16 %v737, %v736
    %v749 = vpack.c.b16 %v739, %v738
    %v750 = vpack.c.b16 %v741, %v740
    %v751 = vpack.c.b16 %v743, %v742
    %760 = vmatprep.subr.bf16.mxu0 0
    %761 = vmatpush1.bf16.msra.mxu0 %v744
    %762 = vmatprep.subr.bf16.mxu0 0
    %763 = vmatpush1.bf16.msra.mxu0 %v745
    %764 = vmatprep.subr.bf16.mxu0 0
    %765 = vmatpush1.bf16.msra.mxu0 %v746
    %766 = vmatprep.subr.bf16.mxu0 0
    %767 = vmatpush1.bf16.msra.mxu0 %v747
    %768 = vmatprep.subr.bf16.mxu0 0
    %769 = vmatpush1.bf16.msra.mxu0 %v748
    %770 = vmatprep.subr.bf16.mxu0 0
    %771 = vmatpush1.bf16.msra.mxu0 %v749
    %772 = vmatprep.subr.bf16.mxu0 0
    %773 = vmatpush1.bf16.msra.mxu0 %v750
    %774 = vmatprep.subr.bf16.mxu0 0
    %775 = vmatpush1.bf16.msra.mxu0 %v751
    %776 = vmatprep.subr.bf16.mxu0 0
    %777 = vmatpush1.bf16.msra.mxu0 0
    %778 = vmatprep.subr.bf16.mxu0 0
    %779 = vmatpush1.bf16.msra.mxu0 0
    %780 = vmatprep.subr.bf16.mxu0 0
    %781 = vmatpush1.bf16.msra.mxu0 0
    %782 = vmatprep.subr.bf16.mxu0 0
    %783 = vmatpush1.bf16.msra.mxu0 0
    %784 = vmatprep.subr.bf16.mxu0 0
    %785 = vmatpush1.bf16.msra.mxu0 0
    %786 = vmatprep.subr.bf16.mxu0 0
    %787 = vmatpush1.bf16.msra.mxu0 0
    %788 = vmatprep.subr.bf16.mxu0 0
    %789 = vmatpush1.bf16.msra.mxu0 0
    %790 = vmatprep.subr.bf16.mxu0 0
    %791 = vmatpush1.bf16.msra.mxu0 0
    %792 = vmatprep.mubr.bf16.mxu0 0
    %793 = vmatmul.mubr.bf16.gmra.mrb[0].mxu0 %v702
    %v794 = vpop.f32.mrb[0].mxu0
    %v795 = vadd.f32 %v710, %v794
    %v796 = vpop.f32.mrb[0].mxu0
    %v797 = vpop.f32.mrb[0].mxu0
    %v798 = vadd.f32 %v710, %v797
    %v799 = vpop.f32.mrb[0].mxu0
    %800 = vmatprep.mubr.bf16.mxu0 0
    %801 = vmatmul.mubr.bf16.gmra.mrb[0].mxu0 %v703
    %v802 = vpop.f32.mrb[0].mxu0
    %v803 = vadd.f32 %v710, %v802
    %v804 = vpop.f32.mrb[0].mxu0
    %v805 = vpop.f32.mrb[0].mxu0
    %v806 = vadd.f32 %v710, %v805
    %v807 = vpop.f32.mrb[0].mxu0
    %808 = vmatprep.mubr.bf16.mxu0 0
    %809 = vmatmul.mubr.bf16.gmra.mrb[0].mxu0 %v704
    %v810 = vpop.f32.mrb[0].mxu0
    %v811 = vadd.f32 %v710, %v810
    %v812 = vpop.f32.mrb[0].mxu0
    %v813 = vpop.f32.mrb[0].mxu0
    %v814 = vadd.f32 %v710, %v813
    %v815 = vpop.f32.mrb[0].mxu0
    %816 = vmatprep.mubr.bf16.mxu0 0
    %817 = vmatmul.mubr.bf16.gmra.mrb[0].mxu0 %v705
    %v818 = vpop.f32.mrb[0].mxu0
    %v819 = vadd.f32 %v710, %v818
    %v820 = vpop.f32.mrb[0].mxu0
    %v821 = vpop.f32.mrb[0].mxu0
    %v822 = vadd.f32 %v710, %v821
    %v823 = vpop.f32.mrb[0].mxu0
    %824 = vdwg.mxu0
    %825 = vst [vmem:[#allocation2] sm:$0xff] %v795
    %826 = vst [vmem:[#allocation2 + $0x8] sm:$0xff] %v798
    %827 = vst [vmem:[#allocation2 + $0x10] sm:$0xff] %v803
    %828 = vst [vmem:[#allocation2 + $0x18] sm:$0xff] %v806
    %829 = vst [vmem:[#allocation2 + $0x20] sm:$0xff] %v811
    %830 = vst [vmem:[#allocation2 + $0x28] sm:$0xff] %v814
    %831 = vst [vmem:[#allocation2 + $0x30] sm:$0xff] %v819
    %832 = vst [vmem:[#allocation2 + $0x38] sm:$0xff] %v822
    %v833 = vld [vmem:[#allocation2] sm:$0xff]
    %v834 = vmax.f32 %v833, 0.0
    %v835 = vld [vmem:[%s291] sm:$0xff]
    %v836 = vpack.c.bf16 %v834, %v834
    %v853 = vunpack.c.l.b16 %v677
    %v854 = vunpack.c.l.b16 %v678
    %v855 = vunpack.c.l.b16 %v679
    %v856 = vunpack.c.l.b16 %v680
    %v857 = vunpack.c.l.b16 %v681
    %v858 = vunpack.c.l.b16 %v682
    %v859 = vunpack.c.l.b16 %v683
    %v860 = vunpack.c.l.b16 %v684
    %v861 = vunpack.c.l.b16 %v685
    %v862 = vunpack.c.l.b16 %v686
    %v863 = vunpack.c.l.b16 %v687
    %v864 = vunpack.c.l.b16 %v688
    %v865 = vunpack.c.l.b16 %v689
    %v866 = vunpack.c.l.b16 %v690
    %v867 = vunpack.c.l.b16 %v691
    %v868 = vunpack.c.l.b16 %v692
    %v869 = vpack.c.b16 %v854, %v853
    %v870 = vpack.c.b16 %v856, %v855
    %v871 = vpack.c.b16 %v858, %v857
    %v872 = vpack.c.b16 %v860, %v859
    %v873 = vpack.c.b16 %v862, %v861
    %v874 = vpack.c.b16 %v864, %v863
    %v875 = vpack.c.b16 %v866, %v865
    %v876 = vpack.c.b16 %v868, %v867
    %885 = vmatprep.subr.bf16.mxu0 0
    %886 = vmatpush1.bf16.msra.mxu0 %v869
    %887 = vmatprep.subr.bf16.mxu0 0
    %888 = vmatpush1.bf16.msra.mxu0 %v870
    %889 = vmatprep.subr.bf16.mxu0 0
    %890 = vmatpush1.bf16.msra.mxu0 %v871
    %891 = vmatprep.subr.bf16.mxu0 0
    %892 = vmatpush1.bf16.msra.mxu0 %v872
    %893 = vmatprep.subr.bf16.mxu0 0
    %894 = vmatpush1.bf16.msra.mxu0 %v873
    %895 = vmatprep.subr.bf16.mxu0 0
    %896 = vmatpush1.bf16.msra.mxu0 %v874
    %897 = vmatprep.subr.bf16.mxu0 0
    %898 = vmatpush1.bf16.msra.mxu0 %v875
    %899 = vmatprep.subr.bf16.mxu0 0
    %900 = vmatpush1.bf16.msra.mxu0 %v876
    %901 = vmatprep.subr.bf16.mxu0 0
    %902 = vmatpush1.bf16.msra.mxu0 0
    %903 = vmatprep.subr.bf16.mxu0 0
    %904 = vmatpush1.bf16.msra.mxu0 0
    %905 = vmatprep.subr.bf16.mxu0 0
    %906 = vmatpush1.bf16.msra.mxu0 0
    %907 = vmatprep.subr.bf16.mxu0 0
    %908 = vmatpush1.bf16.msra.mxu0 0
    %909 = vmatprep.subr.bf16.mxu0 0
    %910 = vmatpush1.bf16.msra.mxu0 0
    %911 = vmatprep.subr.bf16.mxu0 0
    %912 = vmatpush1.bf16.msra.mxu0 0
    %913 = vmatprep.subr.bf16.mxu0 0
    %914 = vmatpush1.bf16.msra.mxu0 0
    %915 = vmatprep.subr.bf16.mxu0 0
    %916 = vmatpush1.bf16.msra.mxu0 0
    %917 = vmatprep.mubr.bf16.mxu0 0
    %918 = vmatmul.mubr.bf16.gmra.mrb[0].mxu0 %v836
    %v919 = vpop.f32.mrb[0].mxu0
    %v920 = vadd.f32 0.0, %v919
    %v921 = vpop.f32.mrb[0].mxu0
    %v922 = vpop.f32.mrb[0].mxu0
    %v923 = vpop.f32.mrb[0].mxu0
    %924 = vdwg.mxu0
    %v925 = vadd.f32 %v835, %v920
    %v926 = vmax.f32 %v925, 0.0
    %v927 = vld [vmem:[%s385] sm:$0xff]
    %v928 = vpack.c.bf16 %v926, %v926
    %929 = vmatprep.subr.bf16.mxu0 0
    %930 = vmatpush1.bf16.msra.mxu0 %v869
    %931 = vmatprep.subr.bf16.mxu0 0
    %932 = vmatpush1.bf16.msra.mxu0 %v870
    %933 = vmatprep.subr.bf16.mxu0 0
    %934 = vmatpush1.bf16.msra.mxu0 %v871
    %935 = vmatprep.subr.bf16.mxu0 0
    %936 = vmatpush1.bf16.msra.mxu0 %v872
    %937 = vmatprep.subr.bf16.mxu0 0
    %938 = vmatpush1.bf16.msra.mxu0 %v873
    %939 = vmatprep.subr.bf16.mxu0 0
    %940 = vmatpush1.bf16.msra.mxu0 %v874
    %941 = vmatprep.subr.bf16.mxu0 0
    %942 = vmatpush1.bf16.msra.mxu0 %v875
    %943 = vmatprep.subr.bf16.mxu0 0
    %944 = vmatpush1.bf16.msra.mxu0 %v876
    %945 = vmatprep.subr.bf16.mxu0 0
    %946 = vmatpush1.bf16.msra.mxu0 0
    %947 = vmatprep.subr.bf16.mxu0 0
    %948 = vmatpush1.bf16.msra.mxu0 0
    %949 = vmatprep.subr.bf16.mxu0 0
    %950 = vmatpush1.bf16.msra.mxu0 0
    %951 = vmatprep.subr.bf16.mxu0 0
    %952 = vmatpush1.bf16.msra.mxu0 0
    %953 = vmatprep.subr.bf16.mxu0 0
    %954 = vmatpush1.bf16.msra.mxu0 0
    %955 = vmatprep.subr.bf16.mxu0 0
    %956 = vmatpush1.bf16.msra.mxu0 0
    %957 = vmatprep.subr.bf16.mxu0 0
    %958 = vmatpush1.bf16.msra.mxu0 0
    %959 = vmatprep.subr.bf16.mxu0 0
    %960 = vmatpush1.bf16.msra.mxu0 0
    %961 = vmatprep.mubr.bf16.mxu0 0
    %962 = vmatmul.mubr.bf16.gmra.mrb[0].mxu0 %v928
    %v963 = vpop.f32.mrb[0].mxu0
    %v964 = vadd.f32 0.0, %v963
    %v965 = vpop.f32.mrb[0].mxu0
    %v966 = vpop.f32.mrb[0].mxu0
    %v967 = vpop.f32.mrb[0].mxu0
    %968 = vdwg.mxu0
    %v969 = vadd.f32 %v927, %v964
    %v970 = vmax.f32 %v969, 0.0
    %v971 = vld [vmem:[%s431] sm:$0xff]
    %v972 = vpack.c.bf16 %v970, %v970
    %973 = vmatprep.subr.bf16.mxu0 0
    %974 = vmatpush1.bf16.msra.mxu0 %v869
    %975 = vmatprep.subr.bf16.mxu0 0
    %976 = vmatpush1.bf16.msra.mxu0 %v870
    %977 = vmatprep.subr.bf16.mxu0 0
    %978 = vmatpush1.bf16.msra.mxu0 %v871
    %979 = vmatprep.subr.bf16.mxu0 0
    %980 = vmatpush1.bf16.msra.mxu0 %v872
    %981 = vmatprep.subr.bf16.mxu0 0
    %982 = vmatpush1.bf16.msra.mxu0 %v873
    %983 = vmatprep.subr.bf16.mxu0 0
    %984 = vmatpush1.bf16.msra.mxu0 %v874
    %985 = vmatprep.subr.bf16.mxu0 0
    %986 = vmatpush1.bf16.msra.mxu0 %v875
    %987 = vmatprep.subr.bf16.mxu0 0
    %988 = vmatpush1.bf16.msra.mxu0 %v876
    %989 = vmatprep.subr.bf16.mxu0 0
    %990 = vmatpush1.bf16.msra.mxu0 0
    %991 = vmatprep.subr.bf16.mxu0 0
    %992 = vmatpush1.bf16.msra.mxu0 0
    %993 = vmatprep.subr.bf16.mxu0 0
    %994 = vmatpush1.bf16.msra.mxu0 0
    %995 = vmatprep.subr.bf16.mxu0 0
    %996 = vmatpush1.bf16.msra.mxu0 0
    %997 = vmatprep.subr.bf16.mxu0 0
    %998 = vmatpush1.bf16.msra.mxu0 0
    %999 = vmatprep.subr.bf16.mxu0 0
    %1000 = vmatpush1.bf16.msra.mxu0 0
    %1001 = vmatprep.subr.bf16.mxu0 0
    %1002 = vmatpush1.bf16.msra.mxu0 0
    %1003 = vmatprep.subr.bf16.mxu0 0
    %1004 = vmatpush1.bf16.msra.mxu0 0
    %1005 = vmatprep.mubr.bf16.mxu0 0
    %1006 = vmatmul.mubr.bf16.gmra.mrb[0].mxu0 %v972
    %v1007 = vpop.f32.mrb[0].mxu0
    %v1008 = vadd.f32 0.0, %v1007
    %v1009 = vpop.f32.mrb[0].mxu0
    %v1010 = vpop.f32.mrb[0].mxu0
    %v1011 = vpop.f32.mrb[0].mxu0
    %1012 = vdwg.mxu0
    %v1013 = vadd.f32 %v971, %v1008
    %v1014 = vmax.f32 %v1013, 0.0
    %v1015 = vld [vmem:[%s477] sm:$0xff]
    %v1016 = vpack.c.bf16 %v1014, %v1014
    %1017 = vmatprep.subr.bf16.mxu0 0
    %1018 = vmatpush1.bf16.msra.mxu0 %v869
    %1019 = vmatprep.subr.bf16.mxu0 0
    %1020 = vmatpush1.bf16.msra.mxu0 %v870
    %1021 = vmatprep.subr.bf16.mxu0 0
    %1022 = vmatpush1.bf16.msra.mxu0 %v871
    %1023 = vmatprep.subr.bf16.mxu0 0
    %1024 = vmatpush1.bf16.msra.mxu0 %v872
    %1025 = vmatprep.subr.bf16.mxu0 0
    %1026 = vmatpush1.bf16.msra.mxu0 %v873
    %1027 = vmatprep.subr.bf16.mxu0 0
    %1028 = vmatpush1.bf16.msra.mxu0 %v874
    %1029 = vmatprep.subr.bf16.mxu0 0
    %1030 = vmatpush1.bf16.msra.mxu0 %v875
    %1031 = vmatprep.subr.bf16.mxu0 0
    %1032 = vmatpush1.bf16.msra.mxu0 %v876
    %1033 = vmatprep.subr.bf16.mxu0 0
    %1034 = vmatpush1.bf16.msra.mxu0 0
    %1035 = vmatprep.subr.bf16.mxu0 0
    %1036 = vmatpush1.bf16.msra.mxu0 0
    %1037 = vmatprep.subr.bf16.mxu0 0
    %1038 = vmatpush1.bf16.msra.mxu0 0
    %1039 = vmatprep.subr.bf16.mxu0 0
    %1040 = vmatpush1.bf16.msra.mxu0 0
    %1041 = vmatprep.subr.bf16.mxu0 0
    %1042 = vmatpush1.bf16.msra.mxu0 0
    %1043 = vmatprep.subr.bf16.mxu0 0
    %1044 = vmatpush1.bf16.msra.mxu0 0
    %1045 = vmatprep.subr.bf16.mxu0 0
    %1046 = vmatpush1.bf16.msra.mxu0 0
    %1047 = vmatprep.subr.bf16.mxu0 0
    %1048 = vmatpush1.bf16.msra.mxu0 0
    %1049 = vmatprep.mubr.bf16.mxu0 0
    %1050 = vmatmul.mubr.bf16.gmra.mrb[0].mxu0 %v1016
    %v1051 = vpop.f32.mrb[0].mxu0
    %v1052 = vadd.f32 0.0, %v1051
    %v1053 = vpop.f32.mrb[0].mxu0
    %v1054 = vpop.f32.mrb[0].mxu0
    %v1055 = vpop.f32.mrb[0].mxu0
    %1056 = vdwg.mxu0
    %v1057 = vadd.f32 %v1015, %v1052
    %v1058 = vmax.f32 %v1057, 0.0
    %v1059 = vld [vmem:[%s523] sm:$0xff]
    %v1060 = vpack.c.bf16 %v1058, %v1058
    %1061 = vmatprep.subr.bf16.mxu0 0
    %1062 = vmatpush1.bf16.msra.mxu0 %v869
    %1063 = vmatprep.subr.bf16.mxu0 0
    %1064 = vmatpush1.bf16.msra.mxu0 %v870
    %1065 = vmatprep.subr.bf16.mxu0 0
    %1066 = vmatpush1.bf16.msra.mxu0 %v871
    %1067 = vmatprep.subr.bf16.mxu0 0
    %1068 = vmatpush1.bf16.msra.mxu0 %v872
    %1069 = vmatprep.subr.bf16.mxu0 0
    %1070 = vmatpush1.bf16.msra.mxu0 %v873
    %1071 = vmatprep.subr.bf16.mxu0 0
    %1072 = vmatpush1.bf16.msra.mxu0 %v874
    %1073 = vmatprep.subr.bf16.mxu0 0
    %1074 = vmatpush1.bf16.msra.mxu0 %v875
    %1075 = vmatprep.subr.bf16.mxu0 0
    %1076 = vmatpush1.bf16.msra.mxu0 %v876
    %1077 = vmatprep.subr.bf16.mxu0 0
    %1078 = vmatpush1.bf16.msra.mxu0 0
    %1079 = vmatprep.subr.bf16.mxu0 0
    %1080 = vmatpush1.bf16.msra.mxu0 0
    %1081 = vmatprep.subr.bf16.mxu0 0
    %1082 = vmatpush1.bf16.msra.mxu0 0
    %1083 = vmatprep.subr.bf16.mxu0 0
    %1084 = vmatpush1.bf16.msra.mxu0 0
    %1085 = vmatprep.subr.bf16.mxu0 0
    %1086 = vmatpush1.bf16.msra.mxu0 0
    %1087 = vmatprep.subr.bf16.mxu0 0
    %1088 = vmatpush1.bf16.msra.mxu0 0
    %1089 = vmatprep.subr.bf16.mxu0 0
    %1090 = vmatpush1.bf16.msra.mxu0 0
    %1091 = vmatprep.subr.bf16.mxu0 0
    %1092 = vmatpush1.bf16.msra.mxu0 0
    %1093 = vmatprep.mubr.bf16.mxu0 0
    %1094 = vmatmul.mubr.bf16.gmra.mrb[0].mxu0 %v1060
    %v1095 = vpop.f32.mrb[0].mxu0
    %v1096 = vadd.f32 0.0, %v1095
    %v1097 = vpop.f32.mrb[0].mxu0
    %v1098 = vpop.f32.mrb[0].mxu0
    %v1099 = vpop.f32.mrb[0].mxu0
    %1100 = vdwg.mxu0
    %v1101 = vadd.f32 %v1059, %v1096
    %v1102 = vmax.f32 %v1101, 0.0
    %v1103 = vld [vmem:[%s569] sm:$0xff]
    %v1104 = vpack.c.bf16 %v1102, %v1102
    %1105 = vmatprep.subr.bf16.mxu0 0
    %1106 = vmatpush1.bf16.msra.mxu0 %v869
    %1107 = vmatprep.subr.bf16.mxu0 0
    %1108 = vmatpush1.bf16.msra.mxu0 %v870
    %1109 = vmatprep.subr.bf16.mxu0 0
    %1110 = vmatpush1.bf16.msra.mxu0 %v871
    %1111 = vmatprep.subr.bf16.mxu0 0
    %1112 = vmatpush1.bf16.msra.mxu0 %v872
    %1113 = vmatprep.subr.bf16.mxu0 0
    %1114 = vmatpush1.bf16.msra.mxu0 %v873
    %1115 = vmatprep.subr.bf16.mxu0 0
    %1116 = vmatpush1.bf16.msra.mxu0 %v874
    %1117 = vmatprep.subr.bf16.mxu0 0
    %1118 = vmatpush1.bf16.msra.mxu0 %v875
    %1119 = vmatprep.subr.bf16.mxu0 0
    %1120 = vmatpush1.bf16.msra.mxu0 %v876
    %1121 = vmatprep.subr.bf16.mxu0 0
    %1122 = vmatpush1.bf16.msra.mxu0 0
    %1123 = vmatprep.subr.bf16.mxu0 0
    %1124 = vmatpush1.bf16.msra.mxu0 0
    %1125 = vmatprep.subr.bf16.mxu0 0
    %1126 = vmatpush1.bf16.msra.mxu0 0
    %1127 = vmatprep.subr.bf16.mxu0 0
    %1128 = vmatpush1.bf16.msra.mxu0 0
    %1129 = vmatprep.subr.bf16.mxu0 0
    %1130 = vmatpush1.bf16.msra.mxu0 0
    %1131 = vmatprep.subr.bf16.mxu0 0
    %1132 = vmatpush1.bf16.msra.mxu0 0
    %1133 = vmatprep.subr.bf16.mxu0 0
    %1134 = vmatpush1.bf16.msra.mxu0 0
    %1135 = vmatprep.subr.bf16.mxu0 0
    %1136 = vmatpush1.bf16.msra.mxu0 0
    %1137 = vmatprep.mubr.bf16.mxu0 0
    %1138 = vmatmul.mubr.bf16.gmra.mrb[0].mxu0 %v1104
    %v1139 = vpop.f32.mrb[0].mxu0
    %v1140 = vadd.f32 0.0, %v1139
    %v1141 = vpop.f32.mrb[0].mxu0
    %v1142 = vpop.f32.mrb[0].mxu0
    %v1143 = vpop.f32.mrb[0].mxu0
    %1144 = vdwg.mxu0
    %v1145 = vadd.f32 %v1103, %v1140
    %v1146 = vmax.f32 %v1145, 0.0
    %v1147 = vld [vmem:[%s615] sm:$0xff]
    %v1148 = vpack.c.bf16 %v1146, %v1146
    %1149 = vmatprep.subr.bf16.mxu0 0
    %1150 = vmatpush1.bf16.msra.mxu0 %v869
    %1151 = vmatprep.subr.bf16.mxu0 0
    %1152 = vmatpush1.bf16.msra.mxu0 %v870
    %1153 = vmatprep.subr.bf16.mxu0 0
    %1154 = vmatpush1.bf16.msra.mxu0 %v871
    %1155 = vmatprep.subr.bf16.mxu0 0
    %1156 = vmatpush1.bf16.msra.mxu0 %v872
    %1157 = vmatprep.subr.bf16.mxu0 0
    %1158 = vmatpush1.bf16.msra.mxu0 %v873
    %1159 = vmatprep.subr.bf16.mxu0 0
    %1160 = vmatpush1.bf16.msra.mxu0 %v874
    %1161 = vmatprep.subr.bf16.mxu0 0
    %1162 = vmatpush1.bf16.msra.mxu0 %v875
    %1163 = vmatprep.subr.bf16.mxu0 0
    %1164 = vmatpush1.bf16.msra.mxu0 %v876
    %1165 = vmatprep.subr.bf16.mxu0 0
    %1166 = vmatpush1.bf16.msra.mxu0 0
    %1167 = vmatprep.subr.bf16.mxu0 0
    %1168 = vmatpush1.bf16.msra.mxu0 0
    %1169 = vmatprep.subr.bf16.mxu0 0
    %1170 = vmatpush1.bf16.msra.mxu0 0
    %1171 = vmatprep.subr.bf16.mxu0 0
    %1172 = vmatpush1.bf16.msra.mxu0 0
    %1173 = vmatprep.subr.bf16.mxu0 0
    %1174 = vmatpush1.bf16.msra.mxu0 0
    %1175 = vmatprep.subr.bf16.mxu0 0
    %1176 = vmatpush1.bf16.msra.mxu0 0
    %1177 = vmatprep.subr.bf16.mxu0 0
    %1178 = vmatpush1.bf16.msra.mxu0 0
    %1179 = vmatprep.subr.bf16.mxu0 0
    %1180 = vmatpush1.bf16.msra.mxu0 0
    %1181 = vmatprep.mubr.bf16.mxu0 0
    %1182 = vmatmul.mubr.bf16.gmra.mrb[0].mxu0 %v1148
    %v1183 = vpop.f32.mrb[0].mxu0
    %v1184 = vadd.f32 0.0, %v1183
    %v1185 = vpop.f32.mrb[0].mxu0
    %v1186 = vpop.f32.mrb[0].mxu0
    %v1187 = vpop.f32.mrb[0].mxu0
    %1188 = vdwg.mxu0
    %v1189 = vadd.f32 %v1147, %v1184
    %v1190 = vmax.f32 %v1189, 0.0
    %v1191 = vpack.c.bf16 %v1190, %v1190
    %v1192 = vld [vmem:[#allocation12] sm:$0xf]
    %v1193 = vld [vmem:[#allocation12 + $0x4] sm:$0xf]
    %v1194 = vld [vmem:[#allocation12 + $0x8] sm:$0xf]
    %v1195 = vld [vmem:[#allocation12 + $0xc] sm:$0xf]
    %v1196 = vld [vmem:[#allocation12 + $0x10] sm:$0xf]
    %v1197 = vld [vmem:[#allocation12 + $0x14] sm:$0xf]
    %v1198 = vld [vmem:[#allocation12 + $0x18] sm:$0xf]
    %v1199 = vld [vmem:[#allocation12 + $0x1c] sm:$0xf]
    %v1200 = vld [vmem:[#allocation12 + $0x20] sm:$0xf]
    %v1201 = vld [vmem:[#allocation12 + $0x24] sm:$0xf]
    %v1202 = vld [vmem:[#allocation12 + $0x28] sm:$0xf]
    %v1203 = vld [vmem:[#allocation12 + $0x2c] sm:$0xf]
    %v1204 = vld [vmem:[#allocation12 + $0x30] sm:$0xf]
    %v1205 = vld [vmem:[#allocation12 + $0x34] sm:$0xf]
    %v1206 = vld [vmem:[#allocation12 + $0x38] sm:$0xf]
    %v1207 = vld [vmem:[#allocation12 + $0x3c] sm:$0xf]
    %v1208 = vld [vmem:[%s8] sm:$0x1]
    %v1210 = vlaneseq
    %v1211 = vshrl.u32 %v1210, 7
    %v1212 = vsub.s32 0, %v1211
    %v1213 = vrot.slane %v1208, %v1212
    %v1231 = vunpack.c.l.b16 %v1192
    %v1232 = vunpack.c.l.b16 %v1193
    %v1233 = vunpack.c.l.b16 %v1194
    %v1234 = vunpack.c.l.b16 %v1195
    %v1235 = vunpack.c.l.b16 %v1196
    %v1236 = vunpack.c.l.b16 %v1197
    %v1237 = vunpack.c.l.b16 %v1198
    %v1238 = vunpack.c.l.b16 %v1199
    %v1239 = vunpack.c.l.b16 %v1200
    %v1240 = vunpack.c.l.b16 %v1201
    %v1241 = vunpack.c.l.b16 %v1202
    %v1242 = vunpack.c.l.b16 %v1203
    %v1243 = vunpack.c.l.b16 %v1204
    %v1244 = vunpack.c.l.b16 %v1205
    %v1245 = vunpack.c.l.b16 %v1206
    %v1246 = vunpack.c.l.b16 %v1207
    %v1247 = vpack.c.b16 %v1232, %v1231
    %v1248 = vpack.c.b16 %v1234, %v1233
    %v1249 = vpack.c.b16 %v1236, %v1235
    %v1250 = vpack.c.b16 %v1238, %v1237
    %v1251 = vpack.c.b16 %v1240, %v1239
    %v1252 = vpack.c.b16 %v1242, %v1241
    %v1253 = vpack.c.b16 %v1244, %v1243
    %v1254 = vpack.c.b16 %v1246, %v1245
    %1263 = vmatprep.subr.bf16.mxu0 0
    %1264 = vmatpush1.bf16.msra.mxu0 %v1247
    %1265 = vmatprep.subr.bf16.mxu0 0
    %1266 = vmatpush1.bf16.msra.mxu0 %v1248
    %1267 = vmatprep.subr.bf16.mxu0 0
    %1268 = vmatpush1.bf16.msra.mxu0 %v1249
    %1269 = vmatprep.subr.bf16.mxu0 0
    %1270 = vmatpush1.bf16.msra.mxu0 %v1250
    %1271 = vmatprep.subr.bf16.mxu0 0
    %1272 = vmatpush1.bf16.msra.mxu0 %v1251
    %1273 = vmatprep.subr.bf16.mxu0 0
    %1274 = vmatpush1.bf16.msra.mxu0 %v1252
    %1275 = vmatprep.subr.bf16.mxu0 0
    %1276 = vmatpush1.bf16.msra.mxu0 %v1253
    %1277 = vmatprep.subr.bf16.mxu0 0
    %1278 = vmatpush1.bf16.msra.mxu0 %v1254
    %1279 = vmatprep.subr.bf16.mxu0 0
    %1280 = vmatpush1.bf16.msra.mxu0 0
    %1281 = vmatprep.subr.bf16.mxu0 0
    %1282 = vmatpush1.bf16.msra.mxu0 0
    %1283 = vmatprep.subr.bf16.mxu0 0
    %1284 = vmatpush1.bf16.msra.mxu0 0
    %1285 = vmatprep.subr.bf16.mxu0 0
    %1286 = vmatpush1.bf16.msra.mxu0 0
    %1287 = vmatprep.subr.bf16.mxu0 0
    %1288 = vmatpush1.bf16.msra.mxu0 0
    %1289 = vmatprep.subr.bf16.mxu0 0
    %1290 = vmatpush1.bf16.msra.mxu0 0
    %1291 = vmatprep.subr.bf16.mxu0 0
    %1292 = vmatpush1.bf16.msra.mxu0 0
    %1293 = vmatprep.subr.bf16.mxu0 0
    %1294 = vmatpush1.bf16.msra.mxu0 0
    %1295 = vmatprep.mubr.bf16.mxu0 0
    %1296 = vmatmul.mubr.bf16.gmra.mrb[0].mxu0 %v1191
    %v1297 = vpop.f32.mrb[0].mxu0
    %v1298 = vadd.f32 %v1213, %v1297
    %v1299 = vpop.f32.mrb[0].mxu0
    %v1300 = vpop.f32.mrb[0].mxu0
    %v1301 = vpop.f32.mrb[0].mxu0
    %1302 = vdwg.mxu0
    %1303 = vst [vmem:[#allocation14] sm:$0xff] %v1298
    // Predicated region
    $region62: #{tpu_custom_call.1} parent=1 // pred_check
      _
    $region63: #{tpu_custom_call.1} parent=1 // pred_check_branch
      %1305 = sbr.rel (0) target = $region65
    $region64: #{tpu_custom_call.1} parent=1 // pred_region
      %s1307 = ssub.s32 128, 128
      %1308 = vsyncadd [#allocation5], %s1307
      %s1310 = sshll.u32 [#allocation14], 4
      %s1311 = int_to_ptr.vmem [resolvable:$true] %s1310
      %1313 = dma.vmem_to_hbm [thread:$0]  %s1311, 128, %s9, [#allocation5]
    $region65: #{tpu_custom_call.1} parent=1 // pred_fallthru
      _
    // Predicated region
    $region66: #{tpu_custom_call.1} parent=1 // pred_check
      _
    $region67: #{tpu_custom_call.1} parent=1 // pred_check_branch
      %1315 = sbr.rel (0) target = $region69
    $region68: #{tpu_custom_call.1} parent=1 // pred_region
      %1316 = dma.done [#allocation5], 128
    $region69: #{tpu_custom_call.1} parent=1 // pred_fallthru
      _
    %1317 = vsyncpa [#allocation4], 1
    %1318 = vsyncpa [#allocation7], 1
    %1319 = vsyncpa [#allocation10], 1
    %1320 = vsyncpa [#allocation13], 1
    %1321 = vsyncpa [#allocation5], 1

</llo_original>
